<compile_context>
chip_gen: v7x
topology: tpu7x:2x2x1
jax: 0.10.0
libtpu: 0.0.40
codegen_flags: <defaults>
</compile_context>

<pallas_src>
import functools

import jax
import jax.numpy as jnp
from jax import lax
from jax.experimental import pallas as pl
from jax.experimental.pallas import tpu as pltpu


# ---------------------------------------------------------------------------
# Pallas kernel: fused bidirectional single-layer LSTM.
#
# Inputs (whole-array VMEM blocks, time-major-flat layout (T*Bp, F)):
#   xa_ref  : (T*Bp, Da)   first input chunk (embeddings / output_1)
#   xb_ref  : (T*Bp, Db)   second input chunk (cove)
#   wa_ref  : (Da, 8H)     input->gate weights for xa (gate-major, [fwd|bwd])
#   wb_ref  : (Db, 8H)     input->gate weights for xb
#   whh_ref : (2H, 8H)     block-structured recurrent weights (fwd rows -> fwd
#                          gate lanes, bwd rows -> bwd gate lanes, zeros else)
#   b_ref   : (1, 8H)      combined bias (b_ih + b_hh), gate-major [fwd|bwd]
# Output:
#   out_ref : (T*Bp, out_offset + 2H); columns [out_offset : out_offset+H] are
#             forward hidden states, [out_offset+H : out_offset+2H] backward.
#             If copy_xa, columns [:out_offset] receive a copy of xa (fuses the
#             final cat(output_1, output_2)).
# Scratch:
#   gx_ref  : (T*Bp, 8H)   pre-computed input projections (+bias).
# ---------------------------------------------------------------------------
def _bilstm_kernel(xa_ref, xb_ref, wa_ref, wb_ref, whh_ref, b_ref,
                   out_ref, gx_ref, *, seq_len, batch_pad, hidden,
                   out_offset, copy_xa):
    T, Bp, H = seq_len, batch_pad, hidden
    H2 = 2 * H           # combined (fwd || bwd) state width
    G = 8 * H            # combined gate width: 4 gates x 2 directions

    # ---- Phase 1: hoisted input projection (single lane-dense matmul) ----
    gx_ref[...] = (
        jnp.dot(xa_ref[...], wa_ref[...], preferred_element_type=jnp.float32)
        + jnp.dot(xb_ref[...], wb_ref[...], preferred_element_type=jnp.float32)
        + b_ref[...])

    # Fuse the caller-side concat: copy xa into the leading output columns.
    if copy_xa:
        out_ref[:, :out_offset] = xa_ref[...]

    whh = whh_ref[...]                                   # (2H, 8H)

    # Forward lanes are the lower H lanes of each 2H gate block. Built once
    # (hoisted out of the loop; JAX does not CSE broadcast_in_dim).
    lane = lax.broadcasted_iota(jnp.int32, (Bp, G), 1)
    fwd_lane = (lane % H2) < H

    h = jnp.zeros((Bp, H2), jnp.float32)                 # [h_fwd || h_bwd]
    c = jnp.zeros((Bp, H2), jnp.float32)                 # [c_fwd || c_bwd]

    # ---- Phase 2: fused fwd+bwd recurrence, fully unrolled over static T ----
    # (Equivalent to lax.fori_loop(..., unroll=True); Python ints make every
    #  slice a compile-time constant and an aligned sublane tile.)
    for s in range(T):
        rf = s * Bp                 # rows of time step s        (forward dir)
        rb = (T - 1 - s) * Bp       # rows of time step T-1-s    (backward dir)
        gx_f = gx_ref[pl.ds(rf, Bp), :]
        gx_b = gx_ref[pl.ds(rb, Bp), :]
        # Forward lanes take time s, backward lanes take time T-1-s.
        gx = jnp.where(fwd_lane, gx_f, gx_b)
        # One (Bp, 2H) @ (2H, 8H=128) MXU push serves both directions.
        gates = gx + jnp.dot(h, whh, preferred_element_type=jnp.float32)
        # Full-vreg EUP ops over all 128 gate lanes, sliced afterwards.
        sig = jax.nn.sigmoid(gates)
        tnh = jnp.tanh(gates)
        i_g = sig[:, 0 * H2:1 * H2]          # [i_fwd | i_bwd]
        f_g = sig[:, 1 * H2:2 * H2]          # [f_fwd | f_bwd]
        g_g = tnh[:, 2 * H2:3 * H2]          # [g_fwd | g_bwd]
        o_g = sig[:, 3 * H2:4 * H2]          # [o_fwd | o_bwd]
        c = f_g * c + i_g * g_g
        h = o_g * jnp.tanh(c)
        out_ref[pl.ds(rf, Bp), out_offset:out_offset + H] = h[:, :H]
        out_ref[pl.ds(rb, Bp), out_offset + H:out_offset + H2] = h[:, H:]


def _bilstm_pallas(xa_flat, xb_flat, params, seq_len, batch_pad, *, copy_xa):
    """Run one fused BiLSTM layer. Inputs are time-major-flat (T*Bp, F)."""
    H = params['whh'].shape[0] // 2
    Da = xa_flat.shape[1]
    out_offset = Da if copy_xa else 0
    out_feat = out_offset + 2 * H
    kernel = functools.partial(
        _bilstm_kernel, seq_len=seq_len, batch_pad=batch_pad, hidden=H,
        out_offset=out_offset, copy_xa=copy_xa)
    vmem = pl.BlockSpec(memory_space=pltpu.MemorySpace.VMEM)
    return pl.pallas_call(
        kernel,
        out_shape=jax.ShapeDtypeStruct((seq_len * batch_pad, out_feat),
                                       jnp.float32),
        in_specs=[vmem] * 6,
        out_specs=vmem,
        scratch_shapes=[pltpu.VMEM((seq_len * batch_pad, 8 * H), jnp.float32)],
    )(xa_flat, xb_flat, params['wa'], params['wb'],
      params['whh'], params['bias'])


# ---------------------------------------------------------------------------
# Layout helpers (batch-first (B,T,F)  <->  time-major-flat (T*Bp, F)).
# ---------------------------------------------------------------------------
def _to_time_major_flat(x_btf, batch_pad):
    B, T, F = x_btf.shape
    x = jnp.transpose(x_btf, (1, 0, 2)).astype(jnp.float32)   # (T, B, F)
    if batch_pad != B:
        x = jnp.pad(x, ((0, 0), (0, batch_pad - B), (0, 0)))
    return x.reshape(T * batch_pad, F)


def _from_time_major_flat(y_flat, seq_len, batch, batch_pad):
    y = y_flat.reshape(seq_len, batch_pad, -1)[:, :batch, :]
    return jnp.transpose(y, (1, 0, 2))


# ---------------------------------------------------------------------------
# Parameter construction (deterministic, PyTorch-LSTM-style uniform init),
# packed into the kernel's gate-major [fwd|bwd] layout.
# ---------------------------------------------------------------------------
def _interleave_gate_cols(wf, wb, H):
    """(rows,4H),(rows,4H) -> (rows,8H) with per-gate [fwd(H) | bwd(H)] blocks."""
    parts = []
    for k in range(4):
        parts.append(wf[:, k * H:(k + 1) * H])
        parts.append(wb[:, k * H:(k + 1) * H])
    return jnp.concatenate(parts, axis=1)


def init_brnn_params(key, input_size, split_a, output_size):
    assert output_size % 2 == 0, "bidirectional output must be even"
    H = output_size // 2
    bound = 1.0 / float(H) ** 0.5
    keys = jax.random.split(key, 8)

    def u(k_, shape):
        return jax.random.uniform(k_, shape, jnp.float32, -bound, bound)

    # PyTorch gate order (i, f, g, o), per direction.
    wih_f = u(keys[0], (input_size, 4 * H))
    whh_f = u(keys[1], (H, 4 * H))
    b_f = u(keys[2], (1, 4 * H)) + u(keys[3], (1, 4 * H))    # b_ih + b_hh
    wih_b = u(keys[4], (input_size, 4 * H))
    whh_b = u(keys[5], (H, 4 * H))
    b_b = u(keys[6], (1, 4 * H)) + u(keys[7], (1, 4 * H))

    wih = _interleave_gate_cols(wih_f, wih_b, H)             # (input, 8H)
    bias = _interleave_gate_cols(b_f, b_b, H)                # (1, 8H)

    # Block-structured recurrent weights: rows [:H] (h_fwd) feed only the
    # forward gate lanes, rows [H:] (h_bwd) only the backward gate lanes.
    whh = jnp.zeros((2 * H, 8 * H), jnp.float32)
    for k in range(4):
        whh = whh.at[:H, k * 2 * H:k * 2 * H + H].set(whh_f[:, k * H:(k + 1) * H])
        whh = whh.at[H:, k * 2 * H + H:(k + 1) * 2 * H].set(whh_b[:, k * H:(k + 1) * H])

    # Row-wise split of the input weights fuses the cat(xa, xb) into the matmul.
    return {'wa': wih[:split_a], 'wb': wih[split_a:], 'whh': whh, 'bias': bias}


def init_context_encoder(key, config):
    layer_1_input_size = int(config['input_size'])
    layer_1_output_size = int(config['layer_1_output_size'])
    cove_size = int(config['cove_size'])
    layer_2_input_size = layer_1_output_size + cove_size
    layer_2_output_size = int(config['layer_2_output_size'])
    k1, k2 = jax.random.split(key)
    return {
        'layer_1': init_brnn_params(k1, layer_1_input_size,
                                    layer_1_input_size - cove_size,
                                    layer_1_output_size),
        'layer_2': init_brnn_params(k2, layer_2_input_size,
                                    layer_1_output_size,
                                    layer_2_output_size),
    }


@jax.jit
def context_encoder_forward(params, embeddings, cove_l1, cove_l2):
    B, T, _ = embeddings.shape
    Bp = ((B + 7) // 8) * 8          # pad batch to f32 sublane count
    emb_f = _to_time_major_flat(embeddings, Bp)
    c1_f = _to_time_major_flat(cove_l1, Bp)
    c2_f = _to_time_major_flat(cove_l2, Bp)
    # Layer 1: BiLSTM over cat(embeddings, cove_l1); concat fused into matmul.
    out1_f = _bilstm_pallas(emb_f, c1_f, params['layer_1'], T, Bp,
                            copy_xa=False)
    # Layer 2: BiLSTM over cat(output_1, cove_l2); the kernel also writes
    # output_1 into the leading columns -> output is cat(output_1, output_2).
    out_f = _bilstm_pallas(out1_f, c2_f, params['layer_2'], T, Bp,
                           copy_xa=True)
    return _from_time_major_flat(out_f, T, B, Bp)


if __name__ == "__main__":
    # Small, consistent config: input_size = emb_dim + cove_size.
    B, T = 2, 8
    emb_dim, cove_size = 24, 8
    config = {
        'input_size': emb_dim + cove_size,     # 32
        'layer_1_output_size': 32,             # hidden 16 per direction
        'layer_2_output_size': 32,
        'cove_size': cove_size,
        'dropout': 0.0,                        # never applied in forward
    }

    key = jax.random.PRNGKey(0)
    k_params, k_emb, k_c1, k_c2 = jax.random.split(key, 4)
    params = init_context_encoder(k_params, config)

    embeddings = jax.random.normal(k_emb, (B, T, emb_dim), jnp.float32)
    cove_l1 = jax.random.normal(k_c1, (B, T, cove_size), jnp.float32)
    cove_l2 = jax.random.normal(k_c2, (B, T, cove_size), jnp.float32)

    out = context_encoder_forward(params, embeddings, cove_l1, cove_l2)
    out = jax.block_until_ready(out)

    expected_feat = int(config['layer_1_output_size']) + int(config['layer_2_output_size'])
    assert out.shape == (B, T, expected_feat), out.shape
    assert bool(jnp.all(jnp.isfinite(out)))
    print("KERNEL_OK")
</pallas_src>

<mosaic_0001>
module attributes {stable_mosaic.version = 11 : i64} {
  func.func @_bilstm_kernel(%arg0: memref<64x32xf32, #tpu.memory_space<vmem>>, %arg1: memref<64x8xf32, #tpu.memory_space<vmem>>, %arg2: memref<32x128xf32, #tpu.memory_space<vmem>>, %arg3: memref<8x128xf32, #tpu.memory_space<vmem>>, %arg4: memref<32x128xf32, #tpu.memory_space<vmem>>, %arg5: memref<1x128xf32, #tpu.memory_space<vmem>>, %arg6: memref<64x64xf32, #tpu.memory_space<vmem>>, %arg7: memref<64x128xf32, #tpu.memory_space<vmem>>) attributes {dimension_semantics = [], scalar_prefetch = 0 : i64, scratch_operands = 1 : i64, tpu.core_type = #tpu.core_type<tc>} {
    %c0 = arith.constant 0 : index
    %c0_0 = arith.constant 0 : index
    %0 = vector.load %arg0[%c0, %c0_0] : memref<64x32xf32, #tpu.memory_space<vmem>>, vector<64x32xf32>
    %c0_1 = arith.constant 0 : index
    %c0_2 = arith.constant 0 : index
    %1 = vector.load %arg2[%c0_1, %c0_2] : memref<32x128xf32, #tpu.memory_space<vmem>>, vector<32x128xf32>
    %cst = arith.constant dense<0.000000e+00> : vector<64x128xf32>
    %2 = tpu.matmul %0, %1, %cst {dimension_numbers = #tpu.dot_dimension_numbers<[1], [0], [0], [1], [0, 0, 1, 1], [], []>} : vector<64x32xf32>, vector<32x128xf32>, vector<64x128xf32> -> vector<64x128xf32>
    %c0_3 = arith.constant 0 : index
    %c0_4 = arith.constant 0 : index
    %3 = vector.load %arg1[%c0_3, %c0_4] : memref<64x8xf32, #tpu.memory_space<vmem>>, vector<64x8xf32>
    %c0_5 = arith.constant 0 : index
    %c0_6 = arith.constant 0 : index
    %4 = vector.load %arg3[%c0_5, %c0_6] : memref<8x128xf32, #tpu.memory_space<vmem>>, vector<8x128xf32>
    %cst_7 = arith.constant dense<0.000000e+00> : vector<64x128xf32>
    %5 = tpu.matmul %3, %4, %cst_7 {dimension_numbers = #tpu.dot_dimension_numbers<[1], [0], [0], [1], [0, 0, 1, 1], [], []>} : vector<64x8xf32>, vector<8x128xf32>, vector<64x128xf32> -> vector<64x128xf32>
    %6 = arith.addf %2, %5 : vector<64x128xf32>
    %c0_8 = arith.constant 0 : index
    %c0_9 = arith.constant 0 : index
    %7 = vector.load %arg5[%c0_8, %c0_9] : memref<1x128xf32, #tpu.memory_space<vmem>>, vector<1x128xf32>
    %8 = vector.broadcast %7 : vector<1x128xf32> to vector<64x128xf32>
    %9 = arith.addf %6, %8 : vector<64x128xf32>
    %c0_10 = arith.constant 0 : index
    %c0_11 = arith.constant 0 : index
    %10 = vector.load %arg7[%c0_10, %c0_11] : memref<64x128xf32, #tpu.memory_space<vmem>>, vector<64x128xf32>
    tpu.vector_store %arg7[%c0_10, %c0_11], %9 {strides = array<i32>} : memref<64x128xf32, #tpu.memory_space<vmem>>, vector<64x128xf32>,
    %c0_12 = arith.constant 0 : index
    %c0_13 = arith.constant 0 : index
    %11 = vector.load %arg0[%c0_12, %c0_13] : memref<64x32xf32, #tpu.memory_space<vmem>>, vector<64x32xf32>
    %c0_14 = arith.constant 0 : index
    %c0_15 = arith.constant 0 : index
    %12 = vector.load %arg6[%c0_14, %c0_15] : memref<64x64xf32, #tpu.memory_space<vmem>>, vector<64x32xf32>
    tpu.vector_store %arg6[%c0_14, %c0_15], %11 {strides = array<i32>} : memref<64x64xf32, #tpu.memory_space<vmem>>, vector<64x32xf32>,
    %c0_16 = arith.constant 0 : index
    %c0_17 = arith.constant 0 : index
    %13 = vector.load %arg4[%c0_16, %c0_17] : memref<32x128xf32, #tpu.memory_space<vmem>>, vector<32x128xf32>
    %14 = tpu.iota {dimensions = array<i32: 1>} : vector<8x128xi32>
    %c32_i32 = arith.constant 32 : i32
    %c0_i32 = arith.constant 0 : i32
    %15 = arith.cmpi eq, %c32_i32, %c0_i32 : i32
    %c1_i32 = arith.constant 1 : i32
    %16 = arith.select %15, %c1_i32, %c32_i32 : i32
    %17 = vector.broadcast %16 : i32 to vector<8x128xi32>
    %18 = arith.remsi %14, %17 : vector<8x128xi32>
    %c0_i32_18 = arith.constant 0 : i32
    %19 = vector.broadcast %c0_i32_18 : i32 to vector<8x128xi32>
    %20 = arith.cmpi ne, %18, %19 : vector<8x128xi32>
    %c0_i32_19 = arith.constant 0 : i32
    %21 = vector.broadcast %c0_i32_19 : i32 to vector<8x128xi32>
    %22 = arith.cmpi slt, %18, %21 : vector<8x128xi32>
    %c0_i32_20 = arith.constant 0 : i32
    %23 = arith.cmpi slt, %16, %c0_i32_20 : i32
    %24 = vector.broadcast %23 : i1 to vector<8x128xi1>
    %25 = vector.broadcast %24 : vector<8x128xi1> to vector<8x128xi1>
    %26 = arith.xori %22, %25 : vector<8x128xi1>
    %27 = arith.andi %26, %20 : vector<8x128xi1>
    %28 = vector.broadcast %16 : i32 to vector<8x128xi32>
    %29 = arith.addi %18, %28 : vector<8x128xi32>
    %30 = arith.select %27, %29, %18 : vector<8x128xi1>, vector<8x128xi32>
    %c16_i32 = arith.constant 16 : i32
    %31 = vector.broadcast %c16_i32 : i32 to vector<8x128xi32>
    %32 = arith.cmpi slt, %30, %31 : vector<8x128xi32>
    %cst_21 = arith.constant 0.000000e+00 : f32
    %33 = vector.broadcast %cst_21 : f32 to vector<8x32xf32>
    %cst_22 = arith.constant 0.000000e+00 : f32
    %34 = vector.broadcast %cst_22 : f32 to vector<8x32xf32>
    %c0_23 = arith.constant 0 : index
    %c0_24 = arith.constant 0 : index
    %35 = vector.load %arg7[%c0_23, %c0_24] : memref<64x128xf32, #tpu.memory_space<vmem>>, vector<8x128xf32>
    %c56 = arith.constant 56 : index
    %c0_25 = arith.constant 0 : index
    %36 = vector.load %arg7[%c56, %c0_25] : memref<64x128xf32, #tpu.memory_space<vmem>>, vector<8x128xf32>
    %37 = arith.select %32, %35, %36 : vector<8x128xi1>, vector<8x128xf32>
    %cst_26 = arith.constant dense<0.000000e+00> : vector<8x128xf32>
    %38 = tpu.matmul %33, %13, %cst_26 {dimension_numbers = #tpu.dot_dimension_numbers<[1], [0], [0], [1], [0, 0, 1, 1], [], []>} : vector<8x32xf32>, vector<32x128xf32>, vector<8x128xf32> -> vector<8x128xf32>
    %39 = arith.addf %37, %38 : vector<8x128xf32>
    %40 = arith.negf %39 : vector<8x128xf32>
    %41 = math.exp %40 : vector<8x128xf32>
    %cst_27 = arith.constant 1.000000e+00 : f32
    %42 = vector.broadcast %cst_27 : f32 to vector<8x128xf32>
    %43 = arith.addf %42, %41 : vector<8x128xf32>
    %44 = arith.divf %42, %43 : vector<8x128xf32>
    %45 = math.tanh %39 : vector<8x128xf32>
    %46 = vector.extract_strided_slice %44 {offsets = [0, 0], sizes = [8, 32], strides = [1, 1]} : vector<8x128xf32> to vector<8x32xf32>
    %47 = vector.extract_strided_slice %44 {offsets = [0, 32], sizes = [8, 32], strides = [1, 1]} : vector<8x128xf32> to vector<8x32xf32>
    %48 = vector.extract_strided_slice %45 {offsets = [0, 64], sizes = [8, 32], strides = [1, 1]} : vector<8x128xf32> to vector<8x32xf32>
    %49 = vector.extract_strided_slice %44 {offsets = [0, 96], sizes = [8, 32], strides = [1, 1]} : vector<8x128xf32> to vector<8x32xf32>
    %50 = arith.mulf %47, %34 : vector<8x32xf32>
    %51 = arith.mulf %46, %48 : vector<8x32xf32>
    %52 = arith.addf %50, %51 : vector<8x32xf32>
    %53 = math.tanh %52 : vector<8x32xf32>
    %54 = arith.mulf %49, %53 : vector<8x32xf32>
    %55 = vector.extract_strided_slice %54 {offsets = [0, 0], sizes = [8, 16], strides = [1, 1]} : vector<8x32xf32> to vector<8x16xf32>
    %c0_28 = arith.constant 0 : index
    %c32 = arith.constant 32 : index
    %56 = vector.load %arg6[%c0_28, %c32] : memref<64x64xf32, #tpu.memory_space<vmem>>, vector<8x16xf32>
    tpu.vector_store %arg6[%c0_28, %c32], %55 {strides = array<i32>} : memref<64x64xf32, #tpu.memory_space<vmem>>, vector<8x16xf32>,
    %57 = vector.extract_strided_slice %54 {offsets = [0, 16], sizes = [8, 16], strides = [1, 1]} : vector<8x32xf32> to vector<8x16xf32>
    %c56_29 = arith.constant 56 : index
    %c48 = arith.constant 48 : index
    %58 = vector.load %arg6[%c56_29, %c48] : memref<64x64xf32, #tpu.memory_space<vmem>>, vector<8x16xf32>
    tpu.vector_store %arg6[%c56_29, %c48], %57 {strides = array<i32>} : memref<64x64xf32, #tpu.memory_space<vmem>>, vector<8x16xf32>,
    %c8 = arith.constant 8 : index
    %c0_30 = arith.constant 0 : index
    %59 = vector.load %arg7[%c8, %c0_30] : memref<64x128xf32, #tpu.memory_space<vmem>>, vector<8x128xf32>
    %c48_31 = arith.constant 48 : index
    %c0_32 = arith.constant 0 : index
    %60 = vector.load %arg7[%c48_31, %c0_32] : memref<64x128xf32, #tpu.memory_space<vmem>>, vector<8x128xf32>
    %61 = arith.select %32, %59, %60 : vector<8x128xi1>, vector<8x128xf32>
    %cst_33 = arith.constant dense<0.000000e+00> : vector<8x128xf32>
    %62 = tpu.matmul %54, %13, %cst_33 {dimension_numbers = #tpu.dot_dimension_numbers<[1], [0], [0], [1], [0, 0, 1, 1], [], []>} : vector<8x32xf32>, vector<32x128xf32>, vector<8x128xf32> -> vector<8x128xf32>
    %63 = arith.addf %61, %62 : vector<8x128xf32>
    %64 = arith.negf %63 : vector<8x128xf32>
    %65 = math.exp %64 : vector<8x128xf32>
    %cst_34 = arith.constant 1.000000e+00 : f32
    %66 = vector.broadcast %cst_34 : f32 to vector<8x128xf32>
    %67 = arith.addf %66, %65 : vector<8x128xf32>
    %68 = arith.divf %66, %67 : vector<8x128xf32>
    %69 = math.tanh %63 : vector<8x128xf32>
    %70 = vector.extract_strided_slice %68 {offsets = [0, 0], sizes = [8, 32], strides = [1, 1]} : vector<8x128xf32> to vector<8x32xf32>
    %71 = vector.extract_strided_slice %68 {offsets = [0, 32], sizes = [8, 32], strides = [1, 1]} : vector<8x128xf32> to vector<8x32xf32>
    %72 = vector.extract_strided_slice %69 {offsets = [0, 64], sizes = [8, 32], strides = [1, 1]} : vector<8x128xf32> to vector<8x32xf32>
    %73 = vector.extract_strided_slice %68 {offsets = [0, 96], sizes = [8, 32], strides = [1, 1]} : vector<8x128xf32> to vector<8x32xf32>
    %74 = arith.mulf %71, %52 : vector<8x32xf32>
    %75 = arith.mulf %70, %72 : vector<8x32xf32>
    %76 = arith.addf %74, %75 : vector<8x32xf32>
    %77 = math.tanh %76 : vector<8x32xf32>
    %78 = arith.mulf %73, %77 : vector<8x32xf32>
    %79 = vector.extract_strided_slice %78 {offsets = [0, 0], sizes = [8, 16], strides = [1, 1]} : vector<8x32xf32> to vector<8x16xf32>
    %c8_35 = arith.constant 8 : index
    %c32_36 = arith.constant 32 : index
    %80 = vector.load %arg6[%c8_35, %c32_36] : memref<64x64xf32, #tpu.memory_space<vmem>>, vector<8x16xf32>
    tpu.vector_store %arg6[%c8_35, %c32_36], %79 {strides = array<i32>} : memref<64x64xf32, #tpu.memory_space<vmem>>, vector<8x16xf32>,
    %81 = vector.extract_strided_slice %78 {offsets = [0, 16], sizes = [8, 16], strides = [1, 1]} : vector<8x32xf32> to vector<8x16xf32>
    %c48_37 = arith.constant 48 : index
    %c48_38 = arith.constant 48 : index
    %82 = vector.load %arg6[%c48_37, %c48_38] : memref<64x64xf32, #tpu.memory_space<vmem>>, vector<8x16xf32>
    tpu.vector_store %arg6[%c48_37, %c48_38], %81 {strides = array<i32>} : memref<64x64xf32, #tpu.memory_space<vmem>>, vector<8x16xf32>,
    %c16 = arith.constant 16 : index
    %c0_39 = arith.constant 0 : index
    %83 = vector.load %arg7[%c16, %c0_39] : memref<64x128xf32, #tpu.memory_space<vmem>>, vector<8x128xf32>
    %c40 = arith.constant 40 : index
    %c0_40 = arith.constant 0 : index
    %84 = vector.load %arg7[%c40, %c0_40] : memref<64x128xf32, #tpu.memory_space<vmem>>, vector<8x128xf32>
    %85 = arith.select %32, %83, %84 : vector<8x128xi1>, vector<8x128xf32>
    %cst_41 = arith.constant dense<0.000000e+00> : vector<8x128xf32>
    %86 = tpu.matmul %78, %13, %cst_41 {dimension_numbers = #tpu.dot_dimension_numbers<[1], [0], [0], [1], [0, 0, 1, 1], [], []>} : vector<8x32xf32>, vector<32x128xf32>, vector<8x128xf32> -> vector<8x128xf32>
    %87 = arith.addf %85, %86 : vector<8x128xf32>
    %88 = arith.negf %87 : vector<8x128xf32>
    %89 = math.exp %88 : vector<8x128xf32>
    %cst_42 = arith.constant 1.000000e+00 : f32
    %90 = vector.broadcast %cst_42 : f32 to vector<8x128xf32>
    %91 = arith.addf %90, %89 : vector<8x128xf32>
    %92 = arith.divf %90, %91 : vector<8x128xf32>
    %93 = math.tanh %87 : vector<8x128xf32>
    %94 = vector.extract_strided_slice %92 {offsets = [0, 0], sizes = [8, 32], strides = [1, 1]} : vector<8x128xf32> to vector<8x32xf32>
    %95 = vector.extract_strided_slice %92 {offsets = [0, 32], sizes = [8, 32], strides = [1, 1]} : vector<8x128xf32> to vector<8x32xf32>
    %96 = vector.extract_strided_slice %93 {offsets = [0, 64], sizes = [8, 32], strides = [1, 1]} : vector<8x128xf32> to vector<8x32xf32>
    %97 = vector.extract_strided_slice %92 {offsets = [0, 96], sizes = [8, 32], strides = [1, 1]} : vector<8x128xf32> to vector<8x32xf32>
    %98 = arith.mulf %95, %76 : vector<8x32xf32>
    %99 = arith.mulf %94, %96 : vector<8x32xf32>
    %100 = arith.addf %98, %99 : vector<8x32xf32>
    %101 = math.tanh %100 : vector<8x32xf32>
    %102 = arith.mulf %97, %101 : vector<8x32xf32>
    %103 = vector.extract_strided_slice %102 {offsets = [0, 0], sizes = [8, 16], strides = [1, 1]} : vector<8x32xf32> to vector<8x16xf32>
    %c16_43 = arith.constant 16 : index
    %c32_44 = arith.constant 32 : index
    %104 = vector.load %arg6[%c16_43, %c32_44] : memref<64x64xf32, #tpu.memory_space<vmem>>, vector<8x16xf32>
    tpu.vector_store %arg6[%c16_43, %c32_44], %103 {strides = array<i32>} : memref<64x64xf32, #tpu.memory_space<vmem>>, vector<8x16xf32>,
    %105 = vector.extract_strided_slice %102 {offsets = [0, 16], sizes = [8, 16], strides = [1, 1]} : vector<8x32xf32> to vector<8x16xf32>
    %c40_45 = arith.constant 40 : index
    %c48_46 = arith.constant 48 : index
    %106 = vector.load %arg6[%c40_45, %c48_46] : memref<64x64xf32, #tpu.memory_space<vmem>>, vector<8x16xf32>
    tpu.vector_store %arg6[%c40_45, %c48_46], %105 {strides = array<i32>} : memref<64x64xf32, #tpu.memory_space<vmem>>, vector<8x16xf32>,
    %c24 = arith.constant 24 : index
    %c0_47 = arith.constant 0 : index
    %107 = vector.load %arg7[%c24, %c0_47] : memref<64x128xf32, #tpu.memory_space<vmem>>, vector<8x128xf32>
    %c32_48 = arith.constant 32 : index
    %c0_49 = arith.constant 0 : index
    %108 = vector.load %arg7[%c32_48, %c0_49] : memref<64x128xf32, #tpu.memory_space<vmem>>, vector<8x128xf32>
    %109 = arith.select %32, %107, %108 : vector<8x128xi1>, vector<8x128xf32>
    %cst_50 = arith.constant dense<0.000000e+00> : vector<8x128xf32>
    %110 = tpu.matmul %102, %13, %cst_50 {dimension_numbers = #tpu.dot_dimension_numbers<[1], [0], [0], [1], [0, 0, 1, 1], [], []>} : vector<8x32xf32>, vector<32x128xf32>, vector<8x128xf32> -> vector<8x128xf32>
    %111 = arith.addf %109, %110 : vector<8x128xf32>
    %112 = arith.negf %111 : vector<8x128xf32>
    %113 = math.exp %112 : vector<8x128xf32>
    %cst_51 = arith.constant 1.000000e+00 : f32
    %114 = vector.broadcast %cst_51 : f32 to vector<8x128xf32>
    %115 = arith.addf %114, %113 : vector<8x128xf32>
    %116 = arith.divf %114, %115 : vector<8x128xf32>
    %117 = math.tanh %111 : vector<8x128xf32>
    %118 = vector.extract_strided_slice %116 {offsets = [0, 0], sizes = [8, 32], strides = [1, 1]} : vector<8x128xf32> to vector<8x32xf32>
    %119 = vector.extract_strided_slice %116 {offsets = [0, 32], sizes = [8, 32], strides = [1, 1]} : vector<8x128xf32> to vector<8x32xf32>
    %120 = vector.extract_strided_slice %117 {offsets = [0, 64], sizes = [8, 32], strides = [1, 1]} : vector<8x128xf32> to vector<8x32xf32>
    %121 = vector.extract_strided_slice %116 {offsets = [0, 96], sizes = [8, 32], strides = [1, 1]} : vector<8x128xf32> to vector<8x32xf32>
    %122 = arith.mulf %119, %100 : vector<8x32xf32>
    %123 = arith.mulf %118, %120 : vector<8x32xf32>
    %124 = arith.addf %122, %123 : vector<8x32xf32>
    %125 = math.tanh %124 : vector<8x32xf32>
    %126 = arith.mulf %121, %125 : vector<8x32xf32>
    %127 = vector.extract_strided_slice %126 {offsets = [0, 0], sizes = [8, 16], strides = [1, 1]} : vector<8x32xf32> to vector<8x16xf32>
    %c24_52 = arith.constant 24 : index
    %c32_53 = arith.constant 32 : index
    %128 = vector.load %arg6[%c24_52, %c32_53] : memref<64x64xf32, #tpu.memory_space<vmem>>, vector<8x16xf32>
    tpu.vector_store %arg6[%c24_52, %c32_53], %127 {strides = array<i32>} : memref<64x64xf32, #tpu.memory_space<vmem>>, vector<8x16xf32>,
    %129 = vector.extract_strided_slice %126 {offsets = [0, 16], sizes = [8, 16], strides = [1, 1]} : vector<8x32xf32> to vector<8x16xf32>
    %c32_54 = arith.constant 32 : index
    %c48_55 = arith.constant 48 : index
    %130 = vector.load %arg6[%c32_54, %c48_55] : memref<64x64xf32, #tpu.memory_space<vmem>>, vector<8x16xf32>
    tpu.vector_store %arg6[%c32_54, %c48_55], %129 {strides = array<i32>} : memref<64x64xf32, #tpu.memory_space<vmem>>, vector<8x16xf32>,
    %c32_56 = arith.constant 32 : index
    %c0_57 = arith.constant 0 : index
    %131 = vector.load %arg7[%c32_56, %c0_57] : memref<64x128xf32, #tpu.memory_space<vmem>>, vector<8x128xf32>
    %c24_58 = arith.constant 24 : index
    %c0_59 = arith.constant 0 : index
    %132 = vector.load %arg7[%c24_58, %c0_59] : memref<64x128xf32, #tpu.memory_space<vmem>>, vector<8x128xf32>
    %133 = arith.select %32, %131, %132 : vector<8x128xi1>, vector<8x128xf32>
    %cst_60 = arith.constant dense<0.000000e+00> : vector<8x128xf32>
    %134 = tpu.matmul %126, %13, %cst_60 {dimension_numbers = #tpu.dot_dimension_numbers<[1], [0], [0], [1], [0, 0, 1, 1], [], []>} : vector<8x32xf32>, vector<32x128xf32>, vector<8x128xf32> -> vector<8x128xf32>
    %135 = arith.addf %133, %134 : vector<8x128xf32>
    %136 = arith.negf %135 : vector<8x128xf32>
    %137 = math.exp %136 : vector<8x128xf32>
    %cst_61 = arith.constant 1.000000e+00 : f32
    %138 = vector.broadcast %cst_61 : f32 to vector<8x128xf32>
    %139 = arith.addf %138, %137 : vector<8x128xf32>
    %140 = arith.divf %138, %139 : vector<8x128xf32>
    %141 = math.tanh %135 : vector<8x128xf32>
    %142 = vector.extract_strided_slice %140 {offsets = [0, 0], sizes = [8, 32], strides = [1, 1]} : vector<8x128xf32> to vector<8x32xf32>
    %143 = vector.extract_strided_slice %140 {offsets = [0, 32], sizes = [8, 32], strides = [1, 1]} : vector<8x128xf32> to vector<8x32xf32>
    %144 = vector.extract_strided_slice %141 {offsets = [0, 64], sizes = [8, 32], strides = [1, 1]} : vector<8x128xf32> to vector<8x32xf32>
    %145 = vector.extract_strided_slice %140 {offsets = [0, 96], sizes = [8, 32], strides = [1, 1]} : vector<8x128xf32> to vector<8x32xf32>
    %146 = arith.mulf %143, %124 : vector<8x32xf32>
    %147 = arith.mulf %142, %144 : vector<8x32xf32>
    %148 = arith.addf %146, %147 : vector<8x32xf32>
    %149 = math.tanh %148 : vector<8x32xf32>
    %150 = arith.mulf %145, %149 : vector<8x32xf32>
    %151 = vector.extract_strided_slice %150 {offsets = [0, 0], sizes = [8, 16], strides = [1, 1]} : vector<8x32xf32> to vector<8x16xf32>
    %c32_62 = arith.constant 32 : index
    %c32_63 = arith.constant 32 : index
    %152 = vector.load %arg6[%c32_62, %c32_63] : memref<64x64xf32, #tpu.memory_space<vmem>>, vector<8x16xf32>
    tpu.vector_store %arg6[%c32_62, %c32_63], %151 {strides = array<i32>} : memref<64x64xf32, #tpu.memory_space<vmem>>, vector<8x16xf32>,
    %153 = vector.extract_strided_slice %150 {offsets = [0, 16], sizes = [8, 16], strides = [1, 1]} : vector<8x32xf32> to vector<8x16xf32>
    %c24_64 = arith.constant 24 : index
    %c48_65 = arith.constant 48 : index
    %154 = vector.load %arg6[%c24_64, %c48_65] : memref<64x64xf32, #tpu.memory_space<vmem>>, vector<8x16xf32>
    tpu.vector_store %arg6[%c24_64, %c48_65], %153 {strides = array<i32>} : memref<64x64xf32, #tpu.memory_space<vmem>>, vector<8x16xf32>,
    %c40_66 = arith.constant 40 : index
    %c0_67 = arith.constant 0 : index
    %155 = vector.load %arg7[%c40_66, %c0_67] : memref<64x128xf32, #tpu.memory_space<vmem>>, vector<8x128xf32>
    %c16_68 = arith.constant 16 : index
    %c0_69 = arith.constant 0 : index
    %156 = vector.load %arg7[%c16_68, %c0_69] : memref<64x128xf32, #tpu.memory_space<vmem>>, vector<8x128xf32>
    %157 = arith.select %32, %155, %156 : vector<8x128xi1>, vector<8x128xf32>
    %cst_70 = arith.constant dense<0.000000e+00> : vector<8x128xf32>
    %158 = tpu.matmul %150, %13, %cst_70 {dimension_numbers = #tpu.dot_dimension_numbers<[1], [0], [0], [1], [0, 0, 1, 1], [], []>} : vector<8x32xf32>, vector<32x128xf32>, vector<8x128xf32> -> vector<8x128xf32>
    %159 = arith.addf %157, %158 : vector<8x128xf32>
    %160 = arith.negf %159 : vector<8x128xf32>
    %161 = math.exp %160 : vector<8x128xf32>
    %cst_71 = arith.constant 1.000000e+00 : f32
    %162 = vector.broadcast %cst_71 : f32 to vector<8x128xf32>
    %163 = arith.addf %162, %161 : vector<8x128xf32>
    %164 = arith.divf %162, %163 : vector<8x128xf32>
    %165 = math.tanh %159 : vector<8x128xf32>
    %166 = vector.extract_strided_slice %164 {offsets = [0, 0], sizes = [8, 32], strides = [1, 1]} : vector<8x128xf32> to vector<8x32xf32>
    %167 = vector.extract_strided_slice %164 {offsets = [0, 32], sizes = [8, 32], strides = [1, 1]} : vector<8x128xf32> to vector<8x32xf32>
    %168 = vector.extract_strided_slice %165 {offsets = [0, 64], sizes = [8, 32], strides = [1, 1]} : vector<8x128xf32> to vector<8x32xf32>
    %169 = vector.extract_strided_slice %164 {offsets = [0, 96], sizes = [8, 32], strides = [1, 1]} : vector<8x128xf32> to vector<8x32xf32>
    %170 = arith.mulf %167, %148 : vector<8x32xf32>
    %171 = arith.mulf %166, %168 : vector<8x32xf32>
    %172 = arith.addf %170, %171 : vector<8x32xf32>
    %173 = math.tanh %172 : vector<8x32xf32>
    %174 = arith.mulf %169, %173 : vector<8x32xf32>
    %175 = vector.extract_strided_slice %174 {offsets = [0, 0], sizes = [8, 16], strides = [1, 1]} : vector<8x32xf32> to vector<8x16xf32>
    %c40_72 = arith.constant 40 : index
    %c32_73 = arith.constant 32 : index
    %176 = vector.load %arg6[%c40_72, %c32_73] : memref<64x64xf32, #tpu.memory_space<vmem>>, vector<8x16xf32>
    tpu.vector_store %arg6[%c40_72, %c32_73], %175 {strides = array<i32>} : memref<64x64xf32, #tpu.memory_space<vmem>>, vector<8x16xf32>,
    %177 = vector.extract_strided_slice %174 {offsets = [0, 16], sizes = [8, 16], strides = [1, 1]} : vector<8x32xf32> to vector<8x16xf32>
    %c16_74 = arith.constant 16 : index
    %c48_75 = arith.constant 48 : index
    %178 = vector.load %arg6[%c16_74, %c48_75] : memref<64x64xf32, #tpu.memory_space<vmem>>, vector<8x16xf32>
    tpu.vector_store %arg6[%c16_74, %c48_75], %177 {strides = array<i32>} : memref<64x64xf32, #tpu.memory_space<vmem>>, vector<8x16xf32>,
    %c48_76 = arith.constant 48 : index
    %c0_77 = arith.constant 0 : index
    %179 = vector.load %arg7[%c48_76, %c0_77] : memref<64x128xf32, #tpu.memory_space<vmem>>, vector<8x128xf32>
    %c8_78 = arith.constant 8 : index
    %c0_79 = arith.constant 0 : index
    %180 = vector.load %arg7[%c8_78, %c0_79] : memref<64x128xf32, #tpu.memory_space<vmem>>, vector<8x128xf32>
    %181 = arith.select %32, %179, %180 : vector<8x128xi1>, vector<8x128xf32>
    %cst_80 = arith.constant dense<0.000000e+00> : vector<8x128xf32>
    %182 = tpu.matmul %174, %13, %cst_80 {dimension_numbers = #tpu.dot_dimension_numbers<[1], [0], [0], [1], [0, 0, 1, 1], [], []>} : vector<8x32xf32>, vector<32x128xf32>, vector<8x128xf32> -> vector<8x128xf32>
    %183 = arith.addf %181, %182 : vector<8x128xf32>
    %184 = arith.negf %183 : vector<8x128xf32>
    %185 = math.exp %184 : vector<8x128xf32>
    %cst_81 = arith.constant 1.000000e+00 : f32
    %186 = vector.broadcast %cst_81 : f32 to vector<8x128xf32>
    %187 = arith.addf %186, %185 : vector<8x128xf32>
    %188 = arith.divf %186, %187 : vector<8x128xf32>
    %189 = math.tanh %183 : vector<8x128xf32>
    %190 = vector.extract_strided_slice %188 {offsets = [0, 0], sizes = [8, 32], strides = [1, 1]} : vector<8x128xf32> to vector<8x32xf32>
    %191 = vector.extract_strided_slice %188 {offsets = [0, 32], sizes = [8, 32], strides = [1, 1]} : vector<8x128xf32> to vector<8x32xf32>
    %192 = vector.extract_strided_slice %189 {offsets = [0, 64], sizes = [8, 32], strides = [1, 1]} : vector<8x128xf32> to vector<8x32xf32>
    %193 = vector.extract_strided_slice %188 {offsets = [0, 96], sizes = [8, 32], strides = [1, 1]} : vector<8x128xf32> to vector<8x32xf32>
    %194 = arith.mulf %191, %172 : vector<8x32xf32>
    %195 = arith.mulf %190, %192 : vector<8x32xf32>
    %196 = arith.addf %194, %195 : vector<8x32xf32>
    %197 = math.tanh %196 : vector<8x32xf32>
    %198 = arith.mulf %193, %197 : vector<8x32xf32>
    %199 = vector.extract_strided_slice %198 {offsets = [0, 0], sizes = [8, 16], strides = [1, 1]} : vector<8x32xf32> to vector<8x16xf32>
    %c48_82 = arith.constant 48 : index
    %c32_83 = arith.constant 32 : index
    %200 = vector.load %arg6[%c48_82, %c32_83] : memref<64x64xf32, #tpu.memory_space<vmem>>, vector<8x16xf32>
    tpu.vector_store %arg6[%c48_82, %c32_83], %199 {strides = array<i32>} : memref<64x64xf32, #tpu.memory_space<vmem>>, vector<8x16xf32>,
    %201 = vector.extract_strided_slice %198 {offsets = [0, 16], sizes = [8, 16], strides = [1, 1]} : vector<8x32xf32> to vector<8x16xf32>
    %c8_84 = arith.constant 8 : index
    %c48_85 = arith.constant 48 : index
    %202 = vector.load %arg6[%c8_84, %c48_85] : memref<64x64xf32, #tpu.memory_space<vmem>>, vector<8x16xf32>
    tpu.vector_store %arg6[%c8_84, %c48_85], %201 {strides = array<i32>} : memref<64x64xf32, #tpu.memory_space<vmem>>, vector<8x16xf32>,
    %c56_86 = arith.constant 56 : index
    %c0_87 = arith.constant 0 : index
    %203 = vector.load %arg7[%c56_86, %c0_87] : memref<64x128xf32, #tpu.memory_space<vmem>>, vector<8x128xf32>
    %c0_88 = arith.constant 0 : index
    %c0_89 = arith.constant 0 : index
    %204 = vector.load %arg7[%c0_88, %c0_89] : memref<64x128xf32, #tpu.memory_space<vmem>>, vector<8x128xf32>
    %205 = arith.select %32, %203, %204 : vector<8x128xi1>, vector<8x128xf32>
    %cst_90 = arith.constant dense<0.000000e+00> : vector<8x128xf32>
    %206 = tpu.matmul %198, %13, %cst_90 {dimension_numbers = #tpu.dot_dimension_numbers<[1], [0], [0], [1], [0, 0, 1, 1], [], []>} : vector<8x32xf32>, vector<32x128xf32>, vector<8x128xf32> -> vector<8x128xf32>
    %207 = arith.addf %205, %206 : vector<8x128xf32>
    %208 = arith.negf %207 : vector<8x128xf32>
    %209 = math.exp %208 : vector<8x128xf32>
    %cst_91 = arith.constant 1.000000e+00 : f32
    %210 = vector.broadcast %cst_91 : f32 to vector<8x128xf32>
    %211 = arith.addf %210, %209 : vector<8x128xf32>
    %212 = arith.divf %210, %211 : vector<8x128xf32>
    %213 = math.tanh %207 : vector<8x128xf32>
    %214 = vector.extract_strided_slice %212 {offsets = [0, 0], sizes = [8, 32], strides = [1, 1]} : vector<8x128xf32> to vector<8x32xf32>
    %215 = vector.extract_strided_slice %212 {offsets = [0, 32], sizes = [8, 32], strides = [1, 1]} : vector<8x128xf32> to vector<8x32xf32>
    %216 = vector.extract_strided_slice %213 {offsets = [0, 64], sizes = [8, 32], strides = [1, 1]} : vector<8x128xf32> to vector<8x32xf32>
    %217 = vector.extract_strided_slice %212 {offsets = [0, 96], sizes = [8, 32], strides = [1, 1]} : vector<8x128xf32> to vector<8x32xf32>
    %218 = arith.mulf %215, %196 : vector<8x32xf32>
    %219 = arith.mulf %214, %216 : vector<8x32xf32>
    %220 = arith.addf %218, %219 : vector<8x32xf32>
    %221 = math.tanh %220 : vector<8x32xf32>
    %222 = arith.mulf %217, %221 : vector<8x32xf32>
    %223 = vector.extract_strided_slice %222 {offsets = [0, 0], sizes = [8, 16], strides = [1, 1]} : vector<8x32xf32> to vector<8x16xf32>
    %c56_92 = arith.constant 56 : index
    %c32_93 = arith.constant 32 : index
    %224 = vector.load %arg6[%c56_92, %c32_93] : memref<64x64xf32, #tpu.memory_space<vmem>>, vector<8x16xf32>
    tpu.vector_store %arg6[%c56_92, %c32_93], %223 {strides = array<i32>} : memref<64x64xf32, #tpu.memory_space<vmem>>, vector<8x16xf32>,
    %225 = vector.extract_strided_slice %222 {offsets = [0, 16], sizes = [8, 16], strides = [1, 1]} : vector<8x32xf32> to vector<8x16xf32>
    %c0_94 = arith.constant 0 : index
    %c48_95 = arith.constant 48 : index
    %226 = vector.load %arg6[%c0_94, %c48_95] : memref<64x64xf32, #tpu.memory_space<vmem>>, vector<8x16xf32>
    tpu.vector_store %arg6[%c0_94, %c48_95], %225 {strides = array<i32>} : memref<64x64xf32, #tpu.memory_space<vmem>>, vector<8x16xf32>,
    return
  }
}

module attributes {stable_mosaic.version = 11 : i64} {
  func.func @_bilstm_kernel(%arg0: memref<64x24xf32, #tpu.memory_space<vmem>>, %arg1: memref<64x8xf32, #tpu.memory_space<vmem>>, %arg2: memref<24x128xf32, #tpu.memory_space<vmem>>, %arg3: memref<8x128xf32, #tpu.memory_space<vmem>>, %arg4: memref<32x128xf32, #tpu.memory_space<vmem>>, %arg5: memref<1x128xf32, #tpu.memory_space<vmem>>, %arg6: memref<64x32xf32, #tpu.memory_space<vmem>>, %arg7: memref<64x128xf32, #tpu.memory_space<vmem>>) attributes {dimension_semantics = [], scalar_prefetch = 0 : i64, scratch_operands = 1 : i64, tpu.core_type = #tpu.core_type<tc>} {
    %c0 = arith.constant 0 : index
    %c0_0 = arith.constant 0 : index
    %0 = vector.load %arg0[%c0, %c0_0] : memref<64x24xf32, #tpu.memory_space<vmem>>, vector<64x24xf32>
    %c0_1 = arith.constant 0 : index
    %c0_2 = arith.constant 0 : index
    %1 = vector.load %arg2[%c0_1, %c0_2] : memref<24x128xf32, #tpu.memory_space<vmem>>, vector<24x128xf32>
    %cst = arith.constant dense<0.000000e+00> : vector<64x128xf32>
    %2 = tpu.matmul %0, %1, %cst {dimension_numbers = #tpu.dot_dimension_numbers<[1], [0], [0], [1], [0, 0, 1, 1], [], []>} : vector<64x24xf32>, vector<24x128xf32>, vector<64x128xf32> -> vector<64x128xf32>
    %c0_3 = arith.constant 0 : index
    %c0_4 = arith.constant 0 : index
    %3 = vector.load %arg1[%c0_3, %c0_4] : memref<64x8xf32, #tpu.memory_space<vmem>>, vector<64x8xf32>
    %c0_5 = arith.constant 0 : index
    %c0_6 = arith.constant 0 : index
    %4 = vector.load %arg3[%c0_5, %c0_6] : memref<8x128xf32, #tpu.memory_space<vmem>>, vector<8x128xf32>
    %cst_7 = arith.constant dense<0.000000e+00> : vector<64x128xf32>
    %5 = tpu.matmul %3, %4, %cst_7 {dimension_numbers = #tpu.dot_dimension_numbers<[1], [0], [0], [1], [0, 0, 1, 1], [], []>} : vector<64x8xf32>, vector<8x128xf32>, vector<64x128xf32> -> vector<64x128xf32>
    %6 = arith.addf %2, %5 : vector<64x128xf32>
    %c0_8 = arith.constant 0 : index
    %c0_9 = arith.constant 0 : index
    %7 = vector.load %arg5[%c0_8, %c0_9] : memref<1x128xf32, #tpu.memory_space<vmem>>, vector<1x128xf32>
    %8 = vector.broadcast %7 : vector<1x128xf32> to vector<64x128xf32>
    %9 = arith.addf %6, %8 : vector<64x128xf32>
    %c0_10 = arith.constant 0 : index
    %c0_11 = arith.constant 0 : index
    %10 = vector.load %arg7[%c0_10, %c0_11] : memref<64x128xf32, #tpu.memory_space<vmem>>, vector<64x128xf32>
    tpu.vector_store %arg7[%c0_10, %c0_11], %9 {strides = array<i32>} : memref<64x128xf32, #tpu.memory_space<vmem>>, vector<64x128xf32>,
    %c0_12 = arith.constant 0 : index
    %c0_13 = arith.constant 0 : index
    %11 = vector.load %arg4[%c0_12, %c0_13] : memref<32x128xf32, #tpu.memory_space<vmem>>, vector<32x128xf32>
    %12 = tpu.iota {dimensions = array<i32: 1>} : vector<8x128xi32>
    %c32_i32 = arith.constant 32 : i32
    %c0_i32 = arith.constant 0 : i32
    %13 = arith.cmpi eq, %c32_i32, %c0_i32 : i32
    %c1_i32 = arith.constant 1 : i32
    %14 = arith.select %13, %c1_i32, %c32_i32 : i32
    %15 = vector.broadcast %14 : i32 to vector<8x128xi32>
    %16 = arith.remsi %12, %15 : vector<8x128xi32>
    %c0_i32_14 = arith.constant 0 : i32
    %17 = vector.broadcast %c0_i32_14 : i32 to vector<8x128xi32>
    %18 = arith.cmpi ne, %16, %17 : vector<8x128xi32>
    %c0_i32_15 = arith.constant 0 : i32
    %19 = vector.broadcast %c0_i32_15 : i32 to vector<8x128xi32>
    %20 = arith.cmpi slt, %16, %19 : vector<8x128xi32>
    %c0_i32_16 = arith.constant 0 : i32
    %21 = arith.cmpi slt, %14, %c0_i32_16 : i32
    %22 = vector.broadcast %21 : i1 to vector<8x128xi1>
    %23 = vector.broadcast %22 : vector<8x128xi1> to vector<8x128xi1>
    %24 = arith.xori %20, %23 : vector<8x128xi1>
    %25 = arith.andi %24, %18 : vector<8x128xi1>
    %26 = vector.broadcast %14 : i32 to vector<8x128xi32>
    %27 = arith.addi %16, %26 : vector<8x128xi32>
    %28 = arith.select %25, %27, %16 : vector<8x128xi1>, vector<8x128xi32>
    %c16_i32 = arith.constant 16 : i32
    %29 = vector.broadcast %c16_i32 : i32 to vector<8x128xi32>
    %30 = arith.cmpi slt, %28, %29 : vector<8x128xi32>
    %cst_17 = arith.constant 0.000000e+00 : f32
    %31 = vector.broadcast %cst_17 : f32 to vector<8x32xf32>
    %cst_18 = arith.constant 0.000000e+00 : f32
    %32 = vector.broadcast %cst_18 : f32 to vector<8x32xf32>
    %c0_19 = arith.constant 0 : index
    %c0_20 = arith.constant 0 : index
    %33 = vector.load %arg7[%c0_19, %c0_20] : memref<64x128xf32, #tpu.memory_space<vmem>>, vector<8x128xf32>
    %c56 = arith.constant 56 : index
    %c0_21 = arith.constant 0 : index
    %34 = vector.load %arg7[%c56, %c0_21] : memref<64x128xf32, #tpu.memory_space<vmem>>, vector<8x128xf32>
    %35 = arith.select %30, %33, %34 : vector<8x128xi1>, vector<8x128xf32>
    %cst_22 = arith.constant dense<0.000000e+00> : vector<8x128xf32>
    %36 = tpu.matmul %31, %11, %cst_22 {dimension_numbers = #tpu.dot_dimension_numbers<[1], [0], [0], [1], [0, 0, 1, 1], [], []>} : vector<8x32xf32>, vector<32x128xf32>, vector<8x128xf32> -> vector<8x128xf32>
    %37 = arith.addf %35, %36 : vector<8x128xf32>
    %38 = arith.negf %37 : vector<8x128xf32>
    %39 = math.exp %38 : vector<8x128xf32>
    %cst_23 = arith.constant 1.000000e+00 : f32
    %40 = vector.broadcast %cst_23 : f32 to vector<8x128xf32>
    %41 = arith.addf %40, %39 : vector<8x128xf32>
    %42 = arith.divf %40, %41 : vector<8x128xf32>
    %43 = math.tanh %37 : vector<8x128xf32>
    %44 = vector.extract_strided_slice %42 {offsets = [0, 0], sizes = [8, 32], strides = [1, 1]} : vector<8x128xf32> to vector<8x32xf32>
    %45 = vector.extract_strided_slice %42 {offsets = [0, 32], sizes = [8, 32], strides = [1, 1]} : vector<8x128xf32> to vector<8x32xf32>
    %46 = vector.extract_strided_slice %43 {offsets = [0, 64], sizes = [8, 32], strides = [1, 1]} : vector<8x128xf32> to vector<8x32xf32>
    %47 = vector.extract_strided_slice %42 {offsets = [0, 96], sizes = [8, 32], strides = [1, 1]} : vector<8x128xf32> to vector<8x32xf32>
    %48 = arith.mulf %45, %32 : vector<8x32xf32>
    %49 = arith.mulf %44, %46 : vector<8x32xf32>
    %50 = arith.addf %48, %49 : vector<8x32xf32>
    %51 = math.tanh %50 : vector<8x32xf32>
    %52 = arith.mulf %47, %51 : vector<8x32xf32>
    %53 = vector.extract_strided_slice %52 {offsets = [0, 0], sizes = [8, 16], strides = [1, 1]} : vector<8x32xf32> to vector<8x16xf32>
    %c0_24 = arith.constant 0 : index
    %c0_25 = arith.constant 0 : index
    %54 = vector.load %arg6[%c0_24, %c0_25] : memref<64x32xf32, #tpu.memory_space<vmem>>, vector<8x16xf32>
    tpu.vector_store %arg6[%c0_24, %c0_25], %53 {strides = array<i32>} : memref<64x32xf32, #tpu.memory_space<vmem>>, vector<8x16xf32>,
    %55 = vector.extract_strided_slice %52 {offsets = [0, 16], sizes = [8, 16], strides = [1, 1]} : vector<8x32xf32> to vector<8x16xf32>
    %c56_26 = arith.constant 56 : index
    %c16 = arith.constant 16 : index
    %56 = vector.load %arg6[%c56_26, %c16] : memref<64x32xf32, #tpu.memory_space<vmem>>, vector<8x16xf32>
    tpu.vector_store %arg6[%c56_26, %c16], %55 {strides = array<i32>} : memref<64x32xf32, #tpu.memory_space<vmem>>, vector<8x16xf32>,
    %c8 = arith.constant 8 : index
    %c0_27 = arith.constant 0 : index
    %57 = vector.load %arg7[%c8, %c0_27] : memref<64x128xf32, #tpu.memory_space<vmem>>, vector<8x128xf32>
    %c48 = arith.constant 48 : index
    %c0_28 = arith.constant 0 : index
    %58 = vector.load %arg7[%c48, %c0_28] : memref<64x128xf32, #tpu.memory_space<vmem>>, vector<8x128xf32>
    %59 = arith.select %30, %57, %58 : vector<8x128xi1>, vector<8x128xf32>
    %cst_29 = arith.constant dense<0.000000e+00> : vector<8x128xf32>
    %60 = tpu.matmul %52, %11, %cst_29 {dimension_numbers = #tpu.dot_dimension_numbers<[1], [0], [0], [1], [0, 0, 1, 1], [], []>} : vector<8x32xf32>, vector<32x128xf32>, vector<8x128xf32> -> vector<8x128xf32>
    %61 = arith.addf %59, %60 : vector<8x128xf32>
    %62 = arith.negf %61 : vector<8x128xf32>
    %63 = math.exp %62 : vector<8x128xf32>
    %cst_30 = arith.constant 1.000000e+00 : f32
    %64 = vector.broadcast %cst_30 : f32 to vector<8x128xf32>
    %65 = arith.addf %64, %63 : vector<8x128xf32>
    %66 = arith.divf %64, %65 : vector<8x128xf32>
    %67 = math.tanh %61 : vector<8x128xf32>
    %68 = vector.extract_strided_slice %66 {offsets = [0, 0], sizes = [8, 32], strides = [1, 1]} : vector<8x128xf32> to vector<8x32xf32>
    %69 = vector.extract_strided_slice %66 {offsets = [0, 32], sizes = [8, 32], strides = [1, 1]} : vector<8x128xf32> to vector<8x32xf32>
    %70 = vector.extract_strided_slice %67 {offsets = [0, 64], sizes = [8, 32], strides = [1, 1]} : vector<8x128xf32> to vector<8x32xf32>
    %71 = vector.extract_strided_slice %66 {offsets = [0, 96], sizes = [8, 32], strides = [1, 1]} : vector<8x128xf32> to vector<8x32xf32>
    %72 = arith.mulf %69, %50 : vector<8x32xf32>
    %73 = arith.mulf %68, %70 : vector<8x32xf32>
    %74 = arith.addf %72, %73 : vector<8x32xf32>
    %75 = math.tanh %74 : vector<8x32xf32>
    %76 = arith.mulf %71, %75 : vector<8x32xf32>
    %77 = vector.extract_strided_slice %76 {offsets = [0, 0], sizes = [8, 16], strides = [1, 1]} : vector<8x32xf32> to vector<8x16xf32>
    %c8_31 = arith.constant 8 : index
    %c0_32 = arith.constant 0 : index
    %78 = vector.load %arg6[%c8_31, %c0_32] : memref<64x32xf32, #tpu.memory_space<vmem>>, vector<8x16xf32>
    tpu.vector_store %arg6[%c8_31, %c0_32], %77 {strides = array<i32>} : memref<64x32xf32, #tpu.memory_space<vmem>>, vector<8x16xf32>,
    %79 = vector.extract_strided_slice %76 {offsets = [0, 16], sizes = [8, 16], strides = [1, 1]} : vector<8x32xf32> to vector<8x16xf32>
    %c48_33 = arith.constant 48 : index
    %c16_34 = arith.constant 16 : index
    %80 = vector.load %arg6[%c48_33, %c16_34] : memref<64x32xf32, #tpu.memory_space<vmem>>, vector<8x16xf32>
    tpu.vector_store %arg6[%c48_33, %c16_34], %79 {strides = array<i32>} : memref<64x32xf32, #tpu.memory_space<vmem>>, vector<8x16xf32>,
    %c16_35 = arith.constant 16 : index
    %c0_36 = arith.constant 0 : index
    %81 = vector.load %arg7[%c16_35, %c0_36] : memref<64x128xf32, #tpu.memory_space<vmem>>, vector<8x128xf32>
    %c40 = arith.constant 40 : index
    %c0_37 = arith.constant 0 : index
    %82 = vector.load %arg7[%c40, %c0_37] : memref<64x128xf32, #tpu.memory_space<vmem>>, vector<8x128xf32>
    %83 = arith.select %30, %81, %82 : vector<8x128xi1>, vector<8x128xf32>
    %cst_38 = arith.constant dense<0.000000e+00> : vector<8x128xf32>
    %84 = tpu.matmul %76, %11, %cst_38 {dimension_numbers = #tpu.dot_dimension_numbers<[1], [0], [0], [1], [0, 0, 1, 1], [], []>} : vector<8x32xf32>, vector<32x128xf32>, vector<8x128xf32> -> vector<8x128xf32>
    %85 = arith.addf %83, %84 : vector<8x128xf32>
    %86 = arith.negf %85 : vector<8x128xf32>
    %87 = math.exp %86 : vector<8x128xf32>
    %cst_39 = arith.constant 1.000000e+00 : f32
    %88 = vector.broadcast %cst_39 : f32 to vector<8x128xf32>
    %89 = arith.addf %88, %87 : vector<8x128xf32>
    %90 = arith.divf %88, %89 : vector<8x128xf32>
    %91 = math.tanh %85 : vector<8x128xf32>
    %92 = vector.extract_strided_slice %90 {offsets = [0, 0], sizes = [8, 32], strides = [1, 1]} : vector<8x128xf32> to vector<8x32xf32>
    %93 = vector.extract_strided_slice %90 {offsets = [0, 32], sizes = [8, 32], strides = [1, 1]} : vector<8x128xf32> to vector<8x32xf32>
    %94 = vector.extract_strided_slice %91 {offsets = [0, 64], sizes = [8, 32], strides = [1, 1]} : vector<8x128xf32> to vector<8x32xf32>
    %95 = vector.extract_strided_slice %90 {offsets = [0, 96], sizes = [8, 32], strides = [1, 1]} : vector<8x128xf32> to vector<8x32xf32>
    %96 = arith.mulf %93, %74 : vector<8x32xf32>
    %97 = arith.mulf %92, %94 : vector<8x32xf32>
    %98 = arith.addf %96, %97 : vector<8x32xf32>
    %99 = math.tanh %98 : vector<8x32xf32>
    %100 = arith.mulf %95, %99 : vector<8x32xf32>
    %101 = vector.extract_strided_slice %100 {offsets = [0, 0], sizes = [8, 16], strides = [1, 1]} : vector<8x32xf32> to vector<8x16xf32>
    %c16_40 = arith.constant 16 : index
    %c0_41 = arith.constant 0 : index
    %102 = vector.load %arg6[%c16_40, %c0_41] : memref<64x32xf32, #tpu.memory_space<vmem>>, vector<8x16xf32>
    tpu.vector_store %arg6[%c16_40, %c0_41], %101 {strides = array<i32>} : memref<64x32xf32, #tpu.memory_space<vmem>>, vector<8x16xf32>,
    %103 = vector.extract_strided_slice %100 {offsets = [0, 16], sizes = [8, 16], strides = [1, 1]} : vector<8x32xf32> to vector<8x16xf32>
    %c40_42 = arith.constant 40 : index
    %c16_43 = arith.constant 16 : index
    %104 = vector.load %arg6[%c40_42, %c16_43] : memref<64x32xf32, #tpu.memory_space<vmem>>, vector<8x16xf32>
    tpu.vector_store %arg6[%c40_42, %c16_43], %103 {strides = array<i32>} : memref<64x32xf32, #tpu.memory_space<vmem>>, vector<8x16xf32>,
    %c24 = arith.constant 24 : index
    %c0_44 = arith.constant 0 : index
    %105 = vector.load %arg7[%c24, %c0_44] : memref<64x128xf32, #tpu.memory_space<vmem>>, vector<8x128xf32>
    %c32 = arith.constant 32 : index
    %c0_45 = arith.constant 0 : index
    %106 = vector.load %arg7[%c32, %c0_45] : memref<64x128xf32, #tpu.memory_space<vmem>>, vector<8x128xf32>
    %107 = arith.select %30, %105, %106 : vector<8x128xi1>, vector<8x128xf32>
    %cst_46 = arith.constant dense<0.000000e+00> : vector<8x128xf32>
    %108 = tpu.matmul %100, %11, %cst_46 {dimension_numbers = #tpu.dot_dimension_numbers<[1], [0], [0], [1], [0, 0, 1, 1], [], []>} : vector<8x32xf32>, vector<32x128xf32>, vector<8x128xf32> -> vector<8x128xf32>
    %109 = arith.addf %107, %108 : vector<8x128xf32>
    %110 = arith.negf %109 : vector<8x128xf32>
    %111 = math.exp %110 : vector<8x128xf32>
    %cst_47 = arith.constant 1.000000e+00 : f32
    %112 = vector.broadcast %cst_47 : f32 to vector<8x128xf32>
    %113 = arith.addf %112, %111 : vector<8x128xf32>
    %114 = arith.divf %112, %113 : vector<8x128xf32>
    %115 = math.tanh %109 : vector<8x128xf32>
    %116 = vector.extract_strided_slice %114 {offsets = [0, 0], sizes = [8, 32], strides = [1, 1]} : vector<8x128xf32> to vector<8x32xf32>
    %117 = vector.extract_strided_slice %114 {offsets = [0, 32], sizes = [8, 32], strides = [1, 1]} : vector<8x128xf32> to vector<8x32xf32>
    %118 = vector.extract_strided_slice %115 {offsets = [0, 64], sizes = [8, 32], strides = [1, 1]} : vector<8x128xf32> to vector<8x32xf32>
    %119 = vector.extract_strided_slice %114 {offsets = [0, 96], sizes = [8, 32], strides = [1, 1]} : vector<8x128xf32> to vector<8x32xf32>
    %120 = arith.mulf %117, %98 : vector<8x32xf32>
    %121 = arith.mulf %116, %118 : vector<8x32xf32>
    %122 = arith.addf %120, %121 : vector<8x32xf32>
    %123 = math.tanh %122 : vector<8x32xf32>
    %124 = arith.mulf %119, %123 : vector<8x32xf32>
    %125 = vector.extract_strided_slice %124 {offsets = [0, 0], sizes = [8, 16], strides = [1, 1]} : vector<8x32xf32> to vector<8x16xf32>
    %c24_48 = arith.constant 24 : index
    %c0_49 = arith.constant 0 : index
    %126 = vector.load %arg6[%c24_48, %c0_49] : memref<64x32xf32, #tpu.memory_space<vmem>>, vector<8x16xf32>
    tpu.vector_store %arg6[%c24_48, %c0_49], %125 {strides = array<i32>} : memref<64x32xf32, #tpu.memory_space<vmem>>, vector<8x16xf32>,
    %127 = vector.extract_strided_slice %124 {offsets = [0, 16], sizes = [8, 16], strides = [1, 1]} : vector<8x32xf32> to vector<8x16xf32>
    %c32_50 = arith.constant 32 : index
    %c16_51 = arith.constant 16 : index
    %128 = vector.load %arg6[%c32_50, %c16_51] : memref<64x32xf32, #tpu.memory_space<vmem>>, vector<8x16xf32>
    tpu.vector_store %arg6[%c32_50, %c16_51], %127 {strides = array<i32>} : memref<64x32xf32, #tpu.memory_space<vmem>>, vector<8x16xf32>,
    %c32_52 = arith.constant 32 : index
    %c0_53 = arith.constant 0 : index
    %129 = vector.load %arg7[%c32_52, %c0_53] : memref<64x128xf32, #tpu.memory_space<vmem>>, vector<8x128xf32>
    %c24_54 = arith.constant 24 : index
    %c0_55 = arith.constant 0 : index
    %130 = vector.load %arg7[%c24_54, %c0_55] : memref<64x128xf32, #tpu.memory_space<vmem>>, vector<8x128xf32>
    %131 = arith.select %30, %129, %130 : vector<8x128xi1>, vector<8x128xf32>
    %cst_56 = arith.constant dense<0.000000e+00> : vector<8x128xf32>
    %132 = tpu.matmul %124, %11, %cst_56 {dimension_numbers = #tpu.dot_dimension_numbers<[1], [0], [0], [1], [0, 0, 1, 1], [], []>} : vector<8x32xf32>, vector<32x128xf32>, vector<8x128xf32> -> vector<8x128xf32>
    %133 = arith.addf %131, %132 : vector<8x128xf32>
    %134 = arith.negf %133 : vector<8x128xf32>
    %135 = math.exp %134 : vector<8x128xf32>
    %cst_57 = arith.constant 1.000000e+00 : f32
    %136 = vector.broadcast %cst_57 : f32 to vector<8x128xf32>
    %137 = arith.addf %136, %135 : vector<8x128xf32>
    %138 = arith.divf %136, %137 : vector<8x128xf32>
    %139 = math.tanh %133 : vector<8x128xf32>
    %140 = vector.extract_strided_slice %138 {offsets = [0, 0], sizes = [8, 32], strides = [1, 1]} : vector<8x128xf32> to vector<8x32xf32>
    %141 = vector.extract_strided_slice %138 {offsets = [0, 32], sizes = [8, 32], strides = [1, 1]} : vector<8x128xf32> to vector<8x32xf32>
    %142 = vector.extract_strided_slice %139 {offsets = [0, 64], sizes = [8, 32], strides = [1, 1]} : vector<8x128xf32> to vector<8x32xf32>
    %143 = vector.extract_strided_slice %138 {offsets = [0, 96], sizes = [8, 32], strides = [1, 1]} : vector<8x128xf32> to vector<8x32xf32>
    %144 = arith.mulf %141, %122 : vector<8x32xf32>
    %145 = arith.mulf %140, %142 : vector<8x32xf32>
    %146 = arith.addf %144, %145 : vector<8x32xf32>
    %147 = math.tanh %146 : vector<8x32xf32>
    %148 = arith.mulf %143, %147 : vector<8x32xf32>
    %149 = vector.extract_strided_slice %148 {offsets = [0, 0], sizes = [8, 16], strides = [1, 1]} : vector<8x32xf32> to vector<8x16xf32>
    %c32_58 = arith.constant 32 : index
    %c0_59 = arith.constant 0 : index
    %150 = vector.load %arg6[%c32_58, %c0_59] : memref<64x32xf32, #tpu.memory_space<vmem>>, vector<8x16xf32>
    tpu.vector_store %arg6[%c32_58, %c0_59], %149 {strides = array<i32>} : memref<64x32xf32, #tpu.memory_space<vmem>>, vector<8x16xf32>,
    %151 = vector.extract_strided_slice %148 {offsets = [0, 16], sizes = [8, 16], strides = [1, 1]} : vector<8x32xf32> to vector<8x16xf32>
    %c24_60 = arith.constant 24 : index
    %c16_61 = arith.constant 16 : index
    %152 = vector.load %arg6[%c24_60, %c16_61] : memref<64x32xf32, #tpu.memory_space<vmem>>, vector<8x16xf32>
    tpu.vector_store %arg6[%c24_60, %c16_61], %151 {strides = array<i32>} : memref<64x32xf32, #tpu.memory_space<vmem>>, vector<8x16xf32>,
    %c40_62 = arith.constant 40 : index
    %c0_63 = arith.constant 0 : index
    %153 = vector.load %arg7[%c40_62, %c0_63] : memref<64x128xf32, #tpu.memory_space<vmem>>, vector<8x128xf32>
    %c16_64 = arith.constant 16 : index
    %c0_65 = arith.constant 0 : index
    %154 = vector.load %arg7[%c16_64, %c0_65] : memref<64x128xf32, #tpu.memory_space<vmem>>, vector<8x128xf32>
    %155 = arith.select %30, %153, %154 : vector<8x128xi1>, vector<8x128xf32>
    %cst_66 = arith.constant dense<0.000000e+00> : vector<8x128xf32>
    %156 = tpu.matmul %148, %11, %cst_66 {dimension_numbers = #tpu.dot_dimension_numbers<[1], [0], [0], [1], [0, 0, 1, 1], [], []>} : vector<8x32xf32>, vector<32x128xf32>, vector<8x128xf32> -> vector<8x128xf32>
    %157 = arith.addf %155, %156 : vector<8x128xf32>
    %158 = arith.negf %157 : vector<8x128xf32>
    %159 = math.exp %158 : vector<8x128xf32>
    %cst_67 = arith.constant 1.000000e+00 : f32
    %160 = vector.broadcast %cst_67 : f32 to vector<8x128xf32>
    %161 = arith.addf %160, %159 : vector<8x128xf32>
    %162 = arith.divf %160, %161 : vector<8x128xf32>
    %163 = math.tanh %157 : vector<8x128xf32>
    %164 = vector.extract_strided_slice %162 {offsets = [0, 0], sizes = [8, 32], strides = [1, 1]} : vector<8x128xf32> to vector<8x32xf32>
    %165 = vector.extract_strided_slice %162 {offsets = [0, 32], sizes = [8, 32], strides = [1, 1]} : vector<8x128xf32> to vector<8x32xf32>
    %166 = vector.extract_strided_slice %163 {offsets = [0, 64], sizes = [8, 32], strides = [1, 1]} : vector<8x128xf32> to vector<8x32xf32>
    %167 = vector.extract_strided_slice %162 {offsets = [0, 96], sizes = [8, 32], strides = [1, 1]} : vector<8x128xf32> to vector<8x32xf32>
    %168 = arith.mulf %165, %146 : vector<8x32xf32>
    %169 = arith.mulf %164, %166 : vector<8x32xf32>
    %170 = arith.addf %168, %169 : vector<8x32xf32>
    %171 = math.tanh %170 : vector<8x32xf32>
    %172 = arith.mulf %167, %171 : vector<8x32xf32>
    %173 = vector.extract_strided_slice %172 {offsets = [0, 0], sizes = [8, 16], strides = [1, 1]} : vector<8x32xf32> to vector<8x16xf32>
    %c40_68 = arith.constant 40 : index
    %c0_69 = arith.constant 0 : index
    %174 = vector.load %arg6[%c40_68, %c0_69] : memref<64x32xf32, #tpu.memory_space<vmem>>, vector<8x16xf32>
    tpu.vector_store %arg6[%c40_68, %c0_69], %173 {strides = array<i32>} : memref<64x32xf32, #tpu.memory_space<vmem>>, vector<8x16xf32>,
    %175 = vector.extract_strided_slice %172 {offsets = [0, 16], sizes = [8, 16], strides = [1, 1]} : vector<8x32xf32> to vector<8x16xf32>
    %c16_70 = arith.constant 16 : index
    %c16_71 = arith.constant 16 : index
    %176 = vector.load %arg6[%c16_70, %c16_71] : memref<64x32xf32, #tpu.memory_space<vmem>>, vector<8x16xf32>
    tpu.vector_store %arg6[%c16_70, %c16_71], %175 {strides = array<i32>} : memref<64x32xf32, #tpu.memory_space<vmem>>, vector<8x16xf32>,
    %c48_72 = arith.constant 48 : index
    %c0_73 = arith.constant 0 : index
    %177 = vector.load %arg7[%c48_72, %c0_73] : memref<64x128xf32, #tpu.memory_space<vmem>>, vector<8x128xf32>
    %c8_74 = arith.constant 8 : index
    %c0_75 = arith.constant 0 : index
    %178 = vector.load %arg7[%c8_74, %c0_75] : memref<64x128xf32, #tpu.memory_space<vmem>>, vector<8x128xf32>
    %179 = arith.select %30, %177, %178 : vector<8x128xi1>, vector<8x128xf32>
    %cst_76 = arith.constant dense<0.000000e+00> : vector<8x128xf32>
    %180 = tpu.matmul %172, %11, %cst_76 {dimension_numbers = #tpu.dot_dimension_numbers<[1], [0], [0], [1], [0, 0, 1, 1], [], []>} : vector<8x32xf32>, vector<32x128xf32>, vector<8x128xf32> -> vector<8x128xf32>
    %181 = arith.addf %179, %180 : vector<8x128xf32>
    %182 = arith.negf %181 : vector<8x128xf32>
    %183 = math.exp %182 : vector<8x128xf32>
    %cst_77 = arith.constant 1.000000e+00 : f32
    %184 = vector.broadcast %cst_77 : f32 to vector<8x128xf32>
    %185 = arith.addf %184, %183 : vector<8x128xf32>
    %186 = arith.divf %184, %185 : vector<8x128xf32>
    %187 = math.tanh %181 : vector<8x128xf32>
    %188 = vector.extract_strided_slice %186 {offsets = [0, 0], sizes = [8, 32], strides = [1, 1]} : vector<8x128xf32> to vector<8x32xf32>
    %189 = vector.extract_strided_slice %186 {offsets = [0, 32], sizes = [8, 32], strides = [1, 1]} : vector<8x128xf32> to vector<8x32xf32>
    %190 = vector.extract_strided_slice %187 {offsets = [0, 64], sizes = [8, 32], strides = [1, 1]} : vector<8x128xf32> to vector<8x32xf32>
    %191 = vector.extract_strided_slice %186 {offsets = [0, 96], sizes = [8, 32], strides = [1, 1]} : vector<8x128xf32> to vector<8x32xf32>
    %192 = arith.mulf %189, %170 : vector<8x32xf32>
    %193 = arith.mulf %188, %190 : vector<8x32xf32>
    %194 = arith.addf %192, %193 : vector<8x32xf32>
    %195 = math.tanh %194 : vector<8x32xf32>
    %196 = arith.mulf %191, %195 : vector<8x32xf32>
    %197 = vector.extract_strided_slice %196 {offsets = [0, 0], sizes = [8, 16], strides = [1, 1]} : vector<8x32xf32> to vector<8x16xf32>
    %c48_78 = arith.constant 48 : index
    %c0_79 = arith.constant 0 : index
    %198 = vector.load %arg6[%c48_78, %c0_79] : memref<64x32xf32, #tpu.memory_space<vmem>>, vector<8x16xf32>
    tpu.vector_store %arg6[%c48_78, %c0_79], %197 {strides = array<i32>} : memref<64x32xf32, #tpu.memory_space<vmem>>, vector<8x16xf32>,
    %199 = vector.extract_strided_slice %196 {offsets = [0, 16], sizes = [8, 16], strides = [1, 1]} : vector<8x32xf32> to vector<8x16xf32>
    %c8_80 = arith.constant 8 : index
    %c16_81 = arith.constant 16 : index
    %200 = vector.load %arg6[%c8_80, %c16_81] : memref<64x32xf32, #tpu.memory_space<vmem>>, vector<8x16xf32>
    tpu.vector_store %arg6[%c8_80, %c16_81], %199 {strides = array<i32>} : memref<64x32xf32, #tpu.memory_space<vmem>>, vector<8x16xf32>,
    %c56_82 = arith.constant 56 : index
    %c0_83 = arith.constant 0 : index
    %201 = vector.load %arg7[%c56_82, %c0_83] : memref<64x128xf32, #tpu.memory_space<vmem>>, vector<8x128xf32>
    %c0_84 = arith.constant 0 : index
    %c0_85 = arith.constant 0 : index
    %202 = vector.load %arg7[%c0_84, %c0_85] : memref<64x128xf32, #tpu.memory_space<vmem>>, vector<8x128xf32>
    %203 = arith.select %30, %201, %202 : vector<8x128xi1>, vector<8x128xf32>
    %cst_86 = arith.constant dense<0.000000e+00> : vector<8x128xf32>
    %204 = tpu.matmul %196, %11, %cst_86 {dimension_numbers = #tpu.dot_dimension_numbers<[1], [0], [0], [1], [0, 0, 1, 1], [], []>} : vector<8x32xf32>, vector<32x128xf32>, vector<8x128xf32> -> vector<8x128xf32>
    %205 = arith.addf %203, %204 : vector<8x128xf32>
    %206 = arith.negf %205 : vector<8x128xf32>
    %207 = math.exp %206 : vector<8x128xf32>
    %cst_87 = arith.constant 1.000000e+00 : f32
    %208 = vector.broadcast %cst_87 : f32 to vector<8x128xf32>
    %209 = arith.addf %208, %207 : vector<8x128xf32>
    %210 = arith.divf %208, %209 : vector<8x128xf32>
    %211 = math.tanh %205 : vector<8x128xf32>
    %212 = vector.extract_strided_slice %210 {offsets = [0, 0], sizes = [8, 32], strides = [1, 1]} : vector<8x128xf32> to vector<8x32xf32>
    %213 = vector.extract_strided_slice %210 {offsets = [0, 32], sizes = [8, 32], strides = [1, 1]} : vector<8x128xf32> to vector<8x32xf32>
    %214 = vector.extract_strided_slice %211 {offsets = [0, 64], sizes = [8, 32], strides = [1, 1]} : vector<8x128xf32> to vector<8x32xf32>
    %215 = vector.extract_strided_slice %210 {offsets = [0, 96], sizes = [8, 32], strides = [1, 1]} : vector<8x128xf32> to vector<8x32xf32>
    %216 = arith.mulf %213, %194 : vector<8x32xf32>
    %217 = arith.mulf %212, %214 : vector<8x32xf32>
    %218 = arith.addf %216, %217 : vector<8x32xf32>
    %219 = math.tanh %218 : vector<8x32xf32>
    %220 = arith.mulf %215, %219 : vector<8x32xf32>
    %221 = vector.extract_strided_slice %220 {offsets = [0, 0], sizes = [8, 16], strides = [1, 1]} : vector<8x32xf32> to vector<8x16xf32>
    %c56_88 = arith.constant 56 : index
    %c0_89 = arith.constant 0 : index
    %222 = vector.load %arg6[%c56_88, %c0_89] : memref<64x32xf32, #tpu.memory_space<vmem>>, vector<8x16xf32>
    tpu.vector_store %arg6[%c56_88, %c0_89], %221 {strides = array<i32>} : memref<64x32xf32, #tpu.memory_space<vmem>>, vector<8x16xf32>,
    %223 = vector.extract_strided_slice %220 {offsets = [0, 16], sizes = [8, 16], strides = [1, 1]} : vector<8x32xf32> to vector<8x16xf32>
    %c0_90 = arith.constant 0 : index
    %c16_91 = arith.constant 16 : index
    %224 = vector.load %arg6[%c0_90, %c16_91] : memref<64x32xf32, #tpu.memory_space<vmem>>, vector<8x16xf32>
    tpu.vector_store %arg6[%c0_90, %c16_91], %223 {strides = array<i32>} : memref<64x32xf32, #tpu.memory_space<vmem>>, vector<8x16xf32>,
    return
  }
}

</mosaic_0001>

<llo_original>
// kernel: context_encoder_forward.3
$region0: #{context_encoder_forward.3}
  #allocation0 [shape = 'u32[]', space=smem, size = 0x4, offset = 0x4, fixed_abs, tag = 'smem constant byte address 0x4 - core index']
  #allocation1 [shape = 'u32[144,128]{1,0:T(1,128)}', space=vmem, size = 0x12000, scoped, tag = 'internal scratch']
  #allocation2 [shape = 'f32[64,128]{1,0:T(8,128)}', space=vmem, size = 0x8000, scoped, tag = 'scratch operand']
  %s0 = inlined_call_operand.vmem [shape: f32[64,32], index: 0, kind: input, shape index: {}]
  %s1 = inlined_call_operand.vmem [shape: f32[64,8], index: 1, kind: input, shape index: {}]
  %s2 = inlined_call_operand.vmem [shape: f32[32,128], index: 2, kind: input, shape index: {}]
  %s3 = inlined_call_operand.vmem [shape: f32[8,128], index: 3, kind: input, shape index: {}]
  %s4 = inlined_call_operand.vmem [shape: f32[32,128], index: 4, kind: input, shape index: {}]
  %s5 = inlined_call_operand.vmem [shape: f32[1,128], index: 5, kind: input, shape index: {}]
  %s6 = inlined_call_operand.vmem [shape: f32[64,64], index: 6, kind: output, shape index: {}]
  %s7 = sld [smem:[#allocation0]]
  $region34: #{context_encoder_forward.3} parent=0
    _
  %s9 = ssub.s32 1, %s7
  %s10 = scalar_select 0, %s9, %s7
  // Predicated region
  $region2: #{context_encoder_forward.3} parent=0 // pred_check
    _
  $region3: #{context_encoder_forward.3} parent=0 // pred_check_branch
    %12 = sbr.rel (0) target = $region5
  $region4: #{context_encoder_forward.3} parent=0 // pred_region
    _
  $region5: #{context_encoder_forward.3} parent=0 // pred_fallthru
    _
  // Predicated region
  $region6: #{context_encoder_forward.3} parent=0 // pred_check
    _
  $region7: #{context_encoder_forward.3} parent=0 // pred_check_branch
    %14 = sbr.rel (0) target = $region9
  $region8: #{context_encoder_forward.3} parent=0 // pred_region
    _
  $region9: #{context_encoder_forward.3} parent=0 // pred_fallthru
    _
  // Predicated region
  $region10: #{context_encoder_forward.3} parent=0 // pred_check
    _
  $region11: #{context_encoder_forward.3} parent=0 // pred_check_branch
    %16 = sbr.rel (0) target = $region13
  $region12: #{context_encoder_forward.3} parent=0 // pred_region
    _
  $region13: #{context_encoder_forward.3} parent=0 // pred_fallthru
    _
  // Predicated region
  $region14: #{context_encoder_forward.3} parent=0 // pred_check
    _
  $region15: #{context_encoder_forward.3} parent=0 // pred_check_branch
    %18 = sbr.rel (0) target = $region17
  $region16: #{context_encoder_forward.3} parent=0 // pred_region
    _
  $region17: #{context_encoder_forward.3} parent=0 // pred_fallthru
    _
  // Predicated region
  $region18: #{context_encoder_forward.3} parent=0 // pred_check
    _
  $region19: #{context_encoder_forward.3} parent=0 // pred_check_branch
    %20 = sbr.rel (0) target = $region21
  $region20: #{context_encoder_forward.3} parent=0 // pred_region
    _
  $region21: #{context_encoder_forward.3} parent=0 // pred_fallthru
    _
  // Predicated region
  $region22: #{context_encoder_forward.3} parent=0 // pred_check
    _
  $region23: #{context_encoder_forward.3} parent=0 // pred_check_branch
    %22 = sbr.rel (0) target = $region25
  $region24: #{context_encoder_forward.3} parent=0 // pred_region
    _
  $region25: #{context_encoder_forward.3} parent=0 // pred_fallthru
    _
  %v23 = vld [vmem:[%s0] sm:$0xff]
  %v24 = vld [vmem:[%s0 + $0x8] sm:$0xff]
  %v25 = vld [vmem:[%s0 + $0x10] sm:$0xff]
  %v26 = vld [vmem:[%s0 + $0x18] sm:$0xff]
  %v27 = vld [vmem:[%s0 + $0x20] sm:$0xff]
  %v28 = vld [vmem:[%s0 + $0x28] sm:$0xff]
  %v29 = vld [vmem:[%s0 + $0x30] sm:$0xff]
  %v30 = vld [vmem:[%s0 + $0x38] sm:$0xff]
  %v31 = vld [vmem:[%s2] sm:$0xff]
  %v32 = vld [vmem:[%s2 + $0x8] sm:$0xff]
  %v33 = vld [vmem:[%s2 + $0x10] sm:$0xff]
  %v34 = vld [vmem:[%s2 + $0x18] sm:$0xff]
  %v35 = vld [vmem:[%s1] sm:$0xff]
  %v36 = vld [vmem:[%s1 + $0x8] sm:$0xff]
  %v37 = vld [vmem:[%s1 + $0x10] sm:$0xff]
  %v38 = vld [vmem:[%s1 + $0x18] sm:$0xff]
  %v39 = vld [vmem:[%s1 + $0x20] sm:$0xff]
  %v40 = vld [vmem:[%s1 + $0x28] sm:$0xff]
  %v41 = vld [vmem:[%s1 + $0x30] sm:$0xff]
  %v42 = vld [vmem:[%s1 + $0x38] sm:$0xff]
  %v43 = vld [vmem:[%s3] sm:$0xff]
  %vm44 = vcmask 64512
  %v46 = vsel %vm44, %v35, 0
  %v49 = vsel %vm44, %v36, 0
  %v52 = vsel %vm44, %v37, 0
  %v55 = vsel %vm44, %v38, 0
  %v58 = vsel %vm44, %v39, 0
  %v61 = vsel %vm44, %v40, 0
  %v64 = vsel %vm44, %v41, 0
  %v67 = vsel %vm44, %v42, 0
  %69 = vmatprep.subr.mxu0 0.0
  %70 = vmatpush1.msra.mxu0 %v43
  %71 = vmatprep.subr.mxu0 0.0
  %72 = vmatpush1.msra.mxu0 0.0
  %73 = vmatprep.subr.mxu0 0.0
  %74 = vmatpush1.msra.mxu0 0.0
  %75 = vmatprep.subr.mxu0 0.0
  %76 = vmatpush1.msra.mxu0 0.0
  %77 = vmatprep.subr.mxu0 0.0
  %78 = vmatpush1.msra.mxu0 0.0
  %79 = vmatprep.subr.mxu0 0.0
  %80 = vmatpush1.msra.mxu0 0.0
  %81 = vmatprep.subr.mxu0 0.0
  %82 = vmatpush1.msra.mxu0 0.0
  %83 = vmatprep.subr.mxu0 0.0
  %84 = vmatpush1.msra.mxu0 0.0
  %85 = vmatprep.subr.mxu0 0.0
  %86 = vmatpush1.msra.mxu0 0.0
  %87 = vmatprep.subr.mxu0 0.0
  %88 = vmatpush1.msra.mxu0 0.0
  %89 = vmatprep.subr.mxu0 0.0
  %90 = vmatpush1.msra.mxu0 0.0
  %91 = vmatprep.subr.mxu0 0.0
  %92 = vmatpush1.msra.mxu0 0.0
  %93 = vmatprep.subr.mxu0 0.0
  %94 = vmatpush1.msra.mxu0 0.0
  %95 = vmatprep.subr.mxu0 0.0
  %96 = vmatpush1.msra.mxu0 0.0
  %97 = vmatprep.subr.mxu0 0.0
  %98 = vmatpush1.msra.mxu0 0.0
  %99 = vmatprep.subr.mxu0 0.0
  %100 = vmatpush1.msra.mxu0 0.0
  %101 = vmatprep.subr.mxu0 0.0
  %102 = vmatpush1.msra.mxu0 0.0
  %103 = vmatprep.subr.mxu0 0.0
  %104 = vmatpush1.msra.mxu0 0.0
  %105 = vmatprep.subr.mxu0 0.0
  %106 = vmatpush1.msra.mxu0 0.0
  %107 = vmatprep.subr.mxu0 0.0
  %108 = vmatpush1.msra.mxu0 0.0
  %109 = vmatprep.subr.mxu0 0.0
  %110 = vmatpush1.msra.mxu0 0.0
  %111 = vmatprep.subr.mxu0 0.0
  %112 = vmatpush1.msra.mxu0 0.0
  %113 = vmatprep.subr.mxu0 0.0
  %114 = vmatpush1.msra.mxu0 0.0
  %115 = vmatprep.subr.mxu0 0.0
  %116 = vmatpush1.msra.mxu0 0.0
  %117 = vmatprep.subr.mxu0 0.0
  %118 = vmatpush1.msra.mxu0 0.0
  %119 = vmatprep.subr.mxu0 0.0
  %120 = vmatpush1.msra.mxu0 0.0
  %121 = vmatprep.subr.mxu0 0.0
  %122 = vmatpush1.msra.mxu0 0.0
  %123 = vmatprep.subr.mxu0 0.0
  %124 = vmatpush1.msra.mxu0 0.0
  %125 = vmatprep.subr.mxu0 0.0
  %126 = vmatpush1.msra.mxu0 0.0
  %127 = vmatprep.subr.mxu0 0.0
  %128 = vmatpush1.msra.mxu0 0.0
  %129 = vmatprep.subr.mxu0 0.0
  %130 = vmatpush1.msra.mxu0 0.0
  %131 = vmatprep.subr.mxu0 0.0
  %132 = vmatpush1.msra.mxu0 0.0
  %133 = vmatprep.mubr.f32.mxu0 0.0
  %134 = vmatmul.mubr.f32.gmra.mrb[0].mxu0 %v46
  %v135 = vpop.f32.mrb[0].mxu0
  %v136 = vadd.f32 0.0, %v135
  %v137 = vpop.f32.mrb[0].mxu0
  %138 = vmatprep.mubr.f32.mxu0 0.0
  %139 = vmatmul.mubr.f32.gmra.mrb[0].mxu0 %v49
  %v140 = vpop.f32.mrb[0].mxu0
  %v141 = vadd.f32 0.0, %v140
  %v142 = vpop.f32.mrb[0].mxu0
  %143 = vmatprep.mubr.f32.mxu0 0.0
  %144 = vmatmul.mubr.f32.gmra.mrb[0].mxu0 %v52
  %v145 = vpop.f32.mrb[0].mxu0
  %v146 = vadd.f32 0.0, %v145
  %v147 = vpop.f32.mrb[0].mxu0
  %148 = vmatprep.mubr.f32.mxu0 0.0
  %149 = vmatmul.mubr.f32.gmra.mrb[0].mxu0 %v55
  %v150 = vpop.f32.mrb[0].mxu0
  %v151 = vadd.f32 0.0, %v150
  %v152 = vpop.f32.mrb[0].mxu0
  %153 = vmatprep.mubr.f32.mxu0 0.0
  %154 = vmatmul.mubr.f32.gmra.mrb[0].mxu0 %v58
  %v155 = vpop.f32.mrb[0].mxu0
  %v156 = vadd.f32 0.0, %v155
  %v157 = vpop.f32.mrb[0].mxu0
  %158 = vmatprep.mubr.f32.mxu0 0.0
  %159 = vmatmul.mubr.f32.gmra.mrb[0].mxu0 %v61
  %v160 = vpop.f32.mrb[0].mxu0
  %v161 = vadd.f32 0.0, %v160
  %v162 = vpop.f32.mrb[0].mxu0
  %163 = vmatprep.mubr.f32.mxu0 0.0
  %164 = vmatmul.mubr.f32.gmra.mrb[0].mxu0 %v64
  %v165 = vpop.f32.mrb[0].mxu0
  %v166 = vadd.f32 0.0, %v165
  %v167 = vpop.f32.mrb[0].mxu0
  %168 = vmatprep.mubr.f32.mxu0 0.0
  %169 = vmatmul.mubr.f32.gmra.mrb[0].mxu0 %v67
  %v170 = vpop.f32.mrb[0].mxu0
  %v171 = vadd.f32 0.0, %v170
  %v172 = vpop.f32.mrb[0].mxu0
  %173 = vdwg.mxu0
  %vm174 = vcmask 261120
  %v176 = vsel %vm174, %v23, 0
  %v179 = vsel %vm174, %v24, 0
  %v182 = vsel %vm174, %v25, 0
  %v185 = vsel %vm174, %v26, 0
  %v188 = vsel %vm174, %v27, 0
  %v191 = vsel %vm174, %v28, 0
  %v194 = vsel %vm174, %v29, 0
  %v197 = vsel %vm174, %v30, 0
  %199 = vmatprep.subr.mxu0 0.0
  %200 = vmatpush1.msra.mxu0 %v31
  %201 = vmatprep.subr.mxu0 0.0
  %202 = vmatpush1.msra.mxu0 %v32
  %203 = vmatprep.subr.mxu0 0.0
  %204 = vmatpush1.msra.mxu0 %v33
  %205 = vmatprep.subr.mxu0 0.0
  %206 = vmatpush1.msra.mxu0 %v34
  %207 = vmatprep.subr.mxu0 0.0
  %208 = vmatpush1.msra.mxu0 0.0
  %209 = vmatprep.subr.mxu0 0.0
  %210 = vmatpush1.msra.mxu0 0.0
  %211 = vmatprep.subr.mxu0 0.0
  %212 = vmatpush1.msra.mxu0 0.0
  %213 = vmatprep.subr.mxu0 0.0
  %214 = vmatpush1.msra.mxu0 0.0
  %215 = vmatprep.subr.mxu0 0.0
  %216 = vmatpush1.msra.mxu0 0.0
  %217 = vmatprep.subr.mxu0 0.0
  %218 = vmatpush1.msra.mxu0 0.0
  %219 = vmatprep.subr.mxu0 0.0
  %220 = vmatpush1.msra.mxu0 0.0
  %221 = vmatprep.subr.mxu0 0.0
  %222 = vmatpush1.msra.mxu0 0.0
  %223 = vmatprep.subr.mxu0 0.0
  %224 = vmatpush1.msra.mxu0 0.0
  %225 = vmatprep.subr.mxu0 0.0
  %226 = vmatpush1.msra.mxu0 0.0
  %227 = vmatprep.subr.mxu0 0.0
  %228 = vmatpush1.msra.mxu0 0.0
  %229 = vmatprep.subr.mxu0 0.0
  %230 = vmatpush1.msra.mxu0 0.0
  %231 = vmatprep.subr.mxu0 0.0
  %232 = vmatpush1.msra.mxu0 0.0
  %233 = vmatprep.subr.mxu0 0.0
  %234 = vmatpush1.msra.mxu0 0.0
  %235 = vmatprep.subr.mxu0 0.0
  %236 = vmatpush1.msra.mxu0 0.0
  %237 = vmatprep.subr.mxu0 0.0
  %238 = vmatpush1.msra.mxu0 0.0
  %239 = vmatprep.subr.mxu0 0.0
  %240 = vmatpush1.msra.mxu0 0.0
  %241 = vmatprep.subr.mxu0 0.0
  %242 = vmatpush1.msra.mxu0 0.0
  %243 = vmatprep.subr.mxu0 0.0
  %244 = vmatpush1.msra.mxu0 0.0
  %245 = vmatprep.subr.mxu0 0.0
  %246 = vmatpush1.msra.mxu0 0.0
  %247 = vmatprep.subr.mxu0 0.0
  %248 = vmatpush1.msra.mxu0 0.0
  %249 = vmatprep.subr.mxu0 0.0
  %250 = vmatpush1.msra.mxu0 0.0
  %251 = vmatprep.subr.mxu0 0.0
  %252 = vmatpush1.msra.mxu0 0.0
  %253 = vmatprep.subr.mxu0 0.0
  %254 = vmatpush1.msra.mxu0 0.0
  %255 = vmatprep.subr.mxu0 0.0
  %256 = vmatpush1.msra.mxu0 0.0
  %257 = vmatprep.subr.mxu0 0.0
  %258 = vmatpush1.msra.mxu0 0.0
  %259 = vmatprep.subr.mxu0 0.0
  %260 = vmatpush1.msra.mxu0 0.0
  %261 = vmatprep.subr.mxu0 0.0
  %262 = vmatpush1.msra.mxu0 0.0
  %263 = vmatprep.mubr.f32.mxu0 0.0
  %264 = vmatmul.mubr.f32.gmra.mrb[0].mxu0 %v176
  %v265 = vpop.f32.mrb[0].mxu0
  %v266 = vadd.f32 %v136, %v265
  %v267 = vpop.f32.mrb[0].mxu0
  %268 = vmatprep.mubr.f32.mxu0 0.0
  %269 = vmatmul.mubr.f32.gmra.mrb[0].mxu0 %v179
  %v270 = vpop.f32.mrb[0].mxu0
  %v271 = vadd.f32 %v141, %v270
  %v272 = vpop.f32.mrb[0].mxu0
  %273 = vmatprep.mubr.f32.mxu0 0.0
  %274 = vmatmul.mubr.f32.gmra.mrb[0].mxu0 %v182
  %v275 = vpop.f32.mrb[0].mxu0
  %v276 = vadd.f32 %v146, %v275
  %v277 = vpop.f32.mrb[0].mxu0
  %278 = vmatprep.mubr.f32.mxu0 0.0
  %279 = vmatmul.mubr.f32.gmra.mrb[0].mxu0 %v185
  %v280 = vpop.f32.mrb[0].mxu0
  %v281 = vadd.f32 %v151, %v280
  %v282 = vpop.f32.mrb[0].mxu0
  %283 = vmatprep.mubr.f32.mxu0 0.0
  %284 = vmatmul.mubr.f32.gmra.mrb[0].mxu0 %v188
  %v285 = vpop.f32.mrb[0].mxu0
  %v286 = vadd.f32 %v156, %v285
  %v287 = vpop.f32.mrb[0].mxu0
  %288 = vmatprep.mubr.f32.mxu0 0.0
  %289 = vmatmul.mubr.f32.gmra.mrb[0].mxu0 %v191
  %v290 = vpop.f32.mrb[0].mxu0
  %v291 = vadd.f32 %v161, %v290
  %v292 = vpop.f32.mrb[0].mxu0
  %293 = vmatprep.mubr.f32.mxu0 0.0
  %294 = vmatmul.mubr.f32.gmra.mrb[0].mxu0 %v194
  %v295 = vpop.f32.mrb[0].mxu0
  %v296 = vadd.f32 %v166, %v295
  %v297 = vpop.f32.mrb[0].mxu0
  %298 = vmatprep.mubr.f32.mxu0 0.0
  %299 = vmatmul.mubr.f32.gmra.mrb[0].mxu0 %v197
  %v300 = vpop.f32.mrb[0].mxu0
  %v301 = vadd.f32 %v171, %v300
  %v302 = vpop.f32.mrb[0].mxu0
  %303 = vdwg.mxu0
  %v304 = vld [vmem:[%s5] sm:$0x1]
  %v306 = vlaneseq
  %v307 = vshrl.u32 %v306, 7
  %v308 = vsub.s32 0, %v307
  %v309 = vrot.slane %v304, %v308
  %v311 = vadd.f32 %v266, %v309
  %v312 = vadd.f32 %v271, %v309
  %v313 = vadd.f32 %v276, %v309
  %v314 = vadd.f32 %v281, %v309
  %v315 = vadd.f32 %v286, %v309
  %v316 = vadd.f32 %v291, %v309
  %v317 = vadd.f32 %v296, %v309
  %v318 = vadd.f32 %v301, %v309
  %319 = vst [vmem:[#allocation2] sm:$0xff] %v311
  %320 = vst [vmem:[#allocation2 + $0x8] sm:$0xff] %v312
  %321 = vst [vmem:[#allocation2 + $0x10] sm:$0xff] %v313
  %322 = vst [vmem:[#allocation2 + $0x18] sm:$0xff] %v314
  %323 = vst [vmem:[#allocation2 + $0x20] sm:$0xff] %v315
  %324 = vst [vmem:[#allocation2 + $0x28] sm:$0xff] %v316
  %325 = vst [vmem:[#allocation2 + $0x30] sm:$0xff] %v317
  %326 = vst [vmem:[#allocation2 + $0x38] sm:$0xff] %v318
  %v327 = vld [vmem:[%s0] sm:$0xff]
  %v328 = vld [vmem:[%s0 + $0x8] sm:$0xff]
  %v329 = vld [vmem:[%s0 + $0x10] sm:$0xff]
  %v330 = vld [vmem:[%s0 + $0x18] sm:$0xff]
  %v331 = vld [vmem:[%s0 + $0x20] sm:$0xff]
  %v332 = vld [vmem:[%s0 + $0x28] sm:$0xff]
  %v333 = vld [vmem:[%s0 + $0x30] sm:$0xff]
  %v334 = vld [vmem:[%s0 + $0x38] sm:$0xff]
  %335 = vst.msk [vmem:[%s6] sm:$0xff] %vm174, %v327
  %336 = vst.msk [vmem:[%s6 + $0x8] sm:$0xff] %vm174, %v328
  %337 = vst.msk [vmem:[%s6 + $0x10] sm:$0xff] %vm174, %v329
  %338 = vst.msk [vmem:[%s6 + $0x18] sm:$0xff] %vm174, %v330
  %339 = vst.msk [vmem:[%s6 + $0x20] sm:$0xff] %vm174, %v331
  %340 = vst.msk [vmem:[%s6 + $0x28] sm:$0xff] %vm174, %v332
  %341 = vst.msk [vmem:[%s6 + $0x30] sm:$0xff] %vm174, %v333
  %342 = vst.msk [vmem:[%s6 + $0x38] sm:$0xff] %vm174, %v334
  %v343 = vld [vmem:[%s4] sm:$0xff]
  %v344 = vld [vmem:[%s4 + $0x8] sm:$0xff]
  %v345 = vld [vmem:[%s4 + $0x10] sm:$0xff]
  %v346 = vld [vmem:[%s4 + $0x18] sm:$0xff]
  %v347 = vlaneseq
  %v348 = vand.u32 %v347, 127
  %vm349 = vcmp.lt.s32.totalorder %v348, 0
  %v350 = vsub.s32 0, %v348
  %v351 = vsel %vm349, %v350, %v348
  %v352 = vshrl.u32 %v351, 5
  %v353 = vand.u32 %v351, 31
  %v354 = vsub.s32 0, %v353
  %v355 = vsel %vm349, %v354, %v353
  %vm356 = vcmp.ne.s32.totalorder %v355, 0
  %vm357 = vcmp.lt.s32.totalorder %v355, 0
  %vm358 = vmand %vm357, %vm356
  %v359 = vadd.s32 %v355, 32
  %v360 = vsel %vm358, %v359, %v355
  %vm361 = vcmp.lt.s32.totalorder %v360, 16
  %v362 = vld [vmem:[#allocation2] sm:$0xff]
  %v363 = vld [vmem:[#allocation2 + $0x38] sm:$0xff]
  %v364 = vsel %vm361, %v362, %v363
  %v366 = vsel %vm174, 0.0, 0
  %368 = vmatprep.subr.mxu0 0.0
  %369 = vmatpush1.msra.mxu0 %v343
  %370 = vmatprep.subr.mxu0 0.0
  %371 = vmatpush1.msra.mxu0 %v344
  %372 = vmatprep.subr.mxu0 0.0
  %373 = vmatpush1.msra.mxu0 %v345
  %374 = vmatprep.subr.mxu0 0.0
  %375 = vmatpush1.msra.mxu0 %v346
  %376 = vmatprep.subr.mxu0 0.0
  %377 = vmatpush1.msra.mxu0 0.0
  %378 = vmatprep.subr.mxu0 0.0
  %379 = vmatpush1.msra.mxu0 0.0
  %380 = vmatprep.subr.mxu0 0.0
  %381 = vmatpush1.msra.mxu0 0.0
  %382 = vmatprep.subr.mxu0 0.0
  %383 = vmatpush1.msra.mxu0 0.0
  %384 = vmatprep.subr.mxu0 0.0
  %385 = vmatpush1.msra.mxu0 0.0
  %386 = vmatprep.subr.mxu0 0.0
  %387 = vmatpush1.msra.mxu0 0.0
  %388 = vmatprep.subr.mxu0 0.0
  %389 = vmatpush1.msra.mxu0 0.0
  %390 = vmatprep.subr.mxu0 0.0
  %391 = vmatpush1.msra.mxu0 0.0
  %392 = vmatprep.subr.mxu0 0.0
  %393 = vmatpush1.msra.mxu0 0.0
  %394 = vmatprep.subr.mxu0 0.0
  %395 = vmatpush1.msra.mxu0 0.0
  %396 = vmatprep.subr.mxu0 0.0
  %397 = vmatpush1.msra.mxu0 0.0
  %398 = vmatprep.subr.mxu0 0.0
  %399 = vmatpush1.msra.mxu0 0.0
  %400 = vmatprep.subr.mxu0 0.0
  %401 = vmatpush1.msra.mxu0 0.0
  %402 = vmatprep.subr.mxu0 0.0
  %403 = vmatpush1.msra.mxu0 0.0
  %404 = vmatprep.subr.mxu0 0.0
  %405 = vmatpush1.msra.mxu0 0.0
  %406 = vmatprep.subr.mxu0 0.0
  %407 = vmatpush1.msra.mxu0 0.0
  %408 = vmatprep.subr.mxu0 0.0
  %409 = vmatpush1.msra.mxu0 0.0
  %410 = vmatprep.subr.mxu0 0.0
  %411 = vmatpush1.msra.mxu0 0.0
  %412 = vmatprep.subr.mxu0 0.0
  %413 = vmatpush1.msra.mxu0 0.0
  %414 = vmatprep.subr.mxu0 0.0
  %415 = vmatpush1.msra.mxu0 0.0
  %416 = vmatprep.subr.mxu0 0.0
  %417 = vmatpush1.msra.mxu0 0.0
  %418 = vmatprep.subr.mxu0 0.0
  %419 = vmatpush1.msra.mxu0 0.0
  %420 = vmatprep.subr.mxu0 0.0
  %421 = vmatpush1.msra.mxu0 0.0
  %422 = vmatprep.subr.mxu0 0.0
  %423 = vmatpush1.msra.mxu0 0.0
  %424 = vmatprep.subr.mxu0 0.0
  %425 = vmatpush1.msra.mxu0 0.0
  %426 = vmatprep.subr.mxu0 0.0
  %427 = vmatpush1.msra.mxu0 0.0
  %428 = vmatprep.subr.mxu0 0.0
  %429 = vmatpush1.msra.mxu0 0.0
  %430 = vmatprep.subr.mxu0 0.0
  %431 = vmatpush1.msra.mxu0 0.0
  %432 = vmatprep.mubr.f32.mxu0 0.0
  %433 = vmatmul.mubr.f32.gmra.mrb[0].mxu0 %v366
  %v434 = vpop.f32.mrb[0].mxu0
  %v435 = vadd.f32 0.0, %v434
  %v436 = vpop.f32.mrb[0].mxu0
  %437 = vdwg.mxu0
  %v438 = vadd.f32 %v364, %v435
  %v439 = vxor.u32 %v438, 2147483648
  %v440 = vmul.f32 %v439, 1.442695
  %v441 = vpow.pop %v440
  %v442 = vadd.f32 %v441, 1.0
  %v443 = vrcp.pop %v442
  %v444 = vmul.f32 1.0, %v443
  %v445 = vtanh.pop %v438
  %v446 = vmul.f32 %v444, 0.0
  %448 = vrot.lane.b32.xlu0 %v445, 64
  %v449 = vpop.permute.xlu0 %448
  %v451 = vmul.f32 %v444, %v449
  %453 = vrot.lane.b32.xlu0 %v451, 32
  %v454 = vpop.permute.xlu0 %453
  %v456 = vadd.f32 %v446, %v454
  %v457 = vtanh.pop %v456
  %459 = vrot.lane.b32.xlu0 %v457, 64
  %v460 = vpop.permute.xlu0 %459
  %v462 = vmul.f32 %v444, %v460
  %464 = vrot.lane.b32.xlu0 %v462, 64
  %v465 = vpop.permute.xlu0 %464
  %vm467 = vcmask 392448
  %468 = vst.msk [vmem:[%s6] sm:$0xff] %vm467, %v465
  %vm469 = vcmask 523648
  %470 = vst.msk [vmem:[%s6 + $0x38] sm:$0xff] %vm469, %v465
  %v471 = vld [vmem:[#allocation2 + $0x8] sm:$0xff]
  %v472 = vld [vmem:[#allocation2 + $0x30] sm:$0xff]
  %v473 = vsel %vm361, %v471, %v472
  %474 = vrot.lane.b32.xlu0 %v462, 32
  %v475 = vpop.permute.xlu0 %474
  %v476 = vsel %vm174, %v475, 0
  %478 = vmatprep.subr.mxu0 0.0
  %479 = vmatpush1.msra.mxu0 %v343
  %480 = vmatprep.subr.mxu0 0.0
  %481 = vmatpush1.msra.mxu0 %v344
  %482 = vmatprep.subr.mxu0 0.0
  %483 = vmatpush1.msra.mxu0 %v345
  %484 = vmatprep.subr.mxu0 0.0
  %485 = vmatpush1.msra.mxu0 %v346
  %486 = vmatprep.subr.mxu0 0.0
  %487 = vmatpush1.msra.mxu0 0.0
  %488 = vmatprep.subr.mxu0 0.0
  %489 = vmatpush1.msra.mxu0 0.0
  %490 = vmatprep.subr.mxu0 0.0
  %491 = vmatpush1.msra.mxu0 0.0
  %492 = vmatprep.subr.mxu0 0.0
  %493 = vmatpush1.msra.mxu0 0.0
  %494 = vmatprep.subr.mxu0 0.0
  %495 = vmatpush1.msra.mxu0 0.0
  %496 = vmatprep.subr.mxu0 0.0
  %497 = vmatpush1.msra.mxu0 0.0
  %498 = vmatprep.subr.mxu0 0.0
  %499 = vmatpush1.msra.mxu0 0.0
  %500 = vmatprep.subr.mxu0 0.0
  %501 = vmatpush1.msra.mxu0 0.0
  %502 = vmatprep.subr.mxu0 0.0
  %503 = vmatpush1.msra.mxu0 0.0
  %504 = vmatprep.subr.mxu0 0.0
  %505 = vmatpush1.msra.mxu0 0.0
  %506 = vmatprep.subr.mxu0 0.0
  %507 = vmatpush1.msra.mxu0 0.0
  %508 = vmatprep.subr.mxu0 0.0
  %509 = vmatpush1.msra.mxu0 0.0
  %510 = vmatprep.subr.mxu0 0.0
  %511 = vmatpush1.msra.mxu0 0.0
  %512 = vmatprep.subr.mxu0 0.0
  %513 = vmatpush1.msra.mxu0 0.0
  %514 = vmatprep.subr.mxu0 0.0
  %515 = vmatpush1.msra.mxu0 0.0
  %516 = vmatprep.subr.mxu0 0.0
  %517 = vmatpush1.msra.mxu0 0.0
  %518 = vmatprep.subr.mxu0 0.0
  %519 = vmatpush1.msra.mxu0 0.0
  %520 = vmatprep.subr.mxu0 0.0
  %521 = vmatpush1.msra.mxu0 0.0
  %522 = vmatprep.subr.mxu0 0.0
  %523 = vmatpush1.msra.mxu0 0.0
  %524 = vmatprep.subr.mxu0 0.0
  %525 = vmatpush1.msra.mxu0 0.0
  %526 = vmatprep.subr.mxu0 0.0
  %527 = vmatpush1.msra.mxu0 0.0
  %528 = vmatprep.subr.mxu0 0.0
  %529 = vmatpush1.msra.mxu0 0.0
  %530 = vmatprep.subr.mxu0 0.0
  %531 = vmatpush1.msra.mxu0 0.0
  %532 = vmatprep.subr.mxu0 0.0
  %533 = vmatpush1.msra.mxu0 0.0
  %534 = vmatprep.subr.mxu0 0.0
  %535 = vmatpush1.msra.mxu0 0.0
  %536 = vmatprep.subr.mxu0 0.0
  %537 = vmatpush1.msra.mxu0 0.0
  %538 = vmatprep.subr.mxu0 0.0
  %539 = vmatpush1.msra.mxu0 0.0
  %540 = vmatprep.subr.mxu0 0.0
  %541 = vmatpush1.msra.mxu0 0.0
  %542 = vmatprep.mubr.f32.mxu0 0.0
  %543 = vmatmul.mubr.f32.gmra.mrb[0].mxu0 %v476
  %v544 = vpop.f32.mrb[0].mxu0
  %v545 = vadd.f32 0.0, %v544
  %v546 = vpop.f32.mrb[0].mxu0
  %547 = vdwg.mxu0
  %v548 = vadd.f32 %v473, %v545
  %v549 = vxor.u32 %v548, 2147483648
  %v550 = vmul.f32 %v549, 1.442695
  %v551 = vpow.pop %v550
  %v552 = vadd.f32 %v551, 1.0
  %v553 = vrcp.pop %v552
  %v554 = vmul.f32 1.0, %v553
  %v555 = vtanh.pop %v548
  %v556 = vmul.f32 %v554, %v456
  %558 = vrot.lane.b32.xlu0 %v555, 64
  %v559 = vpop.permute.xlu0 %558
  %v561 = vmul.f32 %v554, %v559
  %563 = vrot.lane.b32.xlu0 %v561, 32
  %v564 = vpop.permute.xlu0 %563
  %v566 = vadd.f32 %v556, %v564
  %v567 = vtanh.pop %v566
  %569 = vrot.lane.b32.xlu0 %v567, 64
  %v570 = vpop.permute.xlu0 %569
  %v572 = vmul.f32 %v554, %v570
  %574 = vrot.lane.b32.xlu0 %v572, 64
  %v575 = vpop.permute.xlu0 %574
  %577 = vst.msk [vmem:[%s6 + $0x8] sm:$0xff] %vm467, %v575
  %578 = vst.msk [vmem:[%s6 + $0x30] sm:$0xff] %vm469, %v575
  %v579 = vld [vmem:[#allocation2 + $0x10] sm:$0xff]
  %v580 = vld [vmem:[#allocation2 + $0x28] sm:$0xff]
  %v581 = vsel %vm361, %v579, %v580
  %582 = vrot.lane.b32.xlu0 %v572, 32
  %v583 = vpop.permute.xlu0 %582
  %v584 = vsel %vm174, %v583, 0
  %586 = vmatprep.subr.mxu0 0.0
  %587 = vmatpush1.msra.mxu0 %v343
  %588 = vmatprep.subr.mxu0 0.0
  %589 = vmatpush1.msra.mxu0 %v344
  %590 = vmatprep.subr.mxu0 0.0
  %591 = vmatpush1.msra.mxu0 %v345
  %592 = vmatprep.subr.mxu0 0.0
  %593 = vmatpush1.msra.mxu0 %v346
  %594 = vmatprep.subr.mxu0 0.0
  %595 = vmatpush1.msra.mxu0 0.0
  %596 = vmatprep.subr.mxu0 0.0
  %597 = vmatpush1.msra.mxu0 0.0
  %598 = vmatprep.subr.mxu0 0.0
  %599 = vmatpush1.msra.mxu0 0.0
  %600 = vmatprep.subr.mxu0 0.0
  %601 = vmatpush1.msra.mxu0 0.0
  %602 = vmatprep.subr.mxu0 0.0
  %603 = vmatpush1.msra.mxu0 0.0
  %604 = vmatprep.subr.mxu0 0.0
  %605 = vmatpush1.msra.mxu0 0.0
  %606 = vmatprep.subr.mxu0 0.0
  %607 = vmatpush1.msra.mxu0 0.0
  %608 = vmatprep.subr.mxu0 0.0
  %609 = vmatpush1.msra.mxu0 0.0
  %610 = vmatprep.subr.mxu0 0.0
  %611 = vmatpush1.msra.mxu0 0.0
  %612 = vmatprep.subr.mxu0 0.0
  %613 = vmatpush1.msra.mxu0 0.0
  %614 = vmatprep.subr.mxu0 0.0
  %615 = vmatpush1.msra.mxu0 0.0
  %616 = vmatprep.subr.mxu0 0.0
  %617 = vmatpush1.msra.mxu0 0.0
  %618 = vmatprep.subr.mxu0 0.0
  %619 = vmatpush1.msra.mxu0 0.0
  %620 = vmatprep.subr.mxu0 0.0
  %621 = vmatpush1.msra.mxu0 0.0
  %622 = vmatprep.subr.mxu0 0.0
  %623 = vmatpush1.msra.mxu0 0.0
  %624 = vmatprep.subr.mxu0 0.0
  %625 = vmatpush1.msra.mxu0 0.0
  %626 = vmatprep.subr.mxu0 0.0
  %627 = vmatpush1.msra.mxu0 0.0
  %628 = vmatprep.subr.mxu0 0.0
  %629 = vmatpush1.msra.mxu0 0.0
  %630 = vmatprep.subr.mxu0 0.0
  %631 = vmatpush1.msra.mxu0 0.0
  %632 = vmatprep.subr.mxu0 0.0
  %633 = vmatpush1.msra.mxu0 0.0
  %634 = vmatprep.subr.mxu0 0.0
  %635 = vmatpush1.msra.mxu0 0.0
  %636 = vmatprep.subr.mxu0 0.0
  %637 = vmatpush1.msra.mxu0 0.0
  %638 = vmatprep.subr.mxu0 0.0
  %639 = vmatpush1.msra.mxu0 0.0
  %640 = vmatprep.subr.mxu0 0.0
  %641 = vmatpush1.msra.mxu0 0.0
  %642 = vmatprep.subr.mxu0 0.0
  %643 = vmatpush1.msra.mxu0 0.0
  %644 = vmatprep.subr.mxu0 0.0
  %645 = vmatpush1.msra.mxu0 0.0
  %646 = vmatprep.subr.mxu0 0.0
  %647 = vmatpush1.msra.mxu0 0.0
  %648 = vmatprep.subr.mxu0 0.0
  %649 = vmatpush1.msra.mxu0 0.0
  %650 = vmatprep.mubr.f32.mxu0 0.0
  %651 = vmatmul.mubr.f32.gmra.mrb[0].mxu0 %v584
  %v652 = vpop.f32.mrb[0].mxu0
  %v653 = vadd.f32 0.0, %v652
  %v654 = vpop.f32.mrb[0].mxu0
  %655 = vdwg.mxu0
  %v656 = vadd.f32 %v581, %v653
  %v657 = vxor.u32 %v656, 2147483648
  %v658 = vmul.f32 %v657, 1.442695
  %v659 = vpow.pop %v658
  %v660 = vadd.f32 %v659, 1.0
  %v661 = vrcp.pop %v660
  %v662 = vmul.f32 1.0, %v661
  %v663 = vtanh.pop %v656
  %v664 = vmul.f32 %v662, %v566
  %666 = vrot.lane.b32.xlu0 %v663, 64
  %v667 = vpop.permute.xlu0 %666
  %v669 = vmul.f32 %v662, %v667
  %671 = vrot.lane.b32.xlu0 %v669, 32
  %v672 = vpop.permute.xlu0 %671
  %v674 = vadd.f32 %v664, %v672
  %v675 = vtanh.pop %v674
  %677 = vrot.lane.b32.xlu0 %v675, 64
  %v678 = vpop.permute.xlu0 %677
  %v680 = vmul.f32 %v662, %v678
  %682 = vrot.lane.b32.xlu0 %v680, 64
  %v683 = vpop.permute.xlu0 %682
  %685 = vst.msk [vmem:[%s6 + $0x10] sm:$0xff] %vm467, %v683
  %686 = vst.msk [vmem:[%s6 + $0x28] sm:$0xff] %vm469, %v683
  %v687 = vld [vmem:[#allocation2 + $0x18] sm:$0xff]
  %v688 = vld [vmem:[#allocation2 + $0x20] sm:$0xff]
  %v689 = vsel %vm361, %v687, %v688
  %690 = vrot.lane.b32.xlu0 %v680, 32
  %v691 = vpop.permute.xlu0 %690
  %v692 = vsel %vm174, %v691, 0
  %694 = vmatprep.subr.mxu0 0.0
  %695 = vmatpush1.msra.mxu0 %v343
  %696 = vmatprep.subr.mxu0 0.0
  %697 = vmatpush1.msra.mxu0 %v344
  %698 = vmatprep.subr.mxu0 0.0
  %699 = vmatpush1.msra.mxu0 %v345
  %700 = vmatprep.subr.mxu0 0.0
  %701 = vmatpush1.msra.mxu0 %v346
  %702 = vmatprep.subr.mxu0 0.0
  %703 = vmatpush1.msra.mxu0 0.0
  %704 = vmatprep.subr.mxu0 0.0
  %705 = vmatpush1.msra.mxu0 0.0
  %706 = vmatprep.subr.mxu0 0.0
  %707 = vmatpush1.msra.mxu0 0.0
  %708 = vmatprep.subr.mxu0 0.0
  %709 = vmatpush1.msra.mxu0 0.0
  %710 = vmatprep.subr.mxu0 0.0
  %711 = vmatpush1.msra.mxu0 0.0
  %712 = vmatprep.subr.mxu0 0.0
  %713 = vmatpush1.msra.mxu0 0.0
  %714 = vmatprep.subr.mxu0 0.0
  %715 = vmatpush1.msra.mxu0 0.0
  %716 = vmatprep.subr.mxu0 0.0
  %717 = vmatpush1.msra.mxu0 0.0
  %718 = vmatprep.subr.mxu0 0.0
  %719 = vmatpush1.msra.mxu0 0.0
  %720 = vmatprep.subr.mxu0 0.0
  %721 = vmatpush1.msra.mxu0 0.0
  %722 = vmatprep.subr.mxu0 0.0
  %723 = vmatpush1.msra.mxu0 0.0
  %724 = vmatprep.subr.mxu0 0.0
  %725 = vmatpush1.msra.mxu0 0.0
  %726 = vmatprep.subr.mxu0 0.0
  %727 = vmatpush1.msra.mxu0 0.0
  %728 = vmatprep.subr.mxu0 0.0
  %729 = vmatpush1.msra.mxu0 0.0
  %730 = vmatprep.subr.mxu0 0.0
  %731 = vmatpush1.msra.mxu0 0.0
  %732 = vmatprep.subr.mxu0 0.0
  %733 = vmatpush1.msra.mxu0 0.0
  %734 = vmatprep.subr.mxu0 0.0
  %735 = vmatpush1.msra.mxu0 0.0
  %736 = vmatprep.subr.mxu0 0.0
  %737 = vmatpush1.msra.mxu0 0.0
  %738 = vmatprep.subr.mxu0 0.0
  %739 = vmatpush1.msra.mxu0 0.0
  %740 = vmatprep.subr.mxu0 0.0
  %741 = vmatpush1.msra.mxu0 0.0
  %742 = vmatprep.subr.mxu0 0.0
  %743 = vmatpush1.msra.mxu0 0.0
  %744 = vmatprep.subr.mxu0 0.0
  %745 = vmatpush1.msra.mxu0 0.0
  %746 = vmatprep.subr.mxu0 0.0
  %747 = vmatpush1.msra.mxu0 0.0
  %748 = vmatprep.subr.mxu0 0.0
  %749 = vmatpush1.msra.mxu0 0.0
  %750 = vmatprep.subr.mxu0 0.0
  %751 = vmatpush1.msra.mxu0 0.0
  %752 = vmatprep.subr.mxu0 0.0
  %753 = vmatpush1.msra.mxu0 0.0
  %754 = vmatprep.subr.mxu0 0.0
  %755 = vmatpush1.msra.mxu0 0.0
  %756 = vmatprep.subr.mxu0 0.0
  %757 = vmatpush1.msra.mxu0 0.0
  %758 = vmatprep.mubr.f32.mxu0 0.0
  %759 = vmatmul.mubr.f32.gmra.mrb[0].mxu0 %v692
  %v760 = vpop.f32.mrb[0].mxu0
  %v761 = vadd.f32 0.0, %v760
  %v762 = vpop.f32.mrb[0].mxu0
  %763 = vdwg.mxu0
  %v764 = vadd.f32 %v689, %v761
  %v765 = vxor.u32 %v764, 2147483648
  %v766 = vmul.f32 %v765, 1.442695
  %v767 = vpow.pop %v766
  %v768 = vadd.f32 %v767, 1.0
  %v769 = vrcp.pop %v768
  %v770 = vmul.f32 1.0, %v769
  %v771 = vtanh.pop %v764
  %v772 = vmul.f32 %v770, %v674
  %774 = vrot.lane.b32.xlu0 %v771, 64
  %v775 = vpop.permute.xlu0 %774
  %v777 = vmul.f32 %v770, %v775
  %779 = vrot.lane.b32.xlu0 %v777, 32
  %v780 = vpop.permute.xlu0 %779
  %v782 = vadd.f32 %v772, %v780
  %v783 = vtanh.pop %v782
  %785 = vrot.lane.b32.xlu0 %v783, 64
  %v786 = vpop.permute.xlu0 %785
  %v788 = vmul.f32 %v770, %v786
  %790 = vrot.lane.b32.xlu0 %v788, 64
  %v791 = vpop.permute.xlu0 %790
  %793 = vst.msk [vmem:[%s6 + $0x18] sm:$0xff] %vm467, %v791
  %794 = vst.msk [vmem:[%s6 + $0x20] sm:$0xff] %vm469, %v791
  %v795 = vld [vmem:[#allocation2 + $0x20] sm:$0xff]
  %v796 = vld [vmem:[#allocation2 + $0x18] sm:$0xff]
  %v797 = vsel %vm361, %v795, %v796
  %798 = vrot.lane.b32.xlu0 %v788, 32
  %v799 = vpop.permute.xlu0 %798
  %v800 = vsel %vm174, %v799, 0
  %802 = vmatprep.subr.mxu0 0.0
  %803 = vmatpush1.msra.mxu0 %v343
  %804 = vmatprep.subr.mxu0 0.0
  %805 = vmatpush1.msra.mxu0 %v344
  %806 = vmatprep.subr.mxu0 0.0
  %807 = vmatpush1.msra.mxu0 %v345
  %808 = vmatprep.subr.mxu0 0.0
  %809 = vmatpush1.msra.mxu0 %v346
  %810 = vmatprep.subr.mxu0 0.0
  %811 = vmatpush1.msra.mxu0 0.0
  %812 = vmatprep.subr.mxu0 0.0
  %813 = vmatpush1.msra.mxu0 0.0
  %814 = vmatprep.subr.mxu0 0.0
  %815 = vmatpush1.msra.mxu0 0.0
  %816 = vmatprep.subr.mxu0 0.0
  %817 = vmatpush1.msra.mxu0 0.0
  %818 = vmatprep.subr.mxu0 0.0
  %819 = vmatpush1.msra.mxu0 0.0
  %820 = vmatprep.subr.mxu0 0.0
  %821 = vmatpush1.msra.mxu0 0.0
  %822 = vmatprep.subr.mxu0 0.0
  %823 = vmatpush1.msra.mxu0 0.0
  %824 = vmatprep.subr.mxu0 0.0
  %825 = vmatpush1.msra.mxu0 0.0
  %826 = vmatprep.subr.mxu0 0.0
  %827 = vmatpush1.msra.mxu0 0.0
  %828 = vmatprep.subr.mxu0 0.0
  %829 = vmatpush1.msra.mxu0 0.0
  %830 = vmatprep.subr.mxu0 0.0
  %831 = vmatpush1.msra.mxu0 0.0
  %832 = vmatprep.subr.mxu0 0.0
  %833 = vmatpush1.msra.mxu0 0.0
  %834 = vmatprep.subr.mxu0 0.0
  %835 = vmatpush1.msra.mxu0 0.0
  %836 = vmatprep.subr.mxu0 0.0
  %837 = vmatpush1.msra.mxu0 0.0
  %838 = vmatprep.subr.mxu0 0.0
  %839 = vmatpush1.msra.mxu0 0.0
  %840 = vmatprep.subr.mxu0 0.0
  %841 = vmatpush1.msra.mxu0 0.0
  %842 = vmatprep.subr.mxu0 0.0
  %843 = vmatpush1.msra.mxu0 0.0
  %844 = vmatprep.subr.mxu0 0.0
  %845 = vmatpush1.msra.mxu0 0.0
  %846 = vmatprep.subr.mxu0 0.0
  %847 = vmatpush1.msra.mxu0 0.0
  %848 = vmatprep.subr.mxu0 0.0
  %849 = vmatpush1.msra.mxu0 0.0
  %850 = vmatprep.subr.mxu0 0.0
  %851 = vmatpush1.msra.mxu0 0.0
  %852 = vmatprep.subr.mxu0 0.0
  %853 = vmatpush1.msra.mxu0 0.0
  %854 = vmatprep.subr.mxu0 0.0
  %855 = vmatpush1.msra.mxu0 0.0
  %856 = vmatprep.subr.mxu0 0.0
  %857 = vmatpush1.msra.mxu0 0.0
  %858 = vmatprep.subr.mxu0 0.0
  %859 = vmatpush1.msra.mxu0 0.0
  %860 = vmatprep.subr.mxu0 0.0
  %861 = vmatpush1.msra.mxu0 0.0
  %862 = vmatprep.subr.mxu0 0.0
  %863 = vmatpush1.msra.mxu0 0.0
  %864 = vmatprep.subr.mxu0 0.0
  %865 = vmatpush1.msra.mxu0 0.0
  %866 = vmatprep.mubr.f32.mxu0 0.0
  %867 = vmatmul.mubr.f32.gmra.mrb[0].mxu0 %v800
  %v868 = vpop.f32.mrb[0].mxu0
  %v869 = vadd.f32 0.0, %v868
  %v870 = vpop.f32.mrb[0].mxu0
  %871 = vdwg.mxu0
  %v872 = vadd.f32 %v797, %v869
  %v873 = vxor.u32 %v872, 2147483648
  %v874 = vmul.f32 %v873, 1.442695
  %v875 = vpow.pop %v874
  %v876 = vadd.f32 %v875, 1.0
  %v877 = vrcp.pop %v876
  %v878 = vmul.f32 1.0, %v877
  %v879 = vtanh.pop %v872
  %v880 = vmul.f32 %v878, %v782
  %882 = vrot.lane.b32.xlu0 %v879, 64
  %v883 = vpop.permute.xlu0 %882
  %v885 = vmul.f32 %v878, %v883
  %887 = vrot.lane.b32.xlu0 %v885, 32
  %v888 = vpop.permute.xlu0 %887
  %v890 = vadd.f32 %v880, %v888
  %v891 = vtanh.pop %v890
  %893 = vrot.lane.b32.xlu0 %v891, 64
  %v894 = vpop.permute.xlu0 %893
  %v896 = vmul.f32 %v878, %v894
  %898 = vrot.lane.b32.xlu0 %v896, 64
  %v899 = vpop.permute.xlu0 %898
  %901 = vst.msk [vmem:[%s6 + $0x20] sm:$0xff] %vm467, %v899
  %902 = vst.msk [vmem:[%s6 + $0x18] sm:$0xff] %vm469, %v899
  %v903 = vld [vmem:[#allocation2 + $0x28] sm:$0xff]
  %v904 = vld [vmem:[#allocation2 + $0x10] sm:$0xff]
  %v905 = vsel %vm361, %v903, %v904
  %906 = vrot.lane.b32.xlu0 %v896, 32
  %v907 = vpop.permute.xlu0 %906
  %v908 = vsel %vm174, %v907, 0
  %910 = vmatprep.subr.mxu0 0.0
  %911 = vmatpush1.msra.mxu0 %v343
  %912 = vmatprep.subr.mxu0 0.0
  %913 = vmatpush1.msra.mxu0 %v344
  %914 = vmatprep.subr.mxu0 0.0
  %915 = vmatpush1.msra.mxu0 %v345
  %916 = vmatprep.subr.mxu0 0.0
  %917 = vmatpush1.msra.mxu0 %v346
  %918 = vmatprep.subr.mxu0 0.0
  %919 = vmatpush1.msra.mxu0 0.0
  %920 = vmatprep.subr.mxu0 0.0
  %921 = vmatpush1.msra.mxu0 0.0
  %922 = vmatprep.subr.mxu0 0.0
  %923 = vmatpush1.msra.mxu0 0.0
  %924 = vmatprep.subr.mxu0 0.0
  %925 = vmatpush1.msra.mxu0 0.0
  %926 = vmatprep.subr.mxu0 0.0
  %927 = vmatpush1.msra.mxu0 0.0
  %928 = vmatprep.subr.mxu0 0.0
  %929 = vmatpush1.msra.mxu0 0.0
  %930 = vmatprep.subr.mxu0 0.0
  %931 = vmatpush1.msra.mxu0 0.0
  %932 = vmatprep.subr.mxu0 0.0
  %933 = vmatpush1.msra.mxu0 0.0
  %934 = vmatprep.subr.mxu0 0.0
  %935 = vmatpush1.msra.mxu0 0.0
  %936 = vmatprep.subr.mxu0 0.0
  %937 = vmatpush1.msra.mxu0 0.0
  %938 = vmatprep.subr.mxu0 0.0
  %939 = vmatpush1.msra.mxu0 0.0
  %940 = vmatprep.subr.mxu0 0.0
  %941 = vmatpush1.msra.mxu0 0.0
  %942 = vmatprep.subr.mxu0 0.0
  %943 = vmatpush1.msra.mxu0 0.0
  %944 = vmatprep.subr.mxu0 0.0
  %945 = vmatpush1.msra.mxu0 0.0
  %946 = vmatprep.subr.mxu0 0.0
  %947 = vmatpush1.msra.mxu0 0.0
  %948 = vmatprep.subr.mxu0 0.0
  %949 = vmatpush1.msra.mxu0 0.0
  %950 = vmatprep.subr.mxu0 0.0
  %951 = vmatpush1.msra.mxu0 0.0
  %952 = vmatprep.subr.mxu0 0.0
  %953 = vmatpush1.msra.mxu0 0.0
  %954 = vmatprep.subr.mxu0 0.0
  %955 = vmatpush1.msra.mxu0 0.0
  %956 = vmatprep.subr.mxu0 0.0
  %957 = vmatpush1.msra.mxu0 0.0
  %958 = vmatprep.subr.mxu0 0.0
  %959 = vmatpush1.msra.mxu0 0.0
  %960 = vmatprep.subr.mxu0 0.0
  %961 = vmatpush1.msra.mxu0 0.0
  %962 = vmatprep.subr.mxu0 0.0
  %963 = vmatpush1.msra.mxu0 0.0
  %964 = vmatprep.subr.mxu0 0.0
  %965 = vmatpush1.msra.mxu0 0.0
  %966 = vmatprep.subr.mxu0 0.0
  %967 = vmatpush1.msra.mxu0 0.0
  %968 = vmatprep.subr.mxu0 0.0
  %969 = vmatpush1.msra.mxu0 0.0
  %970 = vmatprep.subr.mxu0 0.0
  %971 = vmatpush1.msra.mxu0 0.0
  %972 = vmatprep.subr.mxu0 0.0
  %973 = vmatpush1.msra.mxu0 0.0
  %974 = vmatprep.mubr.f32.mxu0 0.0
  %975 = vmatmul.mubr.f32.gmra.mrb[0].mxu0 %v908
  %v976 = vpop.f32.mrb[0].mxu0
  %v977 = vadd.f32 0.0, %v976
  %v978 = vpop.f32.mrb[0].mxu0
  %979 = vdwg.mxu0
  %v980 = vadd.f32 %v905, %v977
  %v981 = vxor.u32 %v980, 2147483648
  %v982 = vmul.f32 %v981, 1.442695
  %v983 = vpow.pop %v982
  %v984 = vadd.f32 %v983, 1.0
  %v985 = vrcp.pop %v984
  %v986 = vmul.f32 1.0, %v985
  %v987 = vtanh.pop %v980
  %v988 = vmul.f32 %v986, %v890
  %990 = vrot.lane.b32.xlu0 %v987, 64
  %v991 = vpop.permute.xlu0 %990
  %v993 = vmul.f32 %v986, %v991
  %995 = vrot.lane.b32.xlu0 %v993, 32
  %v996 = vpop.permute.xlu0 %995
  %v998 = vadd.f32 %v988, %v996
  %v999 = vtanh.pop %v998
  %1001 = vrot.lane.b32.xlu0 %v999, 64
  %v1002 = vpop.permute.xlu0 %1001
  %v1004 = vmul.f32 %v986, %v1002
  %1006 = vrot.lane.b32.xlu0 %v1004, 64
  %v1007 = vpop.permute.xlu0 %1006
  %1009 = vst.msk [vmem:[%s6 + $0x28] sm:$0xff] %vm467, %v1007
  %1010 = vst.msk [vmem:[%s6 + $0x10] sm:$0xff] %vm469, %v1007
  %v1011 = vld [vmem:[#allocation2 + $0x30] sm:$0xff]
  %v1012 = vld [vmem:[#allocation2 + $0x8] sm:$0xff]
  %v1013 = vsel %vm361, %v1011, %v1012
  %1014 = vrot.lane.b32.xlu0 %v1004, 32
  %v1015 = vpop.permute.xlu0 %1014
  %v1016 = vsel %vm174, %v1015, 0
  %1018 = vmatprep.subr.mxu0 0.0
  %1019 = vmatpush1.msra.mxu0 %v343
  %1020 = vmatprep.subr.mxu0 0.0
  %1021 = vmatpush1.msra.mxu0 %v344
  %1022 = vmatprep.subr.mxu0 0.0
  %1023 = vmatpush1.msra.mxu0 %v345
  %1024 = vmatprep.subr.mxu0 0.0
  %1025 = vmatpush1.msra.mxu0 %v346
  %1026 = vmatprep.subr.mxu0 0.0
  %1027 = vmatpush1.msra.mxu0 0.0
  %1028 = vmatprep.subr.mxu0 0.0
  %1029 = vmatpush1.msra.mxu0 0.0
  %1030 = vmatprep.subr.mxu0 0.0
  %1031 = vmatpush1.msra.mxu0 0.0
  %1032 = vmatprep.subr.mxu0 0.0
  %1033 = vmatpush1.msra.mxu0 0.0
  %1034 = vmatprep.subr.mxu0 0.0
  %1035 = vmatpush1.msra.mxu0 0.0
  %1036 = vmatprep.subr.mxu0 0.0
  %1037 = vmatpush1.msra.mxu0 0.0
  %1038 = vmatprep.subr.mxu0 0.0
  %1039 = vmatpush1.msra.mxu0 0.0
  %1040 = vmatprep.subr.mxu0 0.0
  %1041 = vmatpush1.msra.mxu0 0.0
  %1042 = vmatprep.subr.mxu0 0.0
  %1043 = vmatpush1.msra.mxu0 0.0
  %1044 = vmatprep.subr.mxu0 0.0
  %1045 = vmatpush1.msra.mxu0 0.0
  %1046 = vmatprep.subr.mxu0 0.0
  %1047 = vmatpush1.msra.mxu0 0.0
  %1048 = vmatprep.subr.mxu0 0.0
  %1049 = vmatpush1.msra.mxu0 0.0
  %1050 = vmatprep.subr.mxu0 0.0
  %1051 = vmatpush1.msra.mxu0 0.0
  %1052 = vmatprep.subr.mxu0 0.0
  %1053 = vmatpush1.msra.mxu0 0.0
  %1054 = vmatprep.subr.mxu0 0.0
  %1055 = vmatpush1.msra.mxu0 0.0
  %1056 = vmatprep.subr.mxu0 0.0
  %1057 = vmatpush1.msra.mxu0 0.0
  %1058 = vmatprep.subr.mxu0 0.0
  %1059 = vmatpush1.msra.mxu0 0.0
  %1060 = vmatprep.subr.mxu0 0.0
  %1061 = vmatpush1.msra.mxu0 0.0
  %1062 = vmatprep.subr.mxu0 0.0
  %1063 = vmatpush1.msra.mxu0 0.0
  %1064 = vmatprep.subr.mxu0 0.0
  %1065 = vmatpush1.msra.mxu0 0.0
  %1066 = vmatprep.subr.mxu0 0.0
  %1067 = vmatpush1.msra.mxu0 0.0
  %1068 = vmatprep.subr.mxu0 0.0
  %1069 = vmatpush1.msra.mxu0 0.0
  %1070 = vmatprep.subr.mxu0 0.0
  %1071 = vmatpush1.msra.mxu0 0.0
  %1072 = vmatprep.subr.mxu0 0.0
  %1073 = vmatpush1.msra.mxu0 0.0
  %1074 = vmatprep.subr.mxu0 0.0
  %1075 = vmatpush1.msra.mxu0 0.0
  %1076 = vmatprep.subr.mxu0 0.0
  %1077 = vmatpush1.msra.mxu0 0.0
  %1078 = vmatprep.subr.mxu0 0.0
  %1079 = vmatpush1.msra.mxu0 0.0
  %1080 = vmatprep.subr.mxu0 0.0
  %1081 = vmatpush1.msra.mxu0 0.0
  %1082 = vmatprep.mubr.f32.mxu0 0.0
  %1083 = vmatmul.mubr.f32.gmra.mrb[0].mxu0 %v1016
  %v1084 = vpop.f32.mrb[0].mxu0
  %v1085 = vadd.f32 0.0, %v1084
  %v1086 = vpop.f32.mrb[0].mxu0
  %1087 = vdwg.mxu0
  %v1088 = vadd.f32 %v1013, %v1085
  %v1089 = vxor.u32 %v1088, 2147483648
  %v1090 = vmul.f32 %v1089, 1.442695
  %v1091 = vpow.pop %v1090
  %v1092 = vadd.f32 %v1091, 1.0
  %v1093 = vrcp.pop %v1092
  %v1094 = vmul.f32 1.0, %v1093
  %v1095 = vtanh.pop %v1088
  %v1096 = vmul.f32 %v1094, %v998
  %1098 = vrot.lane.b32.xlu0 %v1095, 64
  %v1099 = vpop.permute.xlu0 %1098
  %v1101 = vmul.f32 %v1094, %v1099
  %1103 = vrot.lane.b32.xlu0 %v1101, 32
  %v1104 = vpop.permute.xlu0 %1103
  %v1106 = vadd.f32 %v1096, %v1104
  %v1107 = vtanh.pop %v1106
  %1109 = vrot.lane.b32.xlu0 %v1107, 64
  %v1110 = vpop.permute.xlu0 %1109
  %v1112 = vmul.f32 %v1094, %v1110
  %1114 = vrot.lane.b32.xlu0 %v1112, 64
  %v1115 = vpop.permute.xlu0 %1114
  %1117 = vst.msk [vmem:[%s6 + $0x30] sm:$0xff] %vm467, %v1115
  %1118 = vst.msk [vmem:[%s6 + $0x8] sm:$0xff] %vm469, %v1115
  %v1119 = vld [vmem:[#allocation2 + $0x38] sm:$0xff]
  %v1120 = vld [vmem:[#allocation2] sm:$0xff]
  %v1121 = vsel %vm361, %v1119, %v1120
  %1122 = vrot.lane.b32.xlu0 %v1112, 32
  %v1123 = vpop.permute.xlu0 %1122
  %v1124 = vsel %vm174, %v1123, 0
  %1126 = vmatprep.subr.mxu0 0.0
  %1127 = vmatpush1.msra.mxu0 %v343
  %1128 = vmatprep.subr.mxu0 0.0
  %1129 = vmatpush1.msra.mxu0 %v344
  %1130 = vmatprep.subr.mxu0 0.0
  %1131 = vmatpush1.msra.mxu0 %v345
  %1132 = vmatprep.subr.mxu0 0.0
  %1133 = vmatpush1.msra.mxu0 %v346
  %1134 = vmatprep.subr.mxu0 0.0
  %1135 = vmatpush1.msra.mxu0 0.0
  %1136 = vmatprep.subr.mxu0 0.0
  %1137 = vmatpush1.msra.mxu0 0.0
  %1138 = vmatprep.subr.mxu0 0.0
  %1139 = vmatpush1.msra.mxu0 0.0
  %1140 = vmatprep.subr.mxu0 0.0
  %1141 = vmatpush1.msra.mxu0 0.0
  %1142 = vmatprep.subr.mxu0 0.0
  %1143 = vmatpush1.msra.mxu0 0.0
  %1144 = vmatprep.subr.mxu0 0.0
  %1145 = vmatpush1.msra.mxu0 0.0
  %1146 = vmatprep.subr.mxu0 0.0
  %1147 = vmatpush1.msra.mxu0 0.0
  %1148 = vmatprep.subr.mxu0 0.0
  %1149 = vmatpush1.msra.mxu0 0.0
  %1150 = vmatprep.subr.mxu0 0.0
  %1151 = vmatpush1.msra.mxu0 0.0
  %1152 = vmatprep.subr.mxu0 0.0
  %1153 = vmatpush1.msra.mxu0 0.0
  %1154 = vmatprep.subr.mxu0 0.0
  %1155 = vmatpush1.msra.mxu0 0.0
  %1156 = vmatprep.subr.mxu0 0.0
  %1157 = vmatpush1.msra.mxu0 0.0
  %1158 = vmatprep.subr.mxu0 0.0
  %1159 = vmatpush1.msra.mxu0 0.0
  %1160 = vmatprep.subr.mxu0 0.0
  %1161 = vmatpush1.msra.mxu0 0.0
  %1162 = vmatprep.subr.mxu0 0.0
  %1163 = vmatpush1.msra.mxu0 0.0
  %1164 = vmatprep.subr.mxu0 0.0
  %1165 = vmatpush1.msra.mxu0 0.0
  %1166 = vmatprep.subr.mxu0 0.0
  %1167 = vmatpush1.msra.mxu0 0.0
  %1168 = vmatprep.subr.mxu0 0.0
  %1169 = vmatpush1.msra.mxu0 0.0
  %1170 = vmatprep.subr.mxu0 0.0
  %1171 = vmatpush1.msra.mxu0 0.0
  %1172 = vmatprep.subr.mxu0 0.0
  %1173 = vmatpush1.msra.mxu0 0.0
  %1174 = vmatprep.subr.mxu0 0.0
  %1175 = vmatpush1.msra.mxu0 0.0
  %1176 = vmatprep.subr.mxu0 0.0
  %1177 = vmatpush1.msra.mxu0 0.0
  %1178 = vmatprep.subr.mxu0 0.0
  %1179 = vmatpush1.msra.mxu0 0.0
  %1180 = vmatprep.subr.mxu0 0.0
  %1181 = vmatpush1.msra.mxu0 0.0
  %1182 = vmatprep.subr.mxu0 0.0
  %1183 = vmatpush1.msra.mxu0 0.0
  %1184 = vmatprep.subr.mxu0 0.0
  %1185 = vmatpush1.msra.mxu0 0.0
  %1186 = vmatprep.subr.mxu0 0.0
  %1187 = vmatpush1.msra.mxu0 0.0
  %1188 = vmatprep.subr.mxu0 0.0
  %1189 = vmatpush1.msra.mxu0 0.0
  %1190 = vmatprep.mubr.f32.mxu0 0.0
  %1191 = vmatmul.mubr.f32.gmra.mrb[0].mxu0 %v1124
  %v1192 = vpop.f32.mrb[0].mxu0
  %v1193 = vadd.f32 0.0, %v1192
  %v1194 = vpop.f32.mrb[0].mxu0
  %1195 = vdwg.mxu0
  %v1196 = vadd.f32 %v1121, %v1193
  %v1197 = vxor.u32 %v1196, 2147483648
  %v1198 = vmul.f32 %v1197, 1.442695
  %v1199 = vpow.pop %v1198
  %v1200 = vadd.f32 %v1199, 1.0
  %v1201 = vrcp.pop %v1200
  %v1202 = vmul.f32 1.0, %v1201
  %v1203 = vtanh.pop %v1196
  %v1204 = vmul.f32 %v1202, %v1106
  %1206 = vrot.lane.b32.xlu0 %v1203, 64
  %v1207 = vpop.permute.xlu0 %1206
  %v1209 = vmul.f32 %v1202, %v1207
  %1211 = vrot.lane.b32.xlu0 %v1209, 32
  %v1212 = vpop.permute.xlu0 %1211
  %v1214 = vadd.f32 %v1204, %v1212
  %v1215 = vtanh.pop %v1214
  %1217 = vrot.lane.b32.xlu0 %v1215, 64
  %v1218 = vpop.permute.xlu0 %1217
  %v1220 = vmul.f32 %v1202, %v1218
  %1222 = vrot.lane.b32.xlu0 %v1220, 64
  %v1223 = vpop.permute.xlu0 %1222
  %1225 = vst.msk [vmem:[%s6 + $0x38] sm:$0xff] %vm467, %v1223
  %1226 = vst.msk [vmem:[%s6] sm:$0xff] %vm469, %v1223
  // Predicated region
  $region26: #{context_encoder_forward.3} parent=0 // pred_check
    _
  $region27: #{context_encoder_forward.3} parent=0 // pred_check_branch
    %1228 = sbr.rel (0) target = $region29
  $region28: #{context_encoder_forward.3} parent=0 // pred_region
    _
  $region29: #{context_encoder_forward.3} parent=0 // pred_fallthru
    _
  // Predicated region
  $region30: #{context_encoder_forward.3} parent=0 // pred_check
    _
  $region31: #{context_encoder_forward.3} parent=0 // pred_check_branch
    %1230 = sbr.rel (0) target = $region33
  $region32: #{context_encoder_forward.3} parent=0 // pred_region
    _
  $region33: #{context_encoder_forward.3} parent=0 // pred_fallthru
    _

// kernel: context_encoder_forward.2
$region0: #{context_encoder_forward.2}
  #allocation0 [shape = 'u32[]', space=smem, size = 0x4, offset = 0x4, fixed_abs, tag = 'smem constant byte address 0x4 - core index']
  #allocation1 [shape = 'u32[144,128]{1,0:T(1,128)}', space=vmem, size = 0x12000, scoped, tag = 'internal scratch']
  #allocation2 [shape = 'f32[64,128]{1,0:T(8,128)}', space=vmem, size = 0x8000, scoped, tag = 'scratch operand']
  %s0 = inlined_call_operand.vmem [shape: f32[64,24], index: 0, kind: input, shape index: {}]
  %s1 = inlined_call_operand.vmem [shape: f32[64,8], index: 1, kind: input, shape index: {}]
  %s2 = inlined_call_operand.vmem [shape: f32[24,128], index: 2, kind: input, shape index: {}]
  %s3 = inlined_call_operand.vmem [shape: f32[8,128], index: 3, kind: input, shape index: {}]
  %s4 = inlined_call_operand.vmem [shape: f32[32,128], index: 4, kind: input, shape index: {}]
  %s5 = inlined_call_operand.vmem [shape: f32[1,128], index: 5, kind: input, shape index: {}]
  %s6 = inlined_call_operand.vmem [shape: f32[64,32], index: 6, kind: output, shape index: {}]
  %s7 = sld [smem:[#allocation0]]
  $region34: #{context_encoder_forward.2} parent=0
    _
  %s9 = ssub.s32 1, %s7
  %s10 = scalar_select 0, %s9, %s7
  // Predicated region
  $region2: #{context_encoder_forward.2} parent=0 // pred_check
    _
  $region3: #{context_encoder_forward.2} parent=0 // pred_check_branch
    %12 = sbr.rel (0) target = $region5
  $region4: #{context_encoder_forward.2} parent=0 // pred_region
    _
  $region5: #{context_encoder_forward.2} parent=0 // pred_fallthru
    _
  // Predicated region
  $region6: #{context_encoder_forward.2} parent=0 // pred_check
    _
  $region7: #{context_encoder_forward.2} parent=0 // pred_check_branch
    %14 = sbr.rel (0) target = $region9
  $region8: #{context_encoder_forward.2} parent=0 // pred_region
    _
  $region9: #{context_encoder_forward.2} parent=0 // pred_fallthru
    _
  // Predicated region
  $region10: #{context_encoder_forward.2} parent=0 // pred_check
    _
  $region11: #{context_encoder_forward.2} parent=0 // pred_check_branch
    %16 = sbr.rel (0) target = $region13
  $region12: #{context_encoder_forward.2} parent=0 // pred_region
    _
  $region13: #{context_encoder_forward.2} parent=0 // pred_fallthru
    _
  // Predicated region
  $region14: #{context_encoder_forward.2} parent=0 // pred_check
    _
  $region15: #{context_encoder_forward.2} parent=0 // pred_check_branch
    %18 = sbr.rel (0) target = $region17
  $region16: #{context_encoder_forward.2} parent=0 // pred_region
    _
  $region17: #{context_encoder_forward.2} parent=0 // pred_fallthru
    _
  // Predicated region
  $region18: #{context_encoder_forward.2} parent=0 // pred_check
    _
  $region19: #{context_encoder_forward.2} parent=0 // pred_check_branch
    %20 = sbr.rel (0) target = $region21
  $region20: #{context_encoder_forward.2} parent=0 // pred_region
    _
  $region21: #{context_encoder_forward.2} parent=0 // pred_fallthru
    _
  // Predicated region
  $region22: #{context_encoder_forward.2} parent=0 // pred_check
    _
  $region23: #{context_encoder_forward.2} parent=0 // pred_check_branch
    %22 = sbr.rel (0) target = $region25
  $region24: #{context_encoder_forward.2} parent=0 // pred_region
    _
  $region25: #{context_encoder_forward.2} parent=0 // pred_fallthru
    _
  %v23 = vld [vmem:[%s0] sm:$0xff]
  %v24 = vld [vmem:[%s0 + $0x8] sm:$0xff]
  %v25 = vld [vmem:[%s0 + $0x10] sm:$0xff]
  %v26 = vld [vmem:[%s0 + $0x18] sm:$0xff]
  %v27 = vld [vmem:[%s0 + $0x20] sm:$0xff]
  %v28 = vld [vmem:[%s0 + $0x28] sm:$0xff]
  %v29 = vld [vmem:[%s0 + $0x30] sm:$0xff]
  %v30 = vld [vmem:[%s0 + $0x38] sm:$0xff]
  %v31 = vld [vmem:[%s2] sm:$0xff]
  %v32 = vld [vmem:[%s2 + $0x8] sm:$0xff]
  %v33 = vld [vmem:[%s2 + $0x10] sm:$0xff]
  %v34 = vld [vmem:[%s1] sm:$0xff]
  %v35 = vld [vmem:[%s1 + $0x8] sm:$0xff]
  %v36 = vld [vmem:[%s1 + $0x10] sm:$0xff]
  %v37 = vld [vmem:[%s1 + $0x18] sm:$0xff]
  %v38 = vld [vmem:[%s1 + $0x20] sm:$0xff]
  %v39 = vld [vmem:[%s1 + $0x28] sm:$0xff]
  %v40 = vld [vmem:[%s1 + $0x30] sm:$0xff]
  %v41 = vld [vmem:[%s1 + $0x38] sm:$0xff]
  %v42 = vld [vmem:[%s3] sm:$0xff]
  %vm43 = vcmask 64512
  %v45 = vsel %vm43, %v34, 0
  %v48 = vsel %vm43, %v35, 0
  %v51 = vsel %vm43, %v36, 0
  %v54 = vsel %vm43, %v37, 0
  %v57 = vsel %vm43, %v38, 0
  %v60 = vsel %vm43, %v39, 0
  %v63 = vsel %vm43, %v40, 0
  %v66 = vsel %vm43, %v41, 0
  %68 = vmatprep.subr.mxu0 0.0
  %69 = vmatpush1.msra.mxu0 %v42
  %70 = vmatprep.subr.mxu0 0.0
  %71 = vmatpush1.msra.mxu0 0.0
  %72 = vmatprep.subr.mxu0 0.0
  %73 = vmatpush1.msra.mxu0 0.0
  %74 = vmatprep.subr.mxu0 0.0
  %75 = vmatpush1.msra.mxu0 0.0
  %76 = vmatprep.subr.mxu0 0.0
  %77 = vmatpush1.msra.mxu0 0.0
  %78 = vmatprep.subr.mxu0 0.0
  %79 = vmatpush1.msra.mxu0 0.0
  %80 = vmatprep.subr.mxu0 0.0
  %81 = vmatpush1.msra.mxu0 0.0
  %82 = vmatprep.subr.mxu0 0.0
  %83 = vmatpush1.msra.mxu0 0.0
  %84 = vmatprep.subr.mxu0 0.0
  %85 = vmatpush1.msra.mxu0 0.0
  %86 = vmatprep.subr.mxu0 0.0
  %87 = vmatpush1.msra.mxu0 0.0
  %88 = vmatprep.subr.mxu0 0.0
  %89 = vmatpush1.msra.mxu0 0.0
  %90 = vmatprep.subr.mxu0 0.0
  %91 = vmatpush1.msra.mxu0 0.0
  %92 = vmatprep.subr.mxu0 0.0
  %93 = vmatpush1.msra.mxu0 0.0
  %94 = vmatprep.subr.mxu0 0.0
  %95 = vmatpush1.msra.mxu0 0.0
  %96 = vmatprep.subr.mxu0 0.0
  %97 = vmatpush1.msra.mxu0 0.0
  %98 = vmatprep.subr.mxu0 0.0
  %99 = vmatpush1.msra.mxu0 0.0
  %100 = vmatprep.subr.mxu0 0.0
  %101 = vmatpush1.msra.mxu0 0.0
  %102 = vmatprep.subr.mxu0 0.0
  %103 = vmatpush1.msra.mxu0 0.0
  %104 = vmatprep.subr.mxu0 0.0
  %105 = vmatpush1.msra.mxu0 0.0
  %106 = vmatprep.subr.mxu0 0.0
  %107 = vmatpush1.msra.mxu0 0.0
  %108 = vmatprep.subr.mxu0 0.0
  %109 = vmatpush1.msra.mxu0 0.0
  %110 = vmatprep.subr.mxu0 0.0
  %111 = vmatpush1.msra.mxu0 0.0
  %112 = vmatprep.subr.mxu0 0.0
  %113 = vmatpush1.msra.mxu0 0.0
  %114 = vmatprep.subr.mxu0 0.0
  %115 = vmatpush1.msra.mxu0 0.0
  %116 = vmatprep.subr.mxu0 0.0
  %117 = vmatpush1.msra.mxu0 0.0
  %118 = vmatprep.subr.mxu0 0.0
  %119 = vmatpush1.msra.mxu0 0.0
  %120 = vmatprep.subr.mxu0 0.0
  %121 = vmatpush1.msra.mxu0 0.0
  %122 = vmatprep.subr.mxu0 0.0
  %123 = vmatpush1.msra.mxu0 0.0
  %124 = vmatprep.subr.mxu0 0.0
  %125 = vmatpush1.msra.mxu0 0.0
  %126 = vmatprep.subr.mxu0 0.0
  %127 = vmatpush1.msra.mxu0 0.0
  %128 = vmatprep.subr.mxu0 0.0
  %129 = vmatpush1.msra.mxu0 0.0
  %130 = vmatprep.subr.mxu0 0.0
  %131 = vmatpush1.msra.mxu0 0.0
  %132 = vmatprep.mubr.f32.mxu0 0.0
  %133 = vmatmul.mubr.f32.gmra.mrb[0].mxu0 %v45
  %v134 = vpop.f32.mrb[0].mxu0
  %v135 = vadd.f32 0.0, %v134
  %v136 = vpop.f32.mrb[0].mxu0
  %137 = vmatprep.mubr.f32.mxu0 0.0
  %138 = vmatmul.mubr.f32.gmra.mrb[0].mxu0 %v48
  %v139 = vpop.f32.mrb[0].mxu0
  %v140 = vadd.f32 0.0, %v139
  %v141 = vpop.f32.mrb[0].mxu0
  %142 = vmatprep.mubr.f32.mxu0 0.0
  %143 = vmatmul.mubr.f32.gmra.mrb[0].mxu0 %v51
  %v144 = vpop.f32.mrb[0].mxu0
  %v145 = vadd.f32 0.0, %v144
  %v146 = vpop.f32.mrb[0].mxu0
  %147 = vmatprep.mubr.f32.mxu0 0.0
  %148 = vmatmul.mubr.f32.gmra.mrb[0].mxu0 %v54
  %v149 = vpop.f32.mrb[0].mxu0
  %v150 = vadd.f32 0.0, %v149
  %v151 = vpop.f32.mrb[0].mxu0
  %152 = vmatprep.mubr.f32.mxu0 0.0
  %153 = vmatmul.mubr.f32.gmra.mrb[0].mxu0 %v57
  %v154 = vpop.f32.mrb[0].mxu0
  %v155 = vadd.f32 0.0, %v154
  %v156 = vpop.f32.mrb[0].mxu0
  %157 = vmatprep.mubr.f32.mxu0 0.0
  %158 = vmatmul.mubr.f32.gmra.mrb[0].mxu0 %v60
  %v159 = vpop.f32.mrb[0].mxu0
  %v160 = vadd.f32 0.0, %v159
  %v161 = vpop.f32.mrb[0].mxu0
  %162 = vmatprep.mubr.f32.mxu0 0.0
  %163 = vmatmul.mubr.f32.gmra.mrb[0].mxu0 %v63
  %v164 = vpop.f32.mrb[0].mxu0
  %v165 = vadd.f32 0.0, %v164
  %v166 = vpop.f32.mrb[0].mxu0
  %167 = vmatprep.mubr.f32.mxu0 0.0
  %168 = vmatmul.mubr.f32.gmra.mrb[0].mxu0 %v66
  %v169 = vpop.f32.mrb[0].mxu0
  %v170 = vadd.f32 0.0, %v169
  %v171 = vpop.f32.mrb[0].mxu0
  %172 = vdwg.mxu0
  %vm173 = vcmask 195584
  %v175 = vsel %vm173, %v23, 0
  %v178 = vsel %vm173, %v24, 0
  %v181 = vsel %vm173, %v25, 0
  %v184 = vsel %vm173, %v26, 0
  %v187 = vsel %vm173, %v27, 0
  %v190 = vsel %vm173, %v28, 0
  %v193 = vsel %vm173, %v29, 0
  %v196 = vsel %vm173, %v30, 0
  %198 = vmatprep.subr.mxu0 0.0
  %199 = vmatpush1.msra.mxu0 %v31
  %200 = vmatprep.subr.mxu0 0.0
  %201 = vmatpush1.msra.mxu0 %v32
  %202 = vmatprep.subr.mxu0 0.0
  %203 = vmatpush1.msra.mxu0 %v33
  %204 = vmatprep.subr.mxu0 0.0
  %205 = vmatpush1.msra.mxu0 0.0
  %206 = vmatprep.subr.mxu0 0.0
  %207 = vmatpush1.msra.mxu0 0.0
  %208 = vmatprep.subr.mxu0 0.0
  %209 = vmatpush1.msra.mxu0 0.0
  %210 = vmatprep.subr.mxu0 0.0
  %211 = vmatpush1.msra.mxu0 0.0
  %212 = vmatprep.subr.mxu0 0.0
  %213 = vmatpush1.msra.mxu0 0.0
  %214 = vmatprep.subr.mxu0 0.0
  %215 = vmatpush1.msra.mxu0 0.0
  %216 = vmatprep.subr.mxu0 0.0
  %217 = vmatpush1.msra.mxu0 0.0
  %218 = vmatprep.subr.mxu0 0.0
  %219 = vmatpush1.msra.mxu0 0.0
  %220 = vmatprep.subr.mxu0 0.0
  %221 = vmatpush1.msra.mxu0 0.0
  %222 = vmatprep.subr.mxu0 0.0
  %223 = vmatpush1.msra.mxu0 0.0
  %224 = vmatprep.subr.mxu0 0.0
  %225 = vmatpush1.msra.mxu0 0.0
  %226 = vmatprep.subr.mxu0 0.0
  %227 = vmatpush1.msra.mxu0 0.0
  %228 = vmatprep.subr.mxu0 0.0
  %229 = vmatpush1.msra.mxu0 0.0
  %230 = vmatprep.subr.mxu0 0.0
  %231 = vmatpush1.msra.mxu0 0.0
  %232 = vmatprep.subr.mxu0 0.0
  %233 = vmatpush1.msra.mxu0 0.0
  %234 = vmatprep.subr.mxu0 0.0
  %235 = vmatpush1.msra.mxu0 0.0
  %236 = vmatprep.subr.mxu0 0.0
  %237 = vmatpush1.msra.mxu0 0.0
  %238 = vmatprep.subr.mxu0 0.0
  %239 = vmatpush1.msra.mxu0 0.0
  %240 = vmatprep.subr.mxu0 0.0
  %241 = vmatpush1.msra.mxu0 0.0
  %242 = vmatprep.subr.mxu0 0.0
  %243 = vmatpush1.msra.mxu0 0.0
  %244 = vmatprep.subr.mxu0 0.0
  %245 = vmatpush1.msra.mxu0 0.0
  %246 = vmatprep.subr.mxu0 0.0
  %247 = vmatpush1.msra.mxu0 0.0
  %248 = vmatprep.subr.mxu0 0.0
  %249 = vmatpush1.msra.mxu0 0.0
  %250 = vmatprep.subr.mxu0 0.0
  %251 = vmatpush1.msra.mxu0 0.0
  %252 = vmatprep.subr.mxu0 0.0
  %253 = vmatpush1.msra.mxu0 0.0
  %254 = vmatprep.subr.mxu0 0.0
  %255 = vmatpush1.msra.mxu0 0.0
  %256 = vmatprep.subr.mxu0 0.0
  %257 = vmatpush1.msra.mxu0 0.0
  %258 = vmatprep.subr.mxu0 0.0
  %259 = vmatpush1.msra.mxu0 0.0
  %260 = vmatprep.subr.mxu0 0.0
  %261 = vmatpush1.msra.mxu0 0.0
  %262 = vmatprep.mubr.f32.mxu0 0.0
  %263 = vmatmul.mubr.f32.gmra.mrb[0].mxu0 %v175
  %v264 = vpop.f32.mrb[0].mxu0
  %v265 = vadd.f32 %v135, %v264
  %v266 = vpop.f32.mrb[0].mxu0
  %267 = vmatprep.mubr.f32.mxu0 0.0
  %268 = vmatmul.mubr.f32.gmra.mrb[0].mxu0 %v178
  %v269 = vpop.f32.mrb[0].mxu0
  %v270 = vadd.f32 %v140, %v269
  %v271 = vpop.f32.mrb[0].mxu0
  %272 = vmatprep.mubr.f32.mxu0 0.0
  %273 = vmatmul.mubr.f32.gmra.mrb[0].mxu0 %v181
  %v274 = vpop.f32.mrb[0].mxu0
  %v275 = vadd.f32 %v145, %v274
  %v276 = vpop.f32.mrb[0].mxu0
  %277 = vmatprep.mubr.f32.mxu0 0.0
  %278 = vmatmul.mubr.f32.gmra.mrb[0].mxu0 %v184
  %v279 = vpop.f32.mrb[0].mxu0
  %v280 = vadd.f32 %v150, %v279
  %v281 = vpop.f32.mrb[0].mxu0
  %282 = vmatprep.mubr.f32.mxu0 0.0
  %283 = vmatmul.mubr.f32.gmra.mrb[0].mxu0 %v187
  %v284 = vpop.f32.mrb[0].mxu0
  %v285 = vadd.f32 %v155, %v284
  %v286 = vpop.f32.mrb[0].mxu0
  %287 = vmatprep.mubr.f32.mxu0 0.0
  %288 = vmatmul.mubr.f32.gmra.mrb[0].mxu0 %v190
  %v289 = vpop.f32.mrb[0].mxu0
  %v290 = vadd.f32 %v160, %v289
  %v291 = vpop.f32.mrb[0].mxu0
  %292 = vmatprep.mubr.f32.mxu0 0.0
  %293 = vmatmul.mubr.f32.gmra.mrb[0].mxu0 %v193
  %v294 = vpop.f32.mrb[0].mxu0
  %v295 = vadd.f32 %v165, %v294
  %v296 = vpop.f32.mrb[0].mxu0
  %297 = vmatprep.mubr.f32.mxu0 0.0
  %298 = vmatmul.mubr.f32.gmra.mrb[0].mxu0 %v196
  %v299 = vpop.f32.mrb[0].mxu0
  %v300 = vadd.f32 %v170, %v299
  %v301 = vpop.f32.mrb[0].mxu0
  %302 = vdwg.mxu0
  %v303 = vld [vmem:[%s5] sm:$0x1]
  %v305 = vlaneseq
  %v306 = vshrl.u32 %v305, 7
  %v307 = vsub.s32 0, %v306
  %v308 = vrot.slane %v303, %v307
  %v310 = vadd.f32 %v265, %v308
  %v311 = vadd.f32 %v270, %v308
  %v312 = vadd.f32 %v275, %v308
  %v313 = vadd.f32 %v280, %v308
  %v314 = vadd.f32 %v285, %v308
  %v315 = vadd.f32 %v290, %v308
  %v316 = vadd.f32 %v295, %v308
  %v317 = vadd.f32 %v300, %v308
  %318 = vst [vmem:[#allocation2] sm:$0xff] %v310
  %319 = vst [vmem:[#allocation2 + $0x8] sm:$0xff] %v311
  %320 = vst [vmem:[#allocation2 + $0x10] sm:$0xff] %v312
  %321 = vst [vmem:[#allocation2 + $0x18] sm:$0xff] %v313
  %322 = vst [vmem:[#allocation2 + $0x20] sm:$0xff] %v314
  %323 = vst [vmem:[#allocation2 + $0x28] sm:$0xff] %v315
  %324 = vst [vmem:[#allocation2 + $0x30] sm:$0xff] %v316
  %325 = vst [vmem:[#allocation2 + $0x38] sm:$0xff] %v317
  %v326 = vld [vmem:[%s4] sm:$0xff]
  %v327 = vld [vmem:[%s4 + $0x8] sm:$0xff]
  %v328 = vld [vmem:[%s4 + $0x10] sm:$0xff]
  %v329 = vld [vmem:[%s4 + $0x18] sm:$0xff]
  %v330 = vlaneseq
  %v331 = vand.u32 %v330, 127
  %vm332 = vcmp.lt.s32.totalorder %v331, 0
  %v333 = vsub.s32 0, %v331
  %v334 = vsel %vm332, %v333, %v331
  %v335 = vshrl.u32 %v334, 5
  %v336 = vand.u32 %v334, 31
  %v337 = vsub.s32 0, %v336
  %v338 = vsel %vm332, %v337, %v336
  %vm339 = vcmp.ne.s32.totalorder %v338, 0
  %vm340 = vcmp.lt.s32.totalorder %v338, 0
  %vm341 = vmand %vm340, %vm339
  %v342 = vadd.s32 %v338, 32
  %v343 = vsel %vm341, %v342, %v338
  %vm344 = vcmp.lt.s32.totalorder %v343, 16
  %v345 = vld [vmem:[#allocation2] sm:$0xff]
  %v346 = vld [vmem:[#allocation2 + $0x38] sm:$0xff]
  %v347 = vsel %vm344, %v345, %v346
  %vm348 = vcmask 261120
  %v350 = vsel %vm348, 0.0, 0
  %352 = vmatprep.subr.mxu0 0.0
  %353 = vmatpush1.msra.mxu0 %v326
  %354 = vmatprep.subr.mxu0 0.0
  %355 = vmatpush1.msra.mxu0 %v327
  %356 = vmatprep.subr.mxu0 0.0
  %357 = vmatpush1.msra.mxu0 %v328
  %358 = vmatprep.subr.mxu0 0.0
  %359 = vmatpush1.msra.mxu0 %v329
  %360 = vmatprep.subr.mxu0 0.0
  %361 = vmatpush1.msra.mxu0 0.0
  %362 = vmatprep.subr.mxu0 0.0
  %363 = vmatpush1.msra.mxu0 0.0
  %364 = vmatprep.subr.mxu0 0.0
  %365 = vmatpush1.msra.mxu0 0.0
  %366 = vmatprep.subr.mxu0 0.0
  %367 = vmatpush1.msra.mxu0 0.0
  %368 = vmatprep.subr.mxu0 0.0
  %369 = vmatpush1.msra.mxu0 0.0
  %370 = vmatprep.subr.mxu0 0.0
  %371 = vmatpush1.msra.mxu0 0.0
  %372 = vmatprep.subr.mxu0 0.0
  %373 = vmatpush1.msra.mxu0 0.0
  %374 = vmatprep.subr.mxu0 0.0
  %375 = vmatpush1.msra.mxu0 0.0
  %376 = vmatprep.subr.mxu0 0.0
  %377 = vmatpush1.msra.mxu0 0.0
  %378 = vmatprep.subr.mxu0 0.0
  %379 = vmatpush1.msra.mxu0 0.0
  %380 = vmatprep.subr.mxu0 0.0
  %381 = vmatpush1.msra.mxu0 0.0
  %382 = vmatprep.subr.mxu0 0.0
  %383 = vmatpush1.msra.mxu0 0.0
  %384 = vmatprep.subr.mxu0 0.0
  %385 = vmatpush1.msra.mxu0 0.0
  %386 = vmatprep.subr.mxu0 0.0
  %387 = vmatpush1.msra.mxu0 0.0
  %388 = vmatprep.subr.mxu0 0.0
  %389 = vmatpush1.msra.mxu0 0.0
  %390 = vmatprep.subr.mxu0 0.0
  %391 = vmatpush1.msra.mxu0 0.0
  %392 = vmatprep.subr.mxu0 0.0
  %393 = vmatpush1.msra.mxu0 0.0
  %394 = vmatprep.subr.mxu0 0.0
  %395 = vmatpush1.msra.mxu0 0.0
  %396 = vmatprep.subr.mxu0 0.0
  %397 = vmatpush1.msra.mxu0 0.0
  %398 = vmatprep.subr.mxu0 0.0
  %399 = vmatpush1.msra.mxu0 0.0
  %400 = vmatprep.subr.mxu0 0.0
  %401 = vmatpush1.msra.mxu0 0.0
  %402 = vmatprep.subr.mxu0 0.0
  %403 = vmatpush1.msra.mxu0 0.0
  %404 = vmatprep.subr.mxu0 0.0
  %405 = vmatpush1.msra.mxu0 0.0
  %406 = vmatprep.subr.mxu0 0.0
  %407 = vmatpush1.msra.mxu0 0.0
  %408 = vmatprep.subr.mxu0 0.0
  %409 = vmatpush1.msra.mxu0 0.0
  %410 = vmatprep.subr.mxu0 0.0
  %411 = vmatpush1.msra.mxu0 0.0
  %412 = vmatprep.subr.mxu0 0.0
  %413 = vmatpush1.msra.mxu0 0.0
  %414 = vmatprep.subr.mxu0 0.0
  %415 = vmatpush1.msra.mxu0 0.0
  %416 = vmatprep.mubr.f32.mxu0 0.0
  %417 = vmatmul.mubr.f32.gmra.mrb[0].mxu0 %v350
  %v418 = vpop.f32.mrb[0].mxu0
  %v419 = vadd.f32 0.0, %v418
  %v420 = vpop.f32.mrb[0].mxu0
  %421 = vdwg.mxu0
  %v422 = vadd.f32 %v347, %v419
  %v423 = vxor.u32 %v422, 2147483648
  %v424 = vmul.f32 %v423, 1.442695
  %v425 = vpow.pop %v424
  %v426 = vadd.f32 %v425, 1.0
  %v427 = vrcp.pop %v426
  %v428 = vmul.f32 1.0, %v427
  %v429 = vtanh.pop %v422
  %v430 = vmul.f32 %v428, 0.0
  %432 = vrot.lane.b32.xlu0 %v429, 64
  %v433 = vpop.permute.xlu0 %432
  %v435 = vmul.f32 %v428, %v433
  %437 = vrot.lane.b32.xlu0 %v435, 32
  %v438 = vpop.permute.xlu0 %437
  %v440 = vadd.f32 %v430, %v438
  %v441 = vtanh.pop %v440
  %443 = vrot.lane.b32.xlu0 %v441, 64
  %v444 = vpop.permute.xlu0 %443
  %v446 = vmul.f32 %v428, %v444
  %448 = vrot.lane.b32.xlu0 %v446, 32
  %v449 = vpop.permute.xlu0 %448
  %vm451 = vcmask 130048
  %452 = vst.msk [vmem:[%s6] sm:$0xff] %vm451, %v449
  %vm453 = vcmask 261248
  %454 = vst.msk [vmem:[%s6 + $0x38] sm:$0xff] %vm453, %v449
  %v455 = vld [vmem:[#allocation2 + $0x8] sm:$0xff]
  %v456 = vld [vmem:[#allocation2 + $0x30] sm:$0xff]
  %v457 = vsel %vm344, %v455, %v456
  %v458 = vsel %vm348, %v449, 0
  %460 = vmatprep.subr.mxu0 0.0
  %461 = vmatpush1.msra.mxu0 %v326
  %462 = vmatprep.subr.mxu0 0.0
  %463 = vmatpush1.msra.mxu0 %v327
  %464 = vmatprep.subr.mxu0 0.0
  %465 = vmatpush1.msra.mxu0 %v328
  %466 = vmatprep.subr.mxu0 0.0
  %467 = vmatpush1.msra.mxu0 %v329
  %468 = vmatprep.subr.mxu0 0.0
  %469 = vmatpush1.msra.mxu0 0.0
  %470 = vmatprep.subr.mxu0 0.0
  %471 = vmatpush1.msra.mxu0 0.0
  %472 = vmatprep.subr.mxu0 0.0
  %473 = vmatpush1.msra.mxu0 0.0
  %474 = vmatprep.subr.mxu0 0.0
  %475 = vmatpush1.msra.mxu0 0.0
  %476 = vmatprep.subr.mxu0 0.0
  %477 = vmatpush1.msra.mxu0 0.0
  %478 = vmatprep.subr.mxu0 0.0
  %479 = vmatpush1.msra.mxu0 0.0
  %480 = vmatprep.subr.mxu0 0.0
  %481 = vmatpush1.msra.mxu0 0.0
  %482 = vmatprep.subr.mxu0 0.0
  %483 = vmatpush1.msra.mxu0 0.0
  %484 = vmatprep.subr.mxu0 0.0
  %485 = vmatpush1.msra.mxu0 0.0
  %486 = vmatprep.subr.mxu0 0.0
  %487 = vmatpush1.msra.mxu0 0.0
  %488 = vmatprep.subr.mxu0 0.0
  %489 = vmatpush1.msra.mxu0 0.0
  %490 = vmatprep.subr.mxu0 0.0
  %491 = vmatpush1.msra.mxu0 0.0
  %492 = vmatprep.subr.mxu0 0.0
  %493 = vmatpush1.msra.mxu0 0.0
  %494 = vmatprep.subr.mxu0 0.0
  %495 = vmatpush1.msra.mxu0 0.0
  %496 = vmatprep.subr.mxu0 0.0
  %497 = vmatpush1.msra.mxu0 0.0
  %498 = vmatprep.subr.mxu0 0.0
  %499 = vmatpush1.msra.mxu0 0.0
  %500 = vmatprep.subr.mxu0 0.0
  %501 = vmatpush1.msra.mxu0 0.0
  %502 = vmatprep.subr.mxu0 0.0
  %503 = vmatpush1.msra.mxu0 0.0
  %504 = vmatprep.subr.mxu0 0.0
  %505 = vmatpush1.msra.mxu0 0.0
  %506 = vmatprep.subr.mxu0 0.0
  %507 = vmatpush1.msra.mxu0 0.0
  %508 = vmatprep.subr.mxu0 0.0
  %509 = vmatpush1.msra.mxu0 0.0
  %510 = vmatprep.subr.mxu0 0.0
  %511 = vmatpush1.msra.mxu0 0.0
  %512 = vmatprep.subr.mxu0 0.0
  %513 = vmatpush1.msra.mxu0 0.0
  %514 = vmatprep.subr.mxu0 0.0
  %515 = vmatpush1.msra.mxu0 0.0
  %516 = vmatprep.subr.mxu0 0.0
  %517 = vmatpush1.msra.mxu0 0.0
  %518 = vmatprep.subr.mxu0 0.0
  %519 = vmatpush1.msra.mxu0 0.0
  %520 = vmatprep.subr.mxu0 0.0
  %521 = vmatpush1.msra.mxu0 0.0
  %522 = vmatprep.subr.mxu0 0.0
  %523 = vmatpush1.msra.mxu0 0.0
  %524 = vmatprep.mubr.f32.mxu0 0.0
  %525 = vmatmul.mubr.f32.gmra.mrb[0].mxu0 %v458
  %v526 = vpop.f32.mrb[0].mxu0
  %v527 = vadd.f32 0.0, %v526
  %v528 = vpop.f32.mrb[0].mxu0
  %529 = vdwg.mxu0
  %v530 = vadd.f32 %v457, %v527
  %v531 = vxor.u32 %v530, 2147483648
  %v532 = vmul.f32 %v531, 1.442695
  %v533 = vpow.pop %v532
  %v534 = vadd.f32 %v533, 1.0
  %v535 = vrcp.pop %v534
  %v536 = vmul.f32 1.0, %v535
  %v537 = vtanh.pop %v530
  %v538 = vmul.f32 %v536, %v440
  %540 = vrot.lane.b32.xlu0 %v537, 64
  %v541 = vpop.permute.xlu0 %540
  %v543 = vmul.f32 %v536, %v541
  %545 = vrot.lane.b32.xlu0 %v543, 32
  %v546 = vpop.permute.xlu0 %545
  %v548 = vadd.f32 %v538, %v546
  %v549 = vtanh.pop %v548
  %551 = vrot.lane.b32.xlu0 %v549, 64
  %v552 = vpop.permute.xlu0 %551
  %v554 = vmul.f32 %v536, %v552
  %556 = vrot.lane.b32.xlu0 %v554, 32
  %v557 = vpop.permute.xlu0 %556
  %559 = vst.msk [vmem:[%s6 + $0x8] sm:$0xff] %vm451, %v557
  %560 = vst.msk [vmem:[%s6 + $0x30] sm:$0xff] %vm453, %v557
  %v561 = vld [vmem:[#allocation2 + $0x10] sm:$0xff]
  %v562 = vld [vmem:[#allocation2 + $0x28] sm:$0xff]
  %v563 = vsel %vm344, %v561, %v562
  %v564 = vsel %vm348, %v557, 0
  %566 = vmatprep.subr.mxu0 0.0
  %567 = vmatpush1.msra.mxu0 %v326
  %568 = vmatprep.subr.mxu0 0.0
  %569 = vmatpush1.msra.mxu0 %v327
  %570 = vmatprep.subr.mxu0 0.0
  %571 = vmatpush1.msra.mxu0 %v328
  %572 = vmatprep.subr.mxu0 0.0
  %573 = vmatpush1.msra.mxu0 %v329
  %574 = vmatprep.subr.mxu0 0.0
  %575 = vmatpush1.msra.mxu0 0.0
  %576 = vmatprep.subr.mxu0 0.0
  %577 = vmatpush1.msra.mxu0 0.0
  %578 = vmatprep.subr.mxu0 0.0
  %579 = vmatpush1.msra.mxu0 0.0
  %580 = vmatprep.subr.mxu0 0.0
  %581 = vmatpush1.msra.mxu0 0.0
  %582 = vmatprep.subr.mxu0 0.0
  %583 = vmatpush1.msra.mxu0 0.0
  %584 = vmatprep.subr.mxu0 0.0
  %585 = vmatpush1.msra.mxu0 0.0
  %586 = vmatprep.subr.mxu0 0.0
  %587 = vmatpush1.msra.mxu0 0.0
  %588 = vmatprep.subr.mxu0 0.0
  %589 = vmatpush1.msra.mxu0 0.0
  %590 = vmatprep.subr.mxu0 0.0
  %591 = vmatpush1.msra.mxu0 0.0
  %592 = vmatprep.subr.mxu0 0.0
  %593 = vmatpush1.msra.mxu0 0.0
  %594 = vmatprep.subr.mxu0 0.0
  %595 = vmatpush1.msra.mxu0 0.0
  %596 = vmatprep.subr.mxu0 0.0
  %597 = vmatpush1.msra.mxu0 0.0
  %598 = vmatprep.subr.mxu0 0.0
  %599 = vmatpush1.msra.mxu0 0.0
  %600 = vmatprep.subr.mxu0 0.0
  %601 = vmatpush1.msra.mxu0 0.0
  %602 = vmatprep.subr.mxu0 0.0
  %603 = vmatpush1.msra.mxu0 0.0
  %604 = vmatprep.subr.mxu0 0.0
  %605 = vmatpush1.msra.mxu0 0.0
  %606 = vmatprep.subr.mxu0 0.0
  %607 = vmatpush1.msra.mxu0 0.0
  %608 = vmatprep.subr.mxu0 0.0
  %609 = vmatpush1.msra.mxu0 0.0
  %610 = vmatprep.subr.mxu0 0.0
  %611 = vmatpush1.msra.mxu0 0.0
  %612 = vmatprep.subr.mxu0 0.0
  %613 = vmatpush1.msra.mxu0 0.0
  %614 = vmatprep.subr.mxu0 0.0
  %615 = vmatpush1.msra.mxu0 0.0
  %616 = vmatprep.subr.mxu0 0.0
  %617 = vmatpush1.msra.mxu0 0.0
  %618 = vmatprep.subr.mxu0 0.0
  %619 = vmatpush1.msra.mxu0 0.0
  %620 = vmatprep.subr.mxu0 0.0
  %621 = vmatpush1.msra.mxu0 0.0
  %622 = vmatprep.subr.mxu0 0.0
  %623 = vmatpush1.msra.mxu0 0.0
  %624 = vmatprep.subr.mxu0 0.0
  %625 = vmatpush1.msra.mxu0 0.0
  %626 = vmatprep.subr.mxu0 0.0
  %627 = vmatpush1.msra.mxu0 0.0
  %628 = vmatprep.subr.mxu0 0.0
  %629 = vmatpush1.msra.mxu0 0.0
  %630 = vmatprep.mubr.f32.mxu0 0.0
  %631 = vmatmul.mubr.f32.gmra.mrb[0].mxu0 %v564
  %v632 = vpop.f32.mrb[0].mxu0
  %v633 = vadd.f32 0.0, %v632
  %v634 = vpop.f32.mrb[0].mxu0
  %635 = vdwg.mxu0
  %v636 = vadd.f32 %v563, %v633
  %v637 = vxor.u32 %v636, 2147483648
  %v638 = vmul.f32 %v637, 1.442695
  %v639 = vpow.pop %v638
  %v640 = vadd.f32 %v639, 1.0
  %v641 = vrcp.pop %v640
  %v642 = vmul.f32 1.0, %v641
  %v643 = vtanh.pop %v636
  %v644 = vmul.f32 %v642, %v548
  %646 = vrot.lane.b32.xlu0 %v643, 64
  %v647 = vpop.permute.xlu0 %646
  %v649 = vmul.f32 %v642, %v647
  %651 = vrot.lane.b32.xlu0 %v649, 32
  %v652 = vpop.permute.xlu0 %651
  %v654 = vadd.f32 %v644, %v652
  %v655 = vtanh.pop %v654
  %657 = vrot.lane.b32.xlu0 %v655, 64
  %v658 = vpop.permute.xlu0 %657
  %v660 = vmul.f32 %v642, %v658
  %662 = vrot.lane.b32.xlu0 %v660, 32
  %v663 = vpop.permute.xlu0 %662
  %665 = vst.msk [vmem:[%s6 + $0x10] sm:$0xff] %vm451, %v663
  %666 = vst.msk [vmem:[%s6 + $0x28] sm:$0xff] %vm453, %v663
  %v667 = vld [vmem:[#allocation2 + $0x18] sm:$0xff]
  %v668 = vld [vmem:[#allocation2 + $0x20] sm:$0xff]
  %v669 = vsel %vm344, %v667, %v668
  %v670 = vsel %vm348, %v663, 0
  %672 = vmatprep.subr.mxu0 0.0
  %673 = vmatpush1.msra.mxu0 %v326
  %674 = vmatprep.subr.mxu0 0.0
  %675 = vmatpush1.msra.mxu0 %v327
  %676 = vmatprep.subr.mxu0 0.0
  %677 = vmatpush1.msra.mxu0 %v328
  %678 = vmatprep.subr.mxu0 0.0
  %679 = vmatpush1.msra.mxu0 %v329
  %680 = vmatprep.subr.mxu0 0.0
  %681 = vmatpush1.msra.mxu0 0.0
  %682 = vmatprep.subr.mxu0 0.0
  %683 = vmatpush1.msra.mxu0 0.0
  %684 = vmatprep.subr.mxu0 0.0
  %685 = vmatpush1.msra.mxu0 0.0
  %686 = vmatprep.subr.mxu0 0.0
  %687 = vmatpush1.msra.mxu0 0.0
  %688 = vmatprep.subr.mxu0 0.0
  %689 = vmatpush1.msra.mxu0 0.0
  %690 = vmatprep.subr.mxu0 0.0
  %691 = vmatpush1.msra.mxu0 0.0
  %692 = vmatprep.subr.mxu0 0.0
  %693 = vmatpush1.msra.mxu0 0.0
  %694 = vmatprep.subr.mxu0 0.0
  %695 = vmatpush1.msra.mxu0 0.0
  %696 = vmatprep.subr.mxu0 0.0
  %697 = vmatpush1.msra.mxu0 0.0
  %698 = vmatprep.subr.mxu0 0.0
  %699 = vmatpush1.msra.mxu0 0.0
  %700 = vmatprep.subr.mxu0 0.0
  %701 = vmatpush1.msra.mxu0 0.0
  %702 = vmatprep.subr.mxu0 0.0
  %703 = vmatpush1.msra.mxu0 0.0
  %704 = vmatprep.subr.mxu0 0.0
  %705 = vmatpush1.msra.mxu0 0.0
  %706 = vmatprep.subr.mxu0 0.0
  %707 = vmatpush1.msra.mxu0 0.0
  %708 = vmatprep.subr.mxu0 0.0
  %709 = vmatpush1.msra.mxu0 0.0
  %710 = vmatprep.subr.mxu0 0.0
  %711 = vmatpush1.msra.mxu0 0.0
  %712 = vmatprep.subr.mxu0 0.0
  %713 = vmatpush1.msra.mxu0 0.0
  %714 = vmatprep.subr.mxu0 0.0
  %715 = vmatpush1.msra.mxu0 0.0
  %716 = vmatprep.subr.mxu0 0.0
  %717 = vmatpush1.msra.mxu0 0.0
  %718 = vmatprep.subr.mxu0 0.0
  %719 = vmatpush1.msra.mxu0 0.0
  %720 = vmatprep.subr.mxu0 0.0
  %721 = vmatpush1.msra.mxu0 0.0
  %722 = vmatprep.subr.mxu0 0.0
  %723 = vmatpush1.msra.mxu0 0.0
  %724 = vmatprep.subr.mxu0 0.0
  %725 = vmatpush1.msra.mxu0 0.0
  %726 = vmatprep.subr.mxu0 0.0
  %727 = vmatpush1.msra.mxu0 0.0
  %728 = vmatprep.subr.mxu0 0.0
  %729 = vmatpush1.msra.mxu0 0.0
  %730 = vmatprep.subr.mxu0 0.0
  %731 = vmatpush1.msra.mxu0 0.0
  %732 = vmatprep.subr.mxu0 0.0
  %733 = vmatpush1.msra.mxu0 0.0
  %734 = vmatprep.subr.mxu0 0.0
  %735 = vmatpush1.msra.mxu0 0.0
  %736 = vmatprep.mubr.f32.mxu0 0.0
  %737 = vmatmul.mubr.f32.gmra.mrb[0].mxu0 %v670
  %v738 = vpop.f32.mrb[0].mxu0
  %v739 = vadd.f32 0.0, %v738
  %v740 = vpop.f32.mrb[0].mxu0
  %741 = vdwg.mxu0
  %v742 = vadd.f32 %v669, %v739
  %v743 = vxor.u32 %v742, 2147483648
  %v744 = vmul.f32 %v743, 1.442695
  %v745 = vpow.pop %v744
  %v746 = vadd.f32 %v745, 1.0
  %v747 = vrcp.pop %v746
  %v748 = vmul.f32 1.0, %v747
  %v749 = vtanh.pop %v742
  %v750 = vmul.f32 %v748, %v654
  %752 = vrot.lane.b32.xlu0 %v749, 64
  %v753 = vpop.permute.xlu0 %752
  %v755 = vmul.f32 %v748, %v753
  %757 = vrot.lane.b32.xlu0 %v755, 32
  %v758 = vpop.permute.xlu0 %757
  %v760 = vadd.f32 %v750, %v758
  %v761 = vtanh.pop %v760
  %763 = vrot.lane.b32.xlu0 %v761, 64
  %v764 = vpop.permute.xlu0 %763
  %v766 = vmul.f32 %v748, %v764
  %768 = vrot.lane.b32.xlu0 %v766, 32
  %v769 = vpop.permute.xlu0 %768
  %771 = vst.msk [vmem:[%s6 + $0x18] sm:$0xff] %vm451, %v769
  %772 = vst.msk [vmem:[%s6 + $0x20] sm:$0xff] %vm453, %v769
  %v773 = vld [vmem:[#allocation2 + $0x20] sm:$0xff]
  %v774 = vld [vmem:[#allocation2 + $0x18] sm:$0xff]
  %v775 = vsel %vm344, %v773, %v774
  %v776 = vsel %vm348, %v769, 0
  %778 = vmatprep.subr.mxu0 0.0
  %779 = vmatpush1.msra.mxu0 %v326
  %780 = vmatprep.subr.mxu0 0.0
  %781 = vmatpush1.msra.mxu0 %v327
  %782 = vmatprep.subr.mxu0 0.0
  %783 = vmatpush1.msra.mxu0 %v328
  %784 = vmatprep.subr.mxu0 0.0
  %785 = vmatpush1.msra.mxu0 %v329
  %786 = vmatprep.subr.mxu0 0.0
  %787 = vmatpush1.msra.mxu0 0.0
  %788 = vmatprep.subr.mxu0 0.0
  %789 = vmatpush1.msra.mxu0 0.0
  %790 = vmatprep.subr.mxu0 0.0
  %791 = vmatpush1.msra.mxu0 0.0
  %792 = vmatprep.subr.mxu0 0.0
  %793 = vmatpush1.msra.mxu0 0.0
  %794 = vmatprep.subr.mxu0 0.0
  %795 = vmatpush1.msra.mxu0 0.0
  %796 = vmatprep.subr.mxu0 0.0
  %797 = vmatpush1.msra.mxu0 0.0
  %798 = vmatprep.subr.mxu0 0.0
  %799 = vmatpush1.msra.mxu0 0.0
  %800 = vmatprep.subr.mxu0 0.0
  %801 = vmatpush1.msra.mxu0 0.0
  %802 = vmatprep.subr.mxu0 0.0
  %803 = vmatpush1.msra.mxu0 0.0
  %804 = vmatprep.subr.mxu0 0.0
  %805 = vmatpush1.msra.mxu0 0.0
  %806 = vmatprep.subr.mxu0 0.0
  %807 = vmatpush1.msra.mxu0 0.0
  %808 = vmatprep.subr.mxu0 0.0
  %809 = vmatpush1.msra.mxu0 0.0
  %810 = vmatprep.subr.mxu0 0.0
  %811 = vmatpush1.msra.mxu0 0.0
  %812 = vmatprep.subr.mxu0 0.0
  %813 = vmatpush1.msra.mxu0 0.0
  %814 = vmatprep.subr.mxu0 0.0
  %815 = vmatpush1.msra.mxu0 0.0
  %816 = vmatprep.subr.mxu0 0.0
  %817 = vmatpush1.msra.mxu0 0.0
  %818 = vmatprep.subr.mxu0 0.0
  %819 = vmatpush1.msra.mxu0 0.0
  %820 = vmatprep.subr.mxu0 0.0
  %821 = vmatpush1.msra.mxu0 0.0
  %822 = vmatprep.subr.mxu0 0.0
  %823 = vmatpush1.msra.mxu0 0.0
  %824 = vmatprep.subr.mxu0 0.0
  %825 = vmatpush1.msra.mxu0 0.0
  %826 = vmatprep.subr.mxu0 0.0
  %827 = vmatpush1.msra.mxu0 0.0
  %828 = vmatprep.subr.mxu0 0.0
  %829 = vmatpush1.msra.mxu0 0.0
  %830 = vmatprep.subr.mxu0 0.0
  %831 = vmatpush1.msra.mxu0 0.0
  %832 = vmatprep.subr.mxu0 0.0
  %833 = vmatpush1.msra.mxu0 0.0
  %834 = vmatprep.subr.mxu0 0.0
  %835 = vmatpush1.msra.mxu0 0.0
  %836 = vmatprep.subr.mxu0 0.0
  %837 = vmatpush1.msra.mxu0 0.0
  %838 = vmatprep.subr.mxu0 0.0
  %839 = vmatpush1.msra.mxu0 0.0
  %840 = vmatprep.subr.mxu0 0.0
  %841 = vmatpush1.msra.mxu0 0.0
  %842 = vmatprep.mubr.f32.mxu0 0.0
  %843 = vmatmul.mubr.f32.gmra.mrb[0].mxu0 %v776
  %v844 = vpop.f32.mrb[0].mxu0
  %v845 = vadd.f32 0.0, %v844
  %v846 = vpop.f32.mrb[0].mxu0
  %847 = vdwg.mxu0
  %v848 = vadd.f32 %v775, %v845
  %v849 = vxor.u32 %v848, 2147483648
  %v850 = vmul.f32 %v849, 1.442695
  %v851 = vpow.pop %v850
  %v852 = vadd.f32 %v851, 1.0
  %v853 = vrcp.pop %v852
  %v854 = vmul.f32 1.0, %v853
  %v855 = vtanh.pop %v848
  %v856 = vmul.f32 %v854, %v760
  %858 = vrot.lane.b32.xlu0 %v855, 64
  %v859 = vpop.permute.xlu0 %858
  %v861 = vmul.f32 %v854, %v859
  %863 = vrot.lane.b32.xlu0 %v861, 32
  %v864 = vpop.permute.xlu0 %863
  %v866 = vadd.f32 %v856, %v864
  %v867 = vtanh.pop %v866
  %869 = vrot.lane.b32.xlu0 %v867, 64
  %v870 = vpop.permute.xlu0 %869
  %v872 = vmul.f32 %v854, %v870
  %874 = vrot.lane.b32.xlu0 %v872, 32
  %v875 = vpop.permute.xlu0 %874
  %877 = vst.msk [vmem:[%s6 + $0x20] sm:$0xff] %vm451, %v875
  %878 = vst.msk [vmem:[%s6 + $0x18] sm:$0xff] %vm453, %v875
  %v879 = vld [vmem:[#allocation2 + $0x28] sm:$0xff]
  %v880 = vld [vmem:[#allocation2 + $0x10] sm:$0xff]
  %v881 = vsel %vm344, %v879, %v880
  %v882 = vsel %vm348, %v875, 0
  %884 = vmatprep.subr.mxu0 0.0
  %885 = vmatpush1.msra.mxu0 %v326
  %886 = vmatprep.subr.mxu0 0.0
  %887 = vmatpush1.msra.mxu0 %v327
  %888 = vmatprep.subr.mxu0 0.0
  %889 = vmatpush1.msra.mxu0 %v328
  %890 = vmatprep.subr.mxu0 0.0
  %891 = vmatpush1.msra.mxu0 %v329
  %892 = vmatprep.subr.mxu0 0.0
  %893 = vmatpush1.msra.mxu0 0.0
  %894 = vmatprep.subr.mxu0 0.0
  %895 = vmatpush1.msra.mxu0 0.0
  %896 = vmatprep.subr.mxu0 0.0
  %897 = vmatpush1.msra.mxu0 0.0
  %898 = vmatprep.subr.mxu0 0.0
  %899 = vmatpush1.msra.mxu0 0.0
  %900 = vmatprep.subr.mxu0 0.0
  %901 = vmatpush1.msra.mxu0 0.0
  %902 = vmatprep.subr.mxu0 0.0
  %903 = vmatpush1.msra.mxu0 0.0
  %904 = vmatprep.subr.mxu0 0.0
  %905 = vmatpush1.msra.mxu0 0.0
  %906 = vmatprep.subr.mxu0 0.0
  %907 = vmatpush1.msra.mxu0 0.0
  %908 = vmatprep.subr.mxu0 0.0
  %909 = vmatpush1.msra.mxu0 0.0
  %910 = vmatprep.subr.mxu0 0.0
  %911 = vmatpush1.msra.mxu0 0.0
  %912 = vmatprep.subr.mxu0 0.0
  %913 = vmatpush1.msra.mxu0 0.0
  %914 = vmatprep.subr.mxu0 0.0
  %915 = vmatpush1.msra.mxu0 0.0
  %916 = vmatprep.subr.mxu0 0.0
  %917 = vmatpush1.msra.mxu0 0.0
  %918 = vmatprep.subr.mxu0 0.0
  %919 = vmatpush1.msra.mxu0 0.0
  %920 = vmatprep.subr.mxu0 0.0
  %921 = vmatpush1.msra.mxu0 0.0
  %922 = vmatprep.subr.mxu0 0.0
  %923 = vmatpush1.msra.mxu0 0.0
  %924 = vmatprep.subr.mxu0 0.0
  %925 = vmatpush1.msra.mxu0 0.0
  %926 = vmatprep.subr.mxu0 0.0
  %927 = vmatpush1.msra.mxu0 0.0
  %928 = vmatprep.subr.mxu0 0.0
  %929 = vmatpush1.msra.mxu0 0.0
  %930 = vmatprep.subr.mxu0 0.0
  %931 = vmatpush1.msra.mxu0 0.0
  %932 = vmatprep.subr.mxu0 0.0
  %933 = vmatpush1.msra.mxu0 0.0
  %934 = vmatprep.subr.mxu0 0.0
  %935 = vmatpush1.msra.mxu0 0.0
  %936 = vmatprep.subr.mxu0 0.0
  %937 = vmatpush1.msra.mxu0 0.0
  %938 = vmatprep.subr.mxu0 0.0
  %939 = vmatpush1.msra.mxu0 0.0
  %940 = vmatprep.subr.mxu0 0.0
  %941 = vmatpush1.msra.mxu0 0.0
  %942 = vmatprep.subr.mxu0 0.0
  %943 = vmatpush1.msra.mxu0 0.0
  %944 = vmatprep.subr.mxu0 0.0
  %945 = vmatpush1.msra.mxu0 0.0
  %946 = vmatprep.subr.mxu0 0.0
  %947 = vmatpush1.msra.mxu0 0.0
  %948 = vmatprep.mubr.f32.mxu0 0.0
  %949 = vmatmul.mubr.f32.gmra.mrb[0].mxu0 %v882
  %v950 = vpop.f32.mrb[0].mxu0
  %v951 = vadd.f32 0.0, %v950
  %v952 = vpop.f32.mrb[0].mxu0
  %953 = vdwg.mxu0
  %v954 = vadd.f32 %v881, %v951
  %v955 = vxor.u32 %v954, 2147483648
  %v956 = vmul.f32 %v955, 1.442695
  %v957 = vpow.pop %v956
  %v958 = vadd.f32 %v957, 1.0
  %v959 = vrcp.pop %v958
  %v960 = vmul.f32 1.0, %v959
  %v961 = vtanh.pop %v954
  %v962 = vmul.f32 %v960, %v866
  %964 = vrot.lane.b32.xlu0 %v961, 64
  %v965 = vpop.permute.xlu0 %964
  %v967 = vmul.f32 %v960, %v965
  %969 = vrot.lane.b32.xlu0 %v967, 32
  %v970 = vpop.permute.xlu0 %969
  %v972 = vadd.f32 %v962, %v970
  %v973 = vtanh.pop %v972
  %975 = vrot.lane.b32.xlu0 %v973, 64
  %v976 = vpop.permute.xlu0 %975
  %v978 = vmul.f32 %v960, %v976
  %980 = vrot.lane.b32.xlu0 %v978, 32
  %v981 = vpop.permute.xlu0 %980
  %983 = vst.msk [vmem:[%s6 + $0x28] sm:$0xff] %vm451, %v981
  %984 = vst.msk [vmem:[%s6 + $0x10] sm:$0xff] %vm453, %v981
  %v985 = vld [vmem:[#allocation2 + $0x30] sm:$0xff]
  %v986 = vld [vmem:[#allocation2 + $0x8] sm:$0xff]
  %v987 = vsel %vm344, %v985, %v986
  %v988 = vsel %vm348, %v981, 0
  %990 = vmatprep.subr.mxu0 0.0
  %991 = vmatpush1.msra.mxu0 %v326
  %992 = vmatprep.subr.mxu0 0.0
  %993 = vmatpush1.msra.mxu0 %v327
  %994 = vmatprep.subr.mxu0 0.0
  %995 = vmatpush1.msra.mxu0 %v328
  %996 = vmatprep.subr.mxu0 0.0
  %997 = vmatpush1.msra.mxu0 %v329
  %998 = vmatprep.subr.mxu0 0.0
  %999 = vmatpush1.msra.mxu0 0.0
  %1000 = vmatprep.subr.mxu0 0.0
  %1001 = vmatpush1.msra.mxu0 0.0
  %1002 = vmatprep.subr.mxu0 0.0
  %1003 = vmatpush1.msra.mxu0 0.0
  %1004 = vmatprep.subr.mxu0 0.0
  %1005 = vmatpush1.msra.mxu0 0.0
  %1006 = vmatprep.subr.mxu0 0.0
  %1007 = vmatpush1.msra.mxu0 0.0
  %1008 = vmatprep.subr.mxu0 0.0
  %1009 = vmatpush1.msra.mxu0 0.0
  %1010 = vmatprep.subr.mxu0 0.0
  %1011 = vmatpush1.msra.mxu0 0.0
  %1012 = vmatprep.subr.mxu0 0.0
  %1013 = vmatpush1.msra.mxu0 0.0
  %1014 = vmatprep.subr.mxu0 0.0
  %1015 = vmatpush1.msra.mxu0 0.0
  %1016 = vmatprep.subr.mxu0 0.0
  %1017 = vmatpush1.msra.mxu0 0.0
  %1018 = vmatprep.subr.mxu0 0.0
  %1019 = vmatpush1.msra.mxu0 0.0
  %1020 = vmatprep.subr.mxu0 0.0
  %1021 = vmatpush1.msra.mxu0 0.0
  %1022 = vmatprep.subr.mxu0 0.0
  %1023 = vmatpush1.msra.mxu0 0.0
  %1024 = vmatprep.subr.mxu0 0.0
  %1025 = vmatpush1.msra.mxu0 0.0
  %1026 = vmatprep.subr.mxu0 0.0
  %1027 = vmatpush1.msra.mxu0 0.0
  %1028 = vmatprep.subr.mxu0 0.0
  %1029 = vmatpush1.msra.mxu0 0.0
  %1030 = vmatprep.subr.mxu0 0.0
  %1031 = vmatpush1.msra.mxu0 0.0
  %1032 = vmatprep.subr.mxu0 0.0
  %1033 = vmatpush1.msra.mxu0 0.0
  %1034 = vmatprep.subr.mxu0 0.0
  %1035 = vmatpush1.msra.mxu0 0.0
  %1036 = vmatprep.subr.mxu0 0.0
  %1037 = vmatpush1.msra.mxu0 0.0
  %1038 = vmatprep.subr.mxu0 0.0
  %1039 = vmatpush1.msra.mxu0 0.0
  %1040 = vmatprep.subr.mxu0 0.0
  %1041 = vmatpush1.msra.mxu0 0.0
  %1042 = vmatprep.subr.mxu0 0.0
  %1043 = vmatpush1.msra.mxu0 0.0
  %1044 = vmatprep.subr.mxu0 0.0
  %1045 = vmatpush1.msra.mxu0 0.0
  %1046 = vmatprep.subr.mxu0 0.0
  %1047 = vmatpush1.msra.mxu0 0.0
  %1048 = vmatprep.subr.mxu0 0.0
  %1049 = vmatpush1.msra.mxu0 0.0
  %1050 = vmatprep.subr.mxu0 0.0
  %1051 = vmatpush1.msra.mxu0 0.0
  %1052 = vmatprep.subr.mxu0 0.0
  %1053 = vmatpush1.msra.mxu0 0.0
  %1054 = vmatprep.mubr.f32.mxu0 0.0
  %1055 = vmatmul.mubr.f32.gmra.mrb[0].mxu0 %v988
  %v1056 = vpop.f32.mrb[0].mxu0
  %v1057 = vadd.f32 0.0, %v1056
  %v1058 = vpop.f32.mrb[0].mxu0
  %1059 = vdwg.mxu0
  %v1060 = vadd.f32 %v987, %v1057
  %v1061 = vxor.u32 %v1060, 2147483648
  %v1062 = vmul.f32 %v1061, 1.442695
  %v1063 = vpow.pop %v1062
  %v1064 = vadd.f32 %v1063, 1.0
  %v1065 = vrcp.pop %v1064
  %v1066 = vmul.f32 1.0, %v1065
  %v1067 = vtanh.pop %v1060
  %v1068 = vmul.f32 %v1066, %v972
  %1070 = vrot.lane.b32.xlu0 %v1067, 64
  %v1071 = vpop.permute.xlu0 %1070
  %v1073 = vmul.f32 %v1066, %v1071
  %1075 = vrot.lane.b32.xlu0 %v1073, 32
  %v1076 = vpop.permute.xlu0 %1075
  %v1078 = vadd.f32 %v1068, %v1076
  %v1079 = vtanh.pop %v1078
  %1081 = vrot.lane.b32.xlu0 %v1079, 64
  %v1082 = vpop.permute.xlu0 %1081
  %v1084 = vmul.f32 %v1066, %v1082
  %1086 = vrot.lane.b32.xlu0 %v1084, 32
  %v1087 = vpop.permute.xlu0 %1086
  %1089 = vst.msk [vmem:[%s6 + $0x30] sm:$0xff] %vm451, %v1087
  %1090 = vst.msk [vmem:[%s6 + $0x8] sm:$0xff] %vm453, %v1087
  %v1091 = vld [vmem:[#allocation2 + $0x38] sm:$0xff]
  %v1092 = vld [vmem:[#allocation2] sm:$0xff]
  %v1093 = vsel %vm344, %v1091, %v1092
  %v1094 = vsel %vm348, %v1087, 0
  %1096 = vmatprep.subr.mxu0 0.0
  %1097 = vmatpush1.msra.mxu0 %v326
  %1098 = vmatprep.subr.mxu0 0.0
  %1099 = vmatpush1.msra.mxu0 %v327
  %1100 = vmatprep.subr.mxu0 0.0
  %1101 = vmatpush1.msra.mxu0 %v328
  %1102 = vmatprep.subr.mxu0 0.0
  %1103 = vmatpush1.msra.mxu0 %v329
  %1104 = vmatprep.subr.mxu0 0.0
  %1105 = vmatpush1.msra.mxu0 0.0
  %1106 = vmatprep.subr.mxu0 0.0
  %1107 = vmatpush1.msra.mxu0 0.0
  %1108 = vmatprep.subr.mxu0 0.0
  %1109 = vmatpush1.msra.mxu0 0.0
  %1110 = vmatprep.subr.mxu0 0.0
  %1111 = vmatpush1.msra.mxu0 0.0
  %1112 = vmatprep.subr.mxu0 0.0
  %1113 = vmatpush1.msra.mxu0 0.0
  %1114 = vmatprep.subr.mxu0 0.0
  %1115 = vmatpush1.msra.mxu0 0.0
  %1116 = vmatprep.subr.mxu0 0.0
  %1117 = vmatpush1.msra.mxu0 0.0
  %1118 = vmatprep.subr.mxu0 0.0
  %1119 = vmatpush1.msra.mxu0 0.0
  %1120 = vmatprep.subr.mxu0 0.0
  %1121 = vmatpush1.msra.mxu0 0.0
  %1122 = vmatprep.subr.mxu0 0.0
  %1123 = vmatpush1.msra.mxu0 0.0
  %1124 = vmatprep.subr.mxu0 0.0
  %1125 = vmatpush1.msra.mxu0 0.0
  %1126 = vmatprep.subr.mxu0 0.0
  %1127 = vmatpush1.msra.mxu0 0.0
  %1128 = vmatprep.subr.mxu0 0.0
  %1129 = vmatpush1.msra.mxu0 0.0
  %1130 = vmatprep.subr.mxu0 0.0
  %1131 = vmatpush1.msra.mxu0 0.0
  %1132 = vmatprep.subr.mxu0 0.0
  %1133 = vmatpush1.msra.mxu0 0.0
  %1134 = vmatprep.subr.mxu0 0.0
  %1135 = vmatpush1.msra.mxu0 0.0
  %1136 = vmatprep.subr.mxu0 0.0
  %1137 = vmatpush1.msra.mxu0 0.0
  %1138 = vmatprep.subr.mxu0 0.0
  %1139 = vmatpush1.msra.mxu0 0.0
  %1140 = vmatprep.subr.mxu0 0.0
  %1141 = vmatpush1.msra.mxu0 0.0
  %1142 = vmatprep.subr.mxu0 0.0
  %1143 = vmatpush1.msra.mxu0 0.0
  %1144 = vmatprep.subr.mxu0 0.0
  %1145 = vmatpush1.msra.mxu0 0.0
  %1146 = vmatprep.subr.mxu0 0.0
  %1147 = vmatpush1.msra.mxu0 0.0
  %1148 = vmatprep.subr.mxu0 0.0
  %1149 = vmatpush1.msra.mxu0 0.0
  %1150 = vmatprep.subr.mxu0 0.0
  %1151 = vmatpush1.msra.mxu0 0.0
  %1152 = vmatprep.subr.mxu0 0.0
  %1153 = vmatpush1.msra.mxu0 0.0
  %1154 = vmatprep.subr.mxu0 0.0
  %1155 = vmatpush1.msra.mxu0 0.0
  %1156 = vmatprep.subr.mxu0 0.0
  %1157 = vmatpush1.msra.mxu0 0.0
  %1158 = vmatprep.subr.mxu0 0.0
  %1159 = vmatpush1.msra.mxu0 0.0
  %1160 = vmatprep.mubr.f32.mxu0 0.0
  %1161 = vmatmul.mubr.f32.gmra.mrb[0].mxu0 %v1094
  %v1162 = vpop.f32.mrb[0].mxu0
  %v1163 = vadd.f32 0.0, %v1162
  %v1164 = vpop.f32.mrb[0].mxu0
  %1165 = vdwg.mxu0
  %v1166 = vadd.f32 %v1093, %v1163
  %v1167 = vxor.u32 %v1166, 2147483648
  %v1168 = vmul.f32 %v1167, 1.442695
  %v1169 = vpow.pop %v1168
  %v1170 = vadd.f32 %v1169, 1.0
  %v1171 = vrcp.pop %v1170
  %v1172 = vmul.f32 1.0, %v1171
  %v1173 = vtanh.pop %v1166
  %v1174 = vmul.f32 %v1172, %v1078
  %1176 = vrot.lane.b32.xlu0 %v1173, 64
  %v1177 = vpop.permute.xlu0 %1176
  %v1179 = vmul.f32 %v1172, %v1177
  %1181 = vrot.lane.b32.xlu0 %v1179, 32
  %v1182 = vpop.permute.xlu0 %1181
  %v1184 = vadd.f32 %v1174, %v1182
  %v1185 = vtanh.pop %v1184
  %1187 = vrot.lane.b32.xlu0 %v1185, 64
  %v1188 = vpop.permute.xlu0 %1187
  %v1190 = vmul.f32 %v1172, %v1188
  %1192 = vrot.lane.b32.xlu0 %v1190, 32
  %v1193 = vpop.permute.xlu0 %1192
  %1195 = vst.msk [vmem:[%s6 + $0x38] sm:$0xff] %vm451, %v1193
  %1196 = vst.msk [vmem:[%s6] sm:$0xff] %vm453, %v1193
  // Predicated region
  $region26: #{context_encoder_forward.2} parent=0 // pred_check
    _
  $region27: #{context_encoder_forward.2} parent=0 // pred_check_branch
    %1198 = sbr.rel (0) target = $region29
  $region28: #{context_encoder_forward.2} parent=0 // pred_region
    _
  $region29: #{context_encoder_forward.2} parent=0 // pred_fallthru
    _
  // Predicated region
  $region30: #{context_encoder_forward.2} parent=0 // pred_check
    _
  $region31: #{context_encoder_forward.2} parent=0 // pred_check_branch
    %1200 = sbr.rel (0) target = $region33
  $region32: #{context_encoder_forward.2} parent=0 // pred_region
    _
  $region33: #{context_encoder_forward.2} parent=0 // pred_fallthru
    _

</llo_original>
